<compile_context>
chip_gen: v5e
topology: v5e:2x2
jax: 0.10.0
libtpu: 0.0.40
codegen_flags: <defaults>
</compile_context>

<pallas_src>
from functools import partial

import jax
import jax.numpy as jnp
import numpy as np
from jax import lax
from jax.experimental import pallas as pl
from jax.experimental.pallas import tpu as pltpu

NEG_SLOPE = 0.01  # nn.LeakyReLU() default


def _leaky(v):
    return jnp.where(v >= 0, v, NEG_SLOPE * v)


def _round_up(x, m):
    return (x + m - 1) // m * m


def _pick_tile(total, candidates):
    for c in candidates:
        if total % c == 0:
            return c
    return total


def _vmem_limit_bytes():
    """Generation-aware VMEM limit (v5e/v6e: 128 MiB, v7x: 64 MiB per TC)."""
    cap = 64 * 1024 * 1024          # conservative fallback = smallest generation
    try:
        cap = int(pltpu.get_tpu_info().vmem_capacity_bytes)
    except Exception:
        pass
    return max(32 * 1024 * 1024, min(int(cap * 0.7), 96 * 1024 * 1024))


# -----------------------------------------------------------------------------
# Stage 1: embedding linear + stacked residual GRUs + hidden linear (monolithic)
# -----------------------------------------------------------------------------
def rlst_core_kernel(T, x_ref, h0_ref, wemb_ref, bemb_ref, wih_hbm, whh_hbm,
                     bih_ref, bhh_ref, wlin_ref, blin_ref,
                     y_ref, hnew_ref,
                     rnn_in, xg_buf, wih_buf, whh_buf, wsem):
    """x_ref: (TBr, E) time-major bf16 (row = t*B + b, padded rows at the end).
    y_ref: (TBr, H) bf16.  hnew_ref: (L, B, H) f32.
    wih_hbm / whh_hbm: (L, H, 3H) bf16 refs left in HBM (streamed per layer).
    All dims already padded to (8,128)-friendly multiples."""
    L, B, H = h0_ref.shape

    # ---- per-layer GRU weight streaming (double-buffered manual DMA) ----
    def fetch(l, slot):
        pltpu.make_async_copy(wih_hbm.at[l], wih_buf.at[slot], wsem.at[0, slot]).start()
        pltpu.make_async_copy(whh_hbm.at[l], whh_buf.at[slot], wsem.at[1, slot]).start()

    def wait(l, slot):
        pltpu.make_async_copy(wih_hbm.at[l], wih_buf.at[slot], wsem.at[0, slot]).wait()
        pltpu.make_async_copy(whh_hbm.at[l], whh_buf.at[slot], wsem.at[1, slot]).wait()

    fetch(0, 0)  # layer-0 weights DMA overlaps the embedding matmul below

    # embedding_linear + LeakyReLU (bf16 MXU operands, f32 accumulation)
    pre = jnp.dot(x_ref[...], wemb_ref[...],
                  preferred_element_type=jnp.float32) + bemb_ref[...]
    rnn_in[...] = _leaky(pre).astype(rnn_in.dtype)       # bf16 residual stream

    for l in range(L):                       # layer loop unrolled at trace time
        slot = l & 1
        if l + 1 < L:
            fetch(l + 1, 1 - slot)           # prefetch next layer's weights
        wait(l, slot)
        w_hh = whh_buf[slot]                 # (H, 3H) bf16, gate order [r|z|n]

        # input-side gate pre-activations for ALL timesteps in one MXU pass;
        # stored bf16 (re-read once per step, added to the f32 hg result).
        xg_buf[...] = (jnp.dot(rnn_in[...], wih_buf[slot],
                               preferred_element_type=jnp.float32)
                       + bih_ref[l]).astype(xg_buf.dtype)

        # hoist the per-step bias broadcast out of the loop (JAX doesn't CSE it)
        bhh = jnp.broadcast_to(bhh_ref[l], (B, 3 * H))

        def step(t, h):
            if isinstance(t, int):
                row = t * B                          # static (unrolled path)
            else:
                row = pl.multiple_of(t * B, B)       # aligned dynamic slice
            xg_t = xg_buf[pl.ds(row, B), :]
            hg = jnp.dot(h.astype(jnp.bfloat16), w_hh,
                         preferred_element_type=jnp.float32) + bhh
            # fused 2H-wide sigmoid for r,z; 128-lane aligned gate slices
            rz = jax.nn.sigmoid(xg_t[:, :2 * H] + hg[:, :2 * H])
            r, z = rz[:, :H], rz[:, H:]
            n = jnp.tanh(xg_t[:, 2 * H:] + r * hg[:, 2 * H:])
            h_new = n + z * (h - n)
            # fused residual: xg_buf already snapshotted this layer's inputs,
            # so overwriting rnn_in in place is safe.
            rnn_in[pl.ds(row, B), :] = (h_new + rnn_in[pl.ds(row, B), :]
                                        ).astype(rnn_in.dtype)
            return h_new

        if T <= 32:
            # full unroll: straight-line code, LLO scheduler sees every step
            h = h0_ref[l]
            for t in range(T):
                h = step(t, h)
        else:
            # partially unrolled visible loop so adjacent steps can overlap
            h = lax.fori_loop(0, T, step, h0_ref[l], unroll=4)
        hnew_ref[l] = h

    # self.linear + LeakyReLU; vocab projection runs in a separate gridded call
    y = _leaky(jnp.dot(rnn_in[...], wlin_ref[...],
                       preferred_element_type=jnp.float32) + blin_ref[...])
    y_ref[...] = y.astype(y_ref.dtype)


# -----------------------------------------------------------------------------
# Stage 2: vocab projection, gridded + auto-pipelined (scales to large V / T)
# -----------------------------------------------------------------------------
def proj_kernel(y_ref, w_ref, b_ref, o_ref):
    o_ref[...] = jnp.dot(y_ref[...], w_ref[...],
                         preferred_element_type=jnp.float32) + b_ref[...]


def leaky_residual_approximator(src, previous_output, rnn_states, params):
    """src, previous_output: int32 (B, T); rnn_states: f32 (L, B, H).
    Returns (outputs (B, T, V+2), rnn_new_states (L, B, H))."""
    B, T = src.shape
    L, _, H = rnn_states.shape
    E = params["w_emb"].shape[0]
    V2 = params["w_out"].shape[1]

    # pad to TPU-native tiles: batch -> 8 sublanes, feature dims -> 128 lanes,
    # time-major row count -> multiple of 256 (keeps stage-2 MXU tiles >= 256)
    Bp = _round_up(B, 8)
    Hp = _round_up(H, 128)
    Ep = _round_up(E, 128)
    V2p = _round_up(V2, 128)
    TBp = T * Bp
    TBr = _round_up(TBp, 256)

    vmem_limit = _vmem_limit_bytes()

    # ---- glue (plain JAX): embedding gathers, concat, padding, layout ----
    x = jnp.concatenate([params["src_emb"][src],
                         params["trg_emb"][previous_output]], axis=-1)  # (B,T,E)
    x = jnp.pad(x.astype(jnp.float32), ((0, Bp - B), (0, 0), (0, Ep - E)))
    x_tm = jnp.swapaxes(x, 0, 1).reshape(TBp, Ep)                       # (T*Bp,Ep)
    x_tm = jnp.pad(x_tm, ((0, TBr - TBp), (0, 0))).astype(jnp.bfloat16)

    # zero-padded h0 lanes stay exactly zero through the GRU recurrence
    h0 = jnp.pad(rnn_states.astype(jnp.float32),
                 ((0, 0), (0, Bp - B), (0, Hp - H)))

    def pad_w(w, r, c):     # weight -> zero-pad -> bf16 (MXU operand)
        return jnp.pad(w, ((0, r - w.shape[0]), (0, c - w.shape[1]))).astype(jnp.bfloat16)

    def pad_b(b, c):        # bias -> zero-pad, keep f32
        return jnp.pad(b, ((0, 0), (0, c - b.shape[1]))).astype(jnp.float32)

    def pad_gru_w(w):       # (L,H,3H) -> (L,Hp,3Hp); pad each gate block [r|z|n]
        w4 = jnp.pad(w.reshape(L, H, 3, H),
                     ((0, 0), (0, Hp - H), (0, 0), (0, Hp - H)))
        return w4.reshape(L, Hp, 3 * Hp).astype(jnp.bfloat16)

    def pad_gru_b(b):       # (L,1,3H) -> (L,1,3Hp); per-gate padding
        b4 = jnp.pad(b.reshape(L, 1, 3, H),
                     ((0, 0), (0, 0), (0, 0), (0, Hp - H)))
        return b4.reshape(L, 1, 3 * Hp).astype(jnp.float32)

    vmem = pl.BlockSpec(memory_space=pltpu.MemorySpace.VMEM)
    hbm_any = pl.BlockSpec(memory_space=pl.ANY)   # GRU weight stacks stay in HBM

    # ---- stage 1: embedding linear + residual GRU stack + hidden linear ----
    y_bf, h_new_p = pl.pallas_call(
        partial(rlst_core_kernel, T),
        out_shape=(jax.ShapeDtypeStruct((TBr, Hp), jnp.bfloat16),
                   jax.ShapeDtypeStruct((L, Bp, Hp), jnp.float32)),
        in_specs=[vmem, vmem, vmem, vmem, hbm_any, hbm_any,
                  vmem, vmem, vmem, vmem],
        out_specs=(vmem, vmem),
        scratch_shapes=[
            pltpu.VMEM((TBr, Hp), jnp.bfloat16),         # residual stream (bf16)
            pltpu.VMEM((TBr, 3 * Hp), jnp.bfloat16),     # x-gate buffer (bf16)
            pltpu.VMEM((2, Hp, 3 * Hp), jnp.bfloat16),   # w_ih double-buffer
            pltpu.VMEM((2, Hp, 3 * Hp), jnp.bfloat16),   # w_hh double-buffer
            pltpu.SemaphoreType.DMA((2, 2)),             # per-(weight,slot) sems
        ],
        compiler_params=pltpu.CompilerParams(vmem_limit_bytes=vmem_limit),
    )(x_tm, h0,
      pad_w(params["w_emb"], Ep, Hp), pad_b(params["b_emb"], Hp),
      pad_gru_w(params["w_ih"]), pad_gru_w(params["w_hh"]),
      pad_gru_b(params["b_ih"]), pad_gru_b(params["b_hh"]),
      pad_w(params["w_lin"], Hp, Hp), pad_b(params["b_lin"], Hp))

    # ---- stage 2: output projection, gridded over (row tiles x vocab tiles) ----
    tm = _pick_tile(TBr, (512, 256))          # TBr is a multiple of 256 by construction
    tn = _pick_tile(V2p, (512, 256, 128))
    ni, nj = TBr // tm, V2p // tn

    # Keep the larger operand resident across the inner grid axis so it is
    # fetched from HBM only once; re-stream the smaller one.
    if V2p >= TBr:   # w_out (Hp,V2p) is bigger: vocab outer, row tiles inner
        grid = (nj, ni)
        y_spec = pl.BlockSpec((tm, Hp), lambda j, i: (i, 0))
        w_spec = pl.BlockSpec((Hp, tn), lambda j, i: (0, j))
        b_spec = pl.BlockSpec((1, tn), lambda j, i: (0, j))
        o_spec = pl.BlockSpec((tm, tn), lambda j, i: (i, j))
    else:            # y (TBr,Hp) is bigger: rows outer, vocab tiles inner
        grid = (ni, nj)
        y_spec = pl.BlockSpec((tm, Hp), lambda i, j: (i, 0))
        w_spec = pl.BlockSpec((Hp, tn), lambda i, j: (0, j))
        b_spec = pl.BlockSpec((1, tn), lambda i, j: (0, j))
        o_spec = pl.BlockSpec((tm, tn), lambda i, j: (i, j))

    logits_p = pl.pallas_call(
        proj_kernel,
        out_shape=jax.ShapeDtypeStruct((TBr, V2p), jnp.float32),
        grid=grid,
        in_specs=[y_spec, w_spec, b_spec],
        out_specs=o_spec,
        compiler_params=pltpu.CompilerParams(
            dimension_semantics=("parallel", "parallel"),
            vmem_limit_bytes=vmem_limit),
    )(y_bf, pad_w(params["w_out"], Hp, V2p), pad_b(params["b_out"], V2p))

    # strip padding, back to PyTorch's batch-first convention
    outputs = jnp.swapaxes(logits_p[:TBp].reshape(T, Bp, V2p)[:, :B, :V2], 0, 1)
    return outputs, h_new_p[:, :B, :H]


def init_params(key, src_vocab, trg_vocab, src_embed_dim, trg_embed_dim, H, L):
    ks = jax.random.split(key, 12)
    E = src_embed_dim + trg_embed_dim
    V2 = trg_vocab + 2
    be, bh = 1.0 / np.sqrt(E), 1.0 / np.sqrt(H)

    def u(k, shape, bound):
        return jax.random.uniform(k, shape, jnp.float32, -bound, bound)

    return dict(
        src_emb=jax.random.normal(ks[0], (src_vocab, src_embed_dim), jnp.float32),
        trg_emb=jax.random.normal(ks[1], (trg_vocab, trg_embed_dim), jnp.float32),
        w_emb=u(ks[2], (E, H), be), b_emb=u(ks[3], (1, H), be),
        w_ih=u(ks[4], (L, H, 3 * H), bh), w_hh=u(ks[5], (L, H, 3 * H), bh),
        b_ih=u(ks[6], (L, 1, 3 * H), bh), b_hh=u(ks[7], (L, 1, 3 * H), bh),
        w_lin=u(ks[8], (H, H), bh), b_lin=u(ks[9], (1, H), bh),
        w_out=u(ks[10], (H, V2), bh), b_out=u(ks[11], (1, V2), bh),
    )


def reference_forward(src, previous_output, rnn_states, params):
    """Pure-JAX f32 reference mirroring the PyTorch forward."""
    x = jnp.concatenate([params["src_emb"][src], params["trg_emb"][previous_output]], -1)
    rnn_input = _leaky(x @ params["w_emb"] + params["b_emb"][0])      # (B, T, H)
    L = rnn_states.shape[0]
    h_news = []
    for l in range(L):
        xg = rnn_input @ params["w_ih"][l] + params["b_ih"][l, 0]     # (B, T, 3H)
        H = rnn_states.shape[-1]

        def step(h, xg_t):
            hg = h @ params["w_hh"][l] + params["b_hh"][l, 0]
            xr, xz, xn = xg_t[:, :H], xg_t[:, H:2 * H], xg_t[:, 2 * H:]
            hr, hz, hn = hg[:, :H], hg[:, H:2 * H], hg[:, 2 * H:]
            r = jax.nn.sigmoid(xr + hr)
            z = jax.nn.sigmoid(xz + hz)
            n = jnp.tanh(xn + r * hn)
            h_new = (1.0 - z) * n + z * h
            return h_new, h_new

        h_final, outs = lax.scan(step, rnn_states[l], jnp.swapaxes(xg, 0, 1))
        h_news.append(h_final)
        rnn_input = jnp.swapaxes(outs, 0, 1) + rnn_input
    y = _leaky(rnn_input @ params["w_lin"] + params["b_lin"][0])
    o = y @ params["w_out"] + params["b_out"][0]
    return o, jnp.stack(h_news)


if __name__ == "__main__":
    # small, module-consistent shapes
    B, T = 2, 8
    SRC_VOCAB, TRG_VOCAB = 16, 14
    SRC_ED, TRG_ED = 64, 64
    H, L = 32, 2

    key = jax.random.PRNGKey(0)
    kp, ks, kt, kh = jax.random.split(key, 4)

    params = init_params(kp, SRC_VOCAB, TRG_VOCAB, SRC_ED, TRG_ED, H, L)
    src = jax.random.randint(ks, (B, T), 0, SRC_VOCAB, dtype=jnp.int32)
    previous_output = jax.random.randint(kt, (B, T), 0, TRG_VOCAB, dtype=jnp.int32)
    rnn_states = 0.1 * jax.random.normal(kh, (L, B, H), jnp.float32)

    outputs, rnn_new_states = jax.jit(leaky_residual_approximator)(
        src, previous_output, rnn_states, params)
    jax.block_until_ready((outputs, rnn_new_states))

    # reference is pure f32; kernel uses bf16 MXU operands (f32 accumulation)
    # AND bf16 storage of the xg / residual activations, so compare with a
    # bf16-appropriate tolerance.
    ref_out, ref_h = reference_forward(src, previous_output, rnn_states, params)
    np.testing.assert_allclose(np.asarray(outputs), np.asarray(ref_out),
                               rtol=3e-2, atol=3e-2)
    np.testing.assert_allclose(np.asarray(rnn_new_states), np.asarray(ref_h),
                               rtol=3e-2, atol=3e-2)

    assert outputs.shape == (B, T, TRG_VOCAB + 2)
    assert rnn_new_states.shape == (L, B, H)
    print("KERNEL_OK")
</pallas_src>

<mosaic_0001>
module attributes {stable_mosaic.version = 11 : i64} {
  func.func @proj_kernel(%arg0: i32, %arg1: i32, %arg2: memref<256x128xbf16, #tpu.memory_space<vmem>>, %arg3: memref<128x128xbf16, #tpu.memory_space<vmem>>, %arg4: memref<1x128xf32, #tpu.memory_space<vmem>>, %arg5: memref<256x128xf32, #tpu.memory_space<vmem>>) attributes {dimension_semantics = [#tpu.dimension_semantics<parallel>, #tpu.dimension_semantics<parallel>], iteration_bounds = array<i64: 1, 1>, scalar_prefetch = 0 : i64, scratch_operands = 0 : i64, tpu.core_type = #tpu.core_type<tc>, window_params = [{transform_indices = @transform_0, window_bounds = array<i64: 256, 128>}, {transform_indices = @transform_1, window_bounds = array<i64: 128, 128>}, {transform_indices = @transform_2, window_bounds = array<i64: 1, 128>}, {transform_indices = @transform_3, window_bounds = array<i64: 256, 128>}]} {
    %c0 = arith.constant 0 : index
    %c0_0 = arith.constant 0 : index
    %0 = vector.load %arg2[%c0, %c0_0] : memref<256x128xbf16, #tpu.memory_space<vmem>>, vector<256x128xbf16>
    %c0_1 = arith.constant 0 : index
    %c0_2 = arith.constant 0 : index
    %1 = vector.load %arg3[%c0_1, %c0_2] : memref<128x128xbf16, #tpu.memory_space<vmem>>, vector<128x128xbf16>
    %cst = arith.constant dense<0.000000e+00> : vector<256x128xf32>
    %2 = tpu.matmul %0, %1, %cst {dimension_numbers = #tpu.dot_dimension_numbers<[1], [0], [0], [1], [0, 0, 1, 1], [], []>} : vector<256x128xbf16>, vector<128x128xbf16>, vector<256x128xf32> -> vector<256x128xf32>
    %c0_3 = arith.constant 0 : index
    %c0_4 = arith.constant 0 : index
    %3 = vector.load %arg4[%c0_3, %c0_4] : memref<1x128xf32, #tpu.memory_space<vmem>>, vector<1x128xf32>
    %4 = vector.broadcast %3 : vector<1x128xf32> to vector<256x128xf32>
    %5 = arith.addf %2, %4 : vector<256x128xf32>
    %c0_5 = arith.constant 0 : index
    %c0_6 = arith.constant 0 : index
    %6 = vector.load %arg5[%c0_5, %c0_6] : memref<256x128xf32, #tpu.memory_space<vmem>>, vector<256x128xf32>
    tpu.vector_store %arg5[%c0_5, %c0_6], %5 {strides = array<i32>} : memref<256x128xf32, #tpu.memory_space<vmem>>, vector<256x128xf32>,
    return
  }
  func.func @transform_0(%arg0: i32, %arg1: i32) -> (i32, i32) {
    %c0_i32 = arith.constant 0 : i32
    %c0_i32_0 = arith.constant 0 : i32
    return %arg0, %c0_i32 : i32, i32
  }
  func.func @transform_1(%arg0: i32, %arg1: i32) -> (i32, i32) {
    %c0_i32 = arith.constant 0 : i32
    %c0_i32_0 = arith.constant 0 : i32
    return %c0_i32, %arg1 : i32, i32
  }
  func.func @transform_2(%arg0: i32, %arg1: i32) -> (i32, i32) {
    %c0_i32 = arith.constant 0 : i32
    %c0_i32_0 = arith.constant 0 : i32
    return %c0_i32, %arg1 : i32, i32
  }
  func.func @transform_3(%arg0: i32, %arg1: i32) -> (i32, i32) {
    %c0_i32 = arith.constant 0 : i32
    return %arg0, %arg1 : i32, i32
  }
}

module attributes {stable_mosaic.version = 11 : i64} {
  func.func @rlst_core_kernel(%arg0: memref<256x128xbf16, #tpu.memory_space<vmem>>, %arg1: memref<2x8x128xf32, #tpu.memory_space<vmem>>, %arg2: memref<128x128xbf16, #tpu.memory_space<vmem>>, %arg3: memref<1x128xf32, #tpu.memory_space<vmem>>, %arg4: memref<2x128x384xbf16, #tpu.memory_space<any>>, %arg5: memref<2x128x384xbf16, #tpu.memory_space<any>>, %arg6: memref<2x1x384xf32, #tpu.memory_space<vmem>>, %arg7: memref<2x1x384xf32, #tpu.memory_space<vmem>>, %arg8: memref<128x128xbf16, #tpu.memory_space<vmem>>, %arg9: memref<1x128xf32, #tpu.memory_space<vmem>>, %arg10: memref<256x128xbf16, #tpu.memory_space<vmem>>, %arg11: memref<2x8x128xf32, #tpu.memory_space<vmem>>, %arg12: memref<256x128xbf16, #tpu.memory_space<vmem>>, %arg13: memref<256x384xbf16, #tpu.memory_space<vmem>>, %arg14: memref<2x128x384xbf16, #tpu.memory_space<vmem>>, %arg15: memref<2x128x384xbf16, #tpu.memory_space<vmem>>, %arg16: memref<2x2x!tpu.dma_semaphore, #tpu.memory_space<semaphore_mem>>) attributes {dimension_semantics = [], scalar_prefetch = 0 : i64, scratch_operands = 5 : i64, tpu.core_type = #tpu.core_type<tc>} {
    %c0_i32 = arith.constant 0 : i32
    %c0_i32_0 = arith.constant 0 : i32
    %c0_i32_1 = arith.constant 0 : i32
    %c0_i32_2 = arith.constant 0 : i32
    %c0_i32_3 = arith.constant 0 : i32
    %c0_i32_4 = arith.constant 0 : i32
    %0 = tpu.memref_slice %arg4[%c0_i32, %c0_i32_3, %c0_i32_4] : memref<2x128x384xbf16, #tpu.memory_space<any>> -> memref<1x128x384xbf16, #tpu.memory_space<any>>
    %1 = tpu.memref_squeeze %0 : memref<1x128x384xbf16, #tpu.memory_space<any>> -> memref<128x384xbf16, #tpu.memory_space<any>>
    %c0_i32_5 = arith.constant 0 : i32
    %c0_i32_6 = arith.constant 0 : i32
    %2 = tpu.memref_slice %arg14[%c0_i32_0, %c0_i32_5, %c0_i32_6] : memref<2x128x384xbf16, #tpu.memory_space<vmem>> -> memref<1x128x384xbf16, #tpu.memory_space<vmem>>
    %3 = tpu.memref_squeeze %2 : memref<1x128x384xbf16, #tpu.memory_space<vmem>> -> memref<128x384xbf16, #tpu.memory_space<vmem>>
    %4 = tpu.memref_slice %arg16[%c0_i32_1, %c0_i32_2] : memref<2x2x!tpu.dma_semaphore, #tpu.memory_space<semaphore_mem>> -> memref<1x1x!tpu.dma_semaphore, #tpu.memory_space<semaphore_mem>>
    %5 = tpu.memref_squeeze %4 : memref<1x1x!tpu.dma_semaphore, #tpu.memory_space<semaphore_mem>> -> memref<!tpu.dma_semaphore, #tpu.memory_space<semaphore_mem>>
    tpu.enqueue_dma source(%1 : memref<128x384xbf16, #tpu.memory_space<any>>) target(%3 : memref<128x384xbf16, #tpu.memory_space<vmem>>) target_semaphore(%5 : memref<!tpu.dma_semaphore, #tpu.memory_space<semaphore_mem>>)
    %c0_i32_7 = arith.constant 0 : i32
    %c0_i32_8 = arith.constant 0 : i32
    %c1_i32 = arith.constant 1 : i32
    %c0_i32_9 = arith.constant 0 : i32
    %c0_i32_10 = arith.constant 0 : i32
    %c0_i32_11 = arith.constant 0 : i32
    %6 = tpu.memref_slice %arg5[%c0_i32_7, %c0_i32_10, %c0_i32_11] : memref<2x128x384xbf16, #tpu.memory_space<any>> -> memref<1x128x384xbf16, #tpu.memory_space<any>>
    %7 = tpu.memref_squeeze %6 : memref<1x128x384xbf16, #tpu.memory_space<any>> -> memref<128x384xbf16, #tpu.memory_space<any>>
    %c0_i32_12 = arith.constant 0 : i32
    %c0_i32_13 = arith.constant 0 : i32
    %8 = tpu.memref_slice %arg15[%c0_i32_8, %c0_i32_12, %c0_i32_13] : memref<2x128x384xbf16, #tpu.memory_space<vmem>> -> memref<1x128x384xbf16, #tpu.memory_space<vmem>>
    %9 = tpu.memref_squeeze %8 : memref<1x128x384xbf16, #tpu.memory_space<vmem>> -> memref<128x384xbf16, #tpu.memory_space<vmem>>
    %10 = tpu.memref_slice %arg16[%c1_i32, %c0_i32_9] : memref<2x2x!tpu.dma_semaphore, #tpu.memory_space<semaphore_mem>> -> memref<1x1x!tpu.dma_semaphore, #tpu.memory_space<semaphore_mem>>
    %11 = tpu.memref_squeeze %10 : memref<1x1x!tpu.dma_semaphore, #tpu.memory_space<semaphore_mem>> -> memref<!tpu.dma_semaphore, #tpu.memory_space<semaphore_mem>>
    tpu.enqueue_dma source(%7 : memref<128x384xbf16, #tpu.memory_space<any>>) target(%9 : memref<128x384xbf16, #tpu.memory_space<vmem>>) target_semaphore(%11 : memref<!tpu.dma_semaphore, #tpu.memory_space<semaphore_mem>>)
    %c0 = arith.constant 0 : index
    %c0_14 = arith.constant 0 : index
    %12 = vector.load %arg0[%c0, %c0_14] : memref<256x128xbf16, #tpu.memory_space<vmem>>, vector<256x128xbf16>
    %c0_15 = arith.constant 0 : index
    %c0_16 = arith.constant 0 : index
    %13 = vector.load %arg2[%c0_15, %c0_16] : memref<128x128xbf16, #tpu.memory_space<vmem>>, vector<128x128xbf16>
    %cst = arith.constant dense<0.000000e+00> : vector<256x128xf32>
    %14 = tpu.matmul %12, %13, %cst {dimension_numbers = #tpu.dot_dimension_numbers<[1], [0], [0], [1], [0, 0, 1, 1], [], []>} : vector<256x128xbf16>, vector<128x128xbf16>, vector<256x128xf32> -> vector<256x128xf32>
    %c0_17 = arith.constant 0 : index
    %c0_18 = arith.constant 0 : index
    %15 = vector.load %arg3[%c0_17, %c0_18] : memref<1x128xf32, #tpu.memory_space<vmem>>, vector<1x128xf32>
    %16 = vector.broadcast %15 : vector<1x128xf32> to vector<256x128xf32>
    %17 = arith.addf %14, %16 : vector<256x128xf32>
    %cst_19 = arith.constant 0.000000e+00 : f32
    %18 = vector.broadcast %cst_19 : f32 to vector<256x128xf32>
    %19 = arith.cmpf oge, %17, %18 : vector<256x128xf32>
    %cst_20 = arith.constant 0.00999999977 : f32
    %20 = vector.broadcast %cst_20 : f32 to vector<256x128xf32>
    %21 = arith.mulf %20, %17 : vector<256x128xf32>
    %22 = arith.select %19, %17, %21 : vector<256x128xi1>, vector<256x128xf32>
    %23 = arith.truncf %22 : vector<256x128xf32> to vector<256x128xbf16>
    %c0_21 = arith.constant 0 : index
    %c0_22 = arith.constant 0 : index
    %24 = vector.load %arg12[%c0_21, %c0_22] : memref<256x128xbf16, #tpu.memory_space<vmem>>, vector<256x128xbf16>
    tpu.vector_store %arg12[%c0_21, %c0_22], %23 {strides = array<i32>} : memref<256x128xbf16, #tpu.memory_space<vmem>>, vector<256x128xbf16>,
    %c1_i32_23 = arith.constant 1 : i32
    %c1_i32_24 = arith.constant 1 : i32
    %c0_i32_25 = arith.constant 0 : i32
    %c1_i32_26 = arith.constant 1 : i32
    %c0_i32_27 = arith.constant 0 : i32
    %c0_i32_28 = arith.constant 0 : i32
    %25 = tpu.memref_slice %arg4[%c1_i32_23, %c0_i32_27, %c0_i32_28] : memref<2x128x384xbf16, #tpu.memory_space<any>> -> memref<1x128x384xbf16, #tpu.memory_space<any>>
    %26 = tpu.memref_squeeze %25 : memref<1x128x384xbf16, #tpu.memory_space<any>> -> memref<128x384xbf16, #tpu.memory_space<any>>
    %c0_i32_29 = arith.constant 0 : i32
    %c0_i32_30 = arith.constant 0 : i32
    %27 = tpu.memref_slice %arg14[%c1_i32_24, %c0_i32_29, %c0_i32_30] : memref<2x128x384xbf16, #tpu.memory_space<vmem>> -> memref<1x128x384xbf16, #tpu.memory_space<vmem>>
    %28 = tpu.memref_squeeze %27 : memref<1x128x384xbf16, #tpu.memory_space<vmem>> -> memref<128x384xbf16, #tpu.memory_space<vmem>>
    %29 = tpu.memref_slice %arg16[%c0_i32_25, %c1_i32_26] : memref<2x2x!tpu.dma_semaphore, #tpu.memory_space<semaphore_mem>> -> memref<1x1x!tpu.dma_semaphore, #tpu.memory_space<semaphore_mem>>
    %30 = tpu.memref_squeeze %29 : memref<1x1x!tpu.dma_semaphore, #tpu.memory_space<semaphore_mem>> -> memref<!tpu.dma_semaphore, #tpu.memory_space<semaphore_mem>>
    tpu.enqueue_dma source(%26 : memref<128x384xbf16, #tpu.memory_space<any>>) target(%28 : memref<128x384xbf16, #tpu.memory_space<vmem>>) target_semaphore(%30 : memref<!tpu.dma_semaphore, #tpu.memory_space<semaphore_mem>>)
    %c1_i32_31 = arith.constant 1 : i32
    %c1_i32_32 = arith.constant 1 : i32
    %c1_i32_33 = arith.constant 1 : i32
    %c1_i32_34 = arith.constant 1 : i32
    %c0_i32_35 = arith.constant 0 : i32
    %c0_i32_36 = arith.constant 0 : i32
    %31 = tpu.memref_slice %arg5[%c1_i32_31, %c0_i32_35, %c0_i32_36] : memref<2x128x384xbf16, #tpu.memory_space<any>> -> memref<1x128x384xbf16, #tpu.memory_space<any>>
    %32 = tpu.memref_squeeze %31 : memref<1x128x384xbf16, #tpu.memory_space<any>> -> memref<128x384xbf16, #tpu.memory_space<any>>
    %c0_i32_37 = arith.constant 0 : i32
    %c0_i32_38 = arith.constant 0 : i32
    %33 = tpu.memref_slice %arg15[%c1_i32_32, %c0_i32_37, %c0_i32_38] : memref<2x128x384xbf16, #tpu.memory_space<vmem>> -> memref<1x128x384xbf16, #tpu.memory_space<vmem>>
    %34 = tpu.memref_squeeze %33 : memref<1x128x384xbf16, #tpu.memory_space<vmem>> -> memref<128x384xbf16, #tpu.memory_space<vmem>>
    %35 = tpu.memref_slice %arg16[%c1_i32_33, %c1_i32_34] : memref<2x2x!tpu.dma_semaphore, #tpu.memory_space<semaphore_mem>> -> memref<1x1x!tpu.dma_semaphore, #tpu.memory_space<semaphore_mem>>
    %36 = tpu.memref_squeeze %35 : memref<1x1x!tpu.dma_semaphore, #tpu.memory_space<semaphore_mem>> -> memref<!tpu.dma_semaphore, #tpu.memory_space<semaphore_mem>>
    tpu.enqueue_dma source(%32 : memref<128x384xbf16, #tpu.memory_space<any>>) target(%34 : memref<128x384xbf16, #tpu.memory_space<vmem>>) target_semaphore(%36 : memref<!tpu.dma_semaphore, #tpu.memory_space<semaphore_mem>>)
    %c0_i32_39 = arith.constant 0 : i32
    %c0_i32_40 = arith.constant 0 : i32
    %c0_i32_41 = arith.constant 0 : i32
    %c0_i32_42 = arith.constant 0 : i32
    %c0_i32_43 = arith.constant 0 : i32
    %c0_i32_44 = arith.constant 0 : i32
    %37 = tpu.memref_slice %arg4[%c0_i32_39, %c0_i32_43, %c0_i32_44] : memref<2x128x384xbf16, #tpu.memory_space<any>> -> memref<1x128x384xbf16, #tpu.memory_space<any>>
    %38 = tpu.memref_squeeze %37 : memref<1x128x384xbf16, #tpu.memory_space<any>> -> memref<128x384xbf16, #tpu.memory_space<any>>
    %c0_i32_45 = arith.constant 0 : i32
    %c0_i32_46 = arith.constant 0 : i32
    %39 = tpu.memref_slice %arg14[%c0_i32_40, %c0_i32_45, %c0_i32_46] : memref<2x128x384xbf16, #tpu.memory_space<vmem>> -> memref<1x128x384xbf16, #tpu.memory_space<vmem>>
    %40 = tpu.memref_squeeze %39 : memref<1x128x384xbf16, #tpu.memory_space<vmem>> -> memref<128x384xbf16, #tpu.memory_space<vmem>>
    %41 = tpu.memref_slice %arg16[%c0_i32_41, %c0_i32_42] : memref<2x2x!tpu.dma_semaphore, #tpu.memory_space<semaphore_mem>> -> memref<1x1x!tpu.dma_semaphore, #tpu.memory_space<semaphore_mem>>
    %42 = tpu.memref_squeeze %41 : memref<1x1x!tpu.dma_semaphore, #tpu.memory_space<semaphore_mem>> -> memref<!tpu.dma_semaphore, #tpu.memory_space<semaphore_mem>>
    tpu.wait_dma2 semaphore(%42 : memref<!tpu.dma_semaphore, #tpu.memory_space<semaphore_mem>>) src(%38 : memref<128x384xbf16, #tpu.memory_space<any>>) dst(%40 : memref<128x384xbf16, #tpu.memory_space<vmem>>)
    %c0_i32_47 = arith.constant 0 : i32
    %c0_i32_48 = arith.constant 0 : i32
    %c1_i32_49 = arith.constant 1 : i32
    %c0_i32_50 = arith.constant 0 : i32
    %c0_i32_51 = arith.constant 0 : i32
    %c0_i32_52 = arith.constant 0 : i32
    %43 = tpu.memref_slice %arg5[%c0_i32_47, %c0_i32_51, %c0_i32_52] : memref<2x128x384xbf16, #tpu.memory_space<any>> -> memref<1x128x384xbf16, #tpu.memory_space<any>>
    %44 = tpu.memref_squeeze %43 : memref<1x128x384xbf16, #tpu.memory_space<any>> -> memref<128x384xbf16, #tpu.memory_space<any>>
    %c0_i32_53 = arith.constant 0 : i32
    %c0_i32_54 = arith.constant 0 : i32
    %45 = tpu.memref_slice %arg15[%c0_i32_48, %c0_i32_53, %c0_i32_54] : memref<2x128x384xbf16, #tpu.memory_space<vmem>> -> memref<1x128x384xbf16, #tpu.memory_space<vmem>>
    %46 = tpu.memref_squeeze %45 : memref<1x128x384xbf16, #tpu.memory_space<vmem>> -> memref<128x384xbf16, #tpu.memory_space<vmem>>
    %47 = tpu.memref_slice %arg16[%c1_i32_49, %c0_i32_50] : memref<2x2x!tpu.dma_semaphore, #tpu.memory_space<semaphore_mem>> -> memref<1x1x!tpu.dma_semaphore, #tpu.memory_space<semaphore_mem>>
    %48 = tpu.memref_squeeze %47 : memref<1x1x!tpu.dma_semaphore, #tpu.memory_space<semaphore_mem>> -> memref<!tpu.dma_semaphore, #tpu.memory_space<semaphore_mem>>
    tpu.wait_dma2 semaphore(%48 : memref<!tpu.dma_semaphore, #tpu.memory_space<semaphore_mem>>) src(%44 : memref<128x384xbf16, #tpu.memory_space<any>>) dst(%46 : memref<128x384xbf16, #tpu.memory_space<vmem>>)
    %c0_55 = arith.constant 0 : index
    %c0_56 = arith.constant 0 : index
    %c0_57 = arith.constant 0 : index
    %49 = vector.load %arg15[%c0_55, %c0_56, %c0_57] : memref<2x128x384xbf16, #tpu.memory_space<vmem>>, vector<1x128x384xbf16>
    %50 = vector.shape_cast %49 : vector<1x128x384xbf16> to vector<128x384xbf16>
    %c0_58 = arith.constant 0 : index
    %c0_59 = arith.constant 0 : index
    %51 = vector.load %arg12[%c0_58, %c0_59] : memref<256x128xbf16, #tpu.memory_space<vmem>>, vector<256x128xbf16>
    %c0_60 = arith.constant 0 : index
    %c0_61 = arith.constant 0 : index
    %c0_62 = arith.constant 0 : index
    %52 = vector.load %arg14[%c0_60, %c0_61, %c0_62] : memref<2x128x384xbf16, #tpu.memory_space<vmem>>, vector<1x128x384xbf16>
    %53 = vector.shape_cast %52 : vector<1x128x384xbf16> to vector<128x384xbf16>
    %cst_63 = arith.constant dense<0.000000e+00> : vector<256x384xf32>
    %54 = tpu.matmul %51, %53, %cst_63 {dimension_numbers = #tpu.dot_dimension_numbers<[1], [0], [0], [1], [0, 0, 1, 1], [], []>} : vector<256x128xbf16>, vector<128x384xbf16>, vector<256x384xf32> -> vector<256x384xf32>
    %c0_64 = arith.constant 0 : index
    %c0_65 = arith.constant 0 : index
    %c0_66 = arith.constant 0 : index
    %55 = vector.load %arg6[%c0_64, %c0_65, %c0_66] : memref<2x1x384xf32, #tpu.memory_space<vmem>>, vector<1x1x384xf32>
    %56 = vector.shape_cast %55 : vector<1x1x384xf32> to vector<1x384xf32>
    %57 = vector.broadcast %56 : vector<1x384xf32> to vector<256x384xf32>
    %58 = arith.addf %54, %57 : vector<256x384xf32>
    %59 = arith.truncf %58 : vector<256x384xf32> to vector<256x384xbf16>
    %c0_67 = arith.constant 0 : index
    %c0_68 = arith.constant 0 : index
    %60 = vector.load %arg13[%c0_67, %c0_68] : memref<256x384xbf16, #tpu.memory_space<vmem>>, vector<256x384xbf16>
    tpu.vector_store %arg13[%c0_67, %c0_68], %59 {strides = array<i32>} : memref<256x384xbf16, #tpu.memory_space<vmem>>, vector<256x384xbf16>,
    %c0_69 = arith.constant 0 : index
    %c0_70 = arith.constant 0 : index
    %c0_71 = arith.constant 0 : index
    %61 = vector.load %arg7[%c0_69, %c0_70, %c0_71] : memref<2x1x384xf32, #tpu.memory_space<vmem>>, vector<1x1x384xf32>
    %62 = vector.shape_cast %61 : vector<1x1x384xf32> to vector<1x384xf32>
    %63 = vector.shape_cast %62 : vector<1x384xf32> to vector<1x384xf32>
    %64 = vector.broadcast %63 : vector<1x384xf32> to vector<8x384xf32>
    %c0_72 = arith.constant 0 : index
    %c0_73 = arith.constant 0 : index
    %c0_74 = arith.constant 0 : index
    %65 = vector.load %arg1[%c0_72, %c0_73, %c0_74] : memref<2x8x128xf32, #tpu.memory_space<vmem>>, vector<1x8x128xf32>
    %66 = vector.shape_cast %65 : vector<1x8x128xf32> to vector<8x128xf32>
    %c0_75 = arith.constant 0 : index
    %c0_76 = arith.constant 0 : index
    %67 = vector.load %arg13[%c0_75, %c0_76] : memref<256x384xbf16, #tpu.memory_space<vmem>>, vector<8x384xbf16>
    %68 = arith.truncf %66 : vector<8x128xf32> to vector<8x128xbf16>
    %cst_77 = arith.constant dense<0.000000e+00> : vector<8x384xf32>
    %69 = tpu.matmul %68, %50, %cst_77 {dimension_numbers = #tpu.dot_dimension_numbers<[1], [0], [0], [1], [0, 0, 1, 1], [], []>} : vector<8x128xbf16>, vector<128x384xbf16>, vector<8x384xf32> -> vector<8x384xf32>
    %70 = arith.addf %69, %64 : vector<8x384xf32>
    %71 = vector.extract_strided_slice %67 {offsets = [0, 0], sizes = [8, 256], strides = [1, 1]} : vector<8x384xbf16> to vector<8x256xbf16>
    %72 = vector.extract_strided_slice %70 {offsets = [0, 0], sizes = [8, 256], strides = [1, 1]} : vector<8x384xf32> to vector<8x256xf32>
    %73 = arith.extf %71 : vector<8x256xbf16> to vector<8x256xf32>
    %74 = arith.addf %73, %72 : vector<8x256xf32>
    %75 = arith.negf %74 : vector<8x256xf32>
    %76 = math.exp %75 : vector<8x256xf32>
    %cst_78 = arith.constant 1.000000e+00 : f32
    %77 = vector.broadcast %cst_78 : f32 to vector<8x256xf32>
    %78 = arith.addf %77, %76 : vector<8x256xf32>
    %79 = arith.divf %77, %78 : vector<8x256xf32>
    %80 = vector.extract_strided_slice %79 {offsets = [0, 0], sizes = [8, 128], strides = [1, 1]} : vector<8x256xf32> to vector<8x128xf32>
    %81 = vector.extract_strided_slice %79 {offsets = [0, 128], sizes = [8, 128], strides = [1, 1]} : vector<8x256xf32> to vector<8x128xf32>
    %82 = vector.extract_strided_slice %67 {offsets = [0, 256], sizes = [8, 128], strides = [1, 1]} : vector<8x384xbf16> to vector<8x128xbf16>
    %83 = vector.extract_strided_slice %70 {offsets = [0, 256], sizes = [8, 128], strides = [1, 1]} : vector<8x384xf32> to vector<8x128xf32>
    %84 = arith.mulf %80, %83 : vector<8x128xf32>
    %85 = arith.extf %82 : vector<8x128xbf16> to vector<8x128xf32>
    %86 = arith.addf %85, %84 : vector<8x128xf32>
    %87 = math.tanh %86 : vector<8x128xf32>
    %88 = arith.subf %66, %87 : vector<8x128xf32>
    %89 = arith.mulf %81, %88 : vector<8x128xf32>
    %90 = arith.addf %87, %89 : vector<8x128xf32>
    %c0_79 = arith.constant 0 : index
    %c0_80 = arith.constant 0 : index
    %91 = vector.load %arg12[%c0_79, %c0_80] : memref<256x128xbf16, #tpu.memory_space<vmem>>, vector<8x128xbf16>
    %92 = arith.extf %91 : vector<8x128xbf16> to vector<8x128xf32>
    %93 = arith.addf %90, %92 : vector<8x128xf32>
    %94 = arith.truncf %93 : vector<8x128xf32> to vector<8x128xbf16>
    %c0_81 = arith.constant 0 : index
    %c0_82 = arith.constant 0 : index
    %95 = vector.load %arg12[%c0_81, %c0_82] : memref<256x128xbf16, #tpu.memory_space<vmem>>, vector<8x128xbf16>
    tpu.vector_store %arg12[%c0_81, %c0_82], %94 {strides = array<i32>} : memref<256x128xbf16, #tpu.memory_space<vmem>>, vector<8x128xbf16>,
    %c8 = arith.constant 8 : index
    %c0_83 = arith.constant 0 : index
    %96 = vector.load %arg13[%c8, %c0_83] : memref<256x384xbf16, #tpu.memory_space<vmem>>, vector<8x384xbf16>
    %97 = arith.truncf %90 : vector<8x128xf32> to vector<8x128xbf16>
    %cst_84 = arith.constant dense<0.000000e+00> : vector<8x384xf32>
    %98 = tpu.matmul %97, %50, %cst_84 {dimension_numbers = #tpu.dot_dimension_numbers<[1], [0], [0], [1], [0, 0, 1, 1], [], []>} : vector<8x128xbf16>, vector<128x384xbf16>, vector<8x384xf32> -> vector<8x384xf32>
    %99 = arith.addf %98, %64 : vector<8x384xf32>
    %100 = vector.extract_strided_slice %96 {offsets = [0, 0], sizes = [8, 256], strides = [1, 1]} : vector<8x384xbf16> to vector<8x256xbf16>
    %101 = vector.extract_strided_slice %99 {offsets = [0, 0], sizes = [8, 256], strides = [1, 1]} : vector<8x384xf32> to vector<8x256xf32>
    %102 = arith.extf %100 : vector<8x256xbf16> to vector<8x256xf32>
    %103 = arith.addf %102, %101 : vector<8x256xf32>
    %104 = arith.negf %103 : vector<8x256xf32>
    %105 = math.exp %104 : vector<8x256xf32>
    %cst_85 = arith.constant 1.000000e+00 : f32
    %106 = vector.broadcast %cst_85 : f32 to vector<8x256xf32>
    %107 = arith.addf %106, %105 : vector<8x256xf32>
    %108 = arith.divf %106, %107 : vector<8x256xf32>
    %109 = vector.extract_strided_slice %108 {offsets = [0, 0], sizes = [8, 128], strides = [1, 1]} : vector<8x256xf32> to vector<8x128xf32>
    %110 = vector.extract_strided_slice %108 {offsets = [0, 128], sizes = [8, 128], strides = [1, 1]} : vector<8x256xf32> to vector<8x128xf32>
    %111 = vector.extract_strided_slice %96 {offsets = [0, 256], sizes = [8, 128], strides = [1, 1]} : vector<8x384xbf16> to vector<8x128xbf16>
    %112 = vector.extract_strided_slice %99 {offsets = [0, 256], sizes = [8, 128], strides = [1, 1]} : vector<8x384xf32> to vector<8x128xf32>
    %113 = arith.mulf %109, %112 : vector<8x128xf32>
    %114 = arith.extf %111 : vector<8x128xbf16> to vector<8x128xf32>
    %115 = arith.addf %114, %113 : vector<8x128xf32>
    %116 = math.tanh %115 : vector<8x128xf32>
    %117 = arith.subf %90, %116 : vector<8x128xf32>
    %118 = arith.mulf %110, %117 : vector<8x128xf32>
    %119 = arith.addf %116, %118 : vector<8x128xf32>
    %c8_86 = arith.constant 8 : index
    %c0_87 = arith.constant 0 : index
    %120 = vector.load %arg12[%c8_86, %c0_87] : memref<256x128xbf16, #tpu.memory_space<vmem>>, vector<8x128xbf16>
    %121 = arith.extf %120 : vector<8x128xbf16> to vector<8x128xf32>
    %122 = arith.addf %119, %121 : vector<8x128xf32>
    %123 = arith.truncf %122 : vector<8x128xf32> to vector<8x128xbf16>
    %c8_88 = arith.constant 8 : index
    %c0_89 = arith.constant 0 : index
    %124 = vector.load %arg12[%c8_88, %c0_89] : memref<256x128xbf16, #tpu.memory_space<vmem>>, vector<8x128xbf16>
    tpu.vector_store %arg12[%c8_88, %c0_89], %123 {strides = array<i32>} : memref<256x128xbf16, #tpu.memory_space<vmem>>, vector<8x128xbf16>,
    %c16 = arith.constant 16 : index
    %c0_90 = arith.constant 0 : index
    %125 = vector.load %arg13[%c16, %c0_90] : memref<256x384xbf16, #tpu.memory_space<vmem>>, vector<8x384xbf16>
    %126 = arith.truncf %119 : vector<8x128xf32> to vector<8x128xbf16>
    %cst_91 = arith.constant dense<0.000000e+00> : vector<8x384xf32>
    %127 = tpu.matmul %126, %50, %cst_91 {dimension_numbers = #tpu.dot_dimension_numbers<[1], [0], [0], [1], [0, 0, 1, 1], [], []>} : vector<8x128xbf16>, vector<128x384xbf16>, vector<8x384xf32> -> vector<8x384xf32>
    %128 = arith.addf %127, %64 : vector<8x384xf32>
    %129 = vector.extract_strided_slice %125 {offsets = [0, 0], sizes = [8, 256], strides = [1, 1]} : vector<8x384xbf16> to vector<8x256xbf16>
    %130 = vector.extract_strided_slice %128 {offsets = [0, 0], sizes = [8, 256], strides = [1, 1]} : vector<8x384xf32> to vector<8x256xf32>
    %131 = arith.extf %129 : vector<8x256xbf16> to vector<8x256xf32>
    %132 = arith.addf %131, %130 : vector<8x256xf32>
    %133 = arith.negf %132 : vector<8x256xf32>
    %134 = math.exp %133 : vector<8x256xf32>
    %cst_92 = arith.constant 1.000000e+00 : f32
    %135 = vector.broadcast %cst_92 : f32 to vector<8x256xf32>
    %136 = arith.addf %135, %134 : vector<8x256xf32>
    %137 = arith.divf %135, %136 : vector<8x256xf32>
    %138 = vector.extract_strided_slice %137 {offsets = [0, 0], sizes = [8, 128], strides = [1, 1]} : vector<8x256xf32> to vector<8x128xf32>
    %139 = vector.extract_strided_slice %137 {offsets = [0, 128], sizes = [8, 128], strides = [1, 1]} : vector<8x256xf32> to vector<8x128xf32>
    %140 = vector.extract_strided_slice %125 {offsets = [0, 256], sizes = [8, 128], strides = [1, 1]} : vector<8x384xbf16> to vector<8x128xbf16>
    %141 = vector.extract_strided_slice %128 {offsets = [0, 256], sizes = [8, 128], strides = [1, 1]} : vector<8x384xf32> to vector<8x128xf32>
    %142 = arith.mulf %138, %141 : vector<8x128xf32>
    %143 = arith.extf %140 : vector<8x128xbf16> to vector<8x128xf32>
    %144 = arith.addf %143, %142 : vector<8x128xf32>
    %145 = math.tanh %144 : vector<8x128xf32>
    %146 = arith.subf %119, %145 : vector<8x128xf32>
    %147 = arith.mulf %139, %146 : vector<8x128xf32>
    %148 = arith.addf %145, %147 : vector<8x128xf32>
    %c16_93 = arith.constant 16 : index
    %c0_94 = arith.constant 0 : index
    %149 = vector.load %arg12[%c16_93, %c0_94] : memref<256x128xbf16, #tpu.memory_space<vmem>>, vector<8x128xbf16>
    %150 = arith.extf %149 : vector<8x128xbf16> to vector<8x128xf32>
    %151 = arith.addf %148, %150 : vector<8x128xf32>
    %152 = arith.truncf %151 : vector<8x128xf32> to vector<8x128xbf16>
    %c16_95 = arith.constant 16 : index
    %c0_96 = arith.constant 0 : index
    %153 = vector.load %arg12[%c16_95, %c0_96] : memref<256x128xbf16, #tpu.memory_space<vmem>>, vector<8x128xbf16>
    tpu.vector_store %arg12[%c16_95, %c0_96], %152 {strides = array<i32>} : memref<256x128xbf16, #tpu.memory_space<vmem>>, vector<8x128xbf16>,
    %c24 = arith.constant 24 : index
    %c0_97 = arith.constant 0 : index
    %154 = vector.load %arg13[%c24, %c0_97] : memref<256x384xbf16, #tpu.memory_space<vmem>>, vector<8x384xbf16>
    %155 = arith.truncf %148 : vector<8x128xf32> to vector<8x128xbf16>
    %cst_98 = arith.constant dense<0.000000e+00> : vector<8x384xf32>
    %156 = tpu.matmul %155, %50, %cst_98 {dimension_numbers = #tpu.dot_dimension_numbers<[1], [0], [0], [1], [0, 0, 1, 1], [], []>} : vector<8x128xbf16>, vector<128x384xbf16>, vector<8x384xf32> -> vector<8x384xf32>
    %157 = arith.addf %156, %64 : vector<8x384xf32>
    %158 = vector.extract_strided_slice %154 {offsets = [0, 0], sizes = [8, 256], strides = [1, 1]} : vector<8x384xbf16> to vector<8x256xbf16>
    %159 = vector.extract_strided_slice %157 {offsets = [0, 0], sizes = [8, 256], strides = [1, 1]} : vector<8x384xf32> to vector<8x256xf32>
    %160 = arith.extf %158 : vector<8x256xbf16> to vector<8x256xf32>
    %161 = arith.addf %160, %159 : vector<8x256xf32>
    %162 = arith.negf %161 : vector<8x256xf32>
    %163 = math.exp %162 : vector<8x256xf32>
    %cst_99 = arith.constant 1.000000e+00 : f32
    %164 = vector.broadcast %cst_99 : f32 to vector<8x256xf32>
    %165 = arith.addf %164, %163 : vector<8x256xf32>
    %166 = arith.divf %164, %165 : vector<8x256xf32>
    %167 = vector.extract_strided_slice %166 {offsets = [0, 0], sizes = [8, 128], strides = [1, 1]} : vector<8x256xf32> to vector<8x128xf32>
    %168 = vector.extract_strided_slice %166 {offsets = [0, 128], sizes = [8, 128], strides = [1, 1]} : vector<8x256xf32> to vector<8x128xf32>
    %169 = vector.extract_strided_slice %154 {offsets = [0, 256], sizes = [8, 128], strides = [1, 1]} : vector<8x384xbf16> to vector<8x128xbf16>
    %170 = vector.extract_strided_slice %157 {offsets = [0, 256], sizes = [8, 128], strides = [1, 1]} : vector<8x384xf32> to vector<8x128xf32>
    %171 = arith.mulf %167, %170 : vector<8x128xf32>
    %172 = arith.extf %169 : vector<8x128xbf16> to vector<8x128xf32>
    %173 = arith.addf %172, %171 : vector<8x128xf32>
    %174 = math.tanh %173 : vector<8x128xf32>
    %175 = arith.subf %148, %174 : vector<8x128xf32>
    %176 = arith.mulf %168, %175 : vector<8x128xf32>
    %177 = arith.addf %174, %176 : vector<8x128xf32>
    %c24_100 = arith.constant 24 : index
    %c0_101 = arith.constant 0 : index
    %178 = vector.load %arg12[%c24_100, %c0_101] : memref<256x128xbf16, #tpu.memory_space<vmem>>, vector<8x128xbf16>
    %179 = arith.extf %178 : vector<8x128xbf16> to vector<8x128xf32>
    %180 = arith.addf %177, %179 : vector<8x128xf32>
    %181 = arith.truncf %180 : vector<8x128xf32> to vector<8x128xbf16>
    %c24_102 = arith.constant 24 : index
    %c0_103 = arith.constant 0 : index
    %182 = vector.load %arg12[%c24_102, %c0_103] : memref<256x128xbf16, #tpu.memory_space<vmem>>, vector<8x128xbf16>
    tpu.vector_store %arg12[%c24_102, %c0_103], %181 {strides = array<i32>} : memref<256x128xbf16, #tpu.memory_space<vmem>>, vector<8x128xbf16>,
    %c32 = arith.constant 32 : index
    %c0_104 = arith.constant 0 : index
    %183 = vector.load %arg13[%c32, %c0_104] : memref<256x384xbf16, #tpu.memory_space<vmem>>, vector<8x384xbf16>
    %184 = arith.truncf %177 : vector<8x128xf32> to vector<8x128xbf16>
    %cst_105 = arith.constant dense<0.000000e+00> : vector<8x384xf32>
    %185 = tpu.matmul %184, %50, %cst_105 {dimension_numbers = #tpu.dot_dimension_numbers<[1], [0], [0], [1], [0, 0, 1, 1], [], []>} : vector<8x128xbf16>, vector<128x384xbf16>, vector<8x384xf32> -> vector<8x384xf32>
    %186 = arith.addf %185, %64 : vector<8x384xf32>
    %187 = vector.extract_strided_slice %183 {offsets = [0, 0], sizes = [8, 256], strides = [1, 1]} : vector<8x384xbf16> to vector<8x256xbf16>
    %188 = vector.extract_strided_slice %186 {offsets = [0, 0], sizes = [8, 256], strides = [1, 1]} : vector<8x384xf32> to vector<8x256xf32>
    %189 = arith.extf %187 : vector<8x256xbf16> to vector<8x256xf32>
    %190 = arith.addf %189, %188 : vector<8x256xf32>
    %191 = arith.negf %190 : vector<8x256xf32>
    %192 = math.exp %191 : vector<8x256xf32>
    %cst_106 = arith.constant 1.000000e+00 : f32
    %193 = vector.broadcast %cst_106 : f32 to vector<8x256xf32>
    %194 = arith.addf %193, %192 : vector<8x256xf32>
    %195 = arith.divf %193, %194 : vector<8x256xf32>
    %196 = vector.extract_strided_slice %195 {offsets = [0, 0], sizes = [8, 128], strides = [1, 1]} : vector<8x256xf32> to vector<8x128xf32>
    %197 = vector.extract_strided_slice %195 {offsets = [0, 128], sizes = [8, 128], strides = [1, 1]} : vector<8x256xf32> to vector<8x128xf32>
    %198 = vector.extract_strided_slice %183 {offsets = [0, 256], sizes = [8, 128], strides = [1, 1]} : vector<8x384xbf16> to vector<8x128xbf16>
    %199 = vector.extract_strided_slice %186 {offsets = [0, 256], sizes = [8, 128], strides = [1, 1]} : vector<8x384xf32> to vector<8x128xf32>
    %200 = arith.mulf %196, %199 : vector<8x128xf32>
    %201 = arith.extf %198 : vector<8x128xbf16> to vector<8x128xf32>
    %202 = arith.addf %201, %200 : vector<8x128xf32>
    %203 = math.tanh %202 : vector<8x128xf32>
    %204 = arith.subf %177, %203 : vector<8x128xf32>
    %205 = arith.mulf %197, %204 : vector<8x128xf32>
    %206 = arith.addf %203, %205 : vector<8x128xf32>
    %c32_107 = arith.constant 32 : index
    %c0_108 = arith.constant 0 : index
    %207 = vector.load %arg12[%c32_107, %c0_108] : memref<256x128xbf16, #tpu.memory_space<vmem>>, vector<8x128xbf16>
    %208 = arith.extf %207 : vector<8x128xbf16> to vector<8x128xf32>
    %209 = arith.addf %206, %208 : vector<8x128xf32>
    %210 = arith.truncf %209 : vector<8x128xf32> to vector<8x128xbf16>
    %c32_109 = arith.constant 32 : index
    %c0_110 = arith.constant 0 : index
    %211 = vector.load %arg12[%c32_109, %c0_110] : memref<256x128xbf16, #tpu.memory_space<vmem>>, vector<8x128xbf16>
    tpu.vector_store %arg12[%c32_109, %c0_110], %210 {strides = array<i32>} : memref<256x128xbf16, #tpu.memory_space<vmem>>, vector<8x128xbf16>,
    %c40 = arith.constant 40 : index
    %c0_111 = arith.constant 0 : index
    %212 = vector.load %arg13[%c40, %c0_111] : memref<256x384xbf16, #tpu.memory_space<vmem>>, vector<8x384xbf16>
    %213 = arith.truncf %206 : vector<8x128xf32> to vector<8x128xbf16>
    %cst_112 = arith.constant dense<0.000000e+00> : vector<8x384xf32>
    %214 = tpu.matmul %213, %50, %cst_112 {dimension_numbers = #tpu.dot_dimension_numbers<[1], [0], [0], [1], [0, 0, 1, 1], [], []>} : vector<8x128xbf16>, vector<128x384xbf16>, vector<8x384xf32> -> vector<8x384xf32>
    %215 = arith.addf %214, %64 : vector<8x384xf32>
    %216 = vector.extract_strided_slice %212 {offsets = [0, 0], sizes = [8, 256], strides = [1, 1]} : vector<8x384xbf16> to vector<8x256xbf16>
    %217 = vector.extract_strided_slice %215 {offsets = [0, 0], sizes = [8, 256], strides = [1, 1]} : vector<8x384xf32> to vector<8x256xf32>
    %218 = arith.extf %216 : vector<8x256xbf16> to vector<8x256xf32>
    %219 = arith.addf %218, %217 : vector<8x256xf32>
    %220 = arith.negf %219 : vector<8x256xf32>
    %221 = math.exp %220 : vector<8x256xf32>
    %cst_113 = arith.constant 1.000000e+00 : f32
    %222 = vector.broadcast %cst_113 : f32 to vector<8x256xf32>
    %223 = arith.addf %222, %221 : vector<8x256xf32>
    %224 = arith.divf %222, %223 : vector<8x256xf32>
    %225 = vector.extract_strided_slice %224 {offsets = [0, 0], sizes = [8, 128], strides = [1, 1]} : vector<8x256xf32> to vector<8x128xf32>
    %226 = vector.extract_strided_slice %224 {offsets = [0, 128], sizes = [8, 128], strides = [1, 1]} : vector<8x256xf32> to vector<8x128xf32>
    %227 = vector.extract_strided_slice %212 {offsets = [0, 256], sizes = [8, 128], strides = [1, 1]} : vector<8x384xbf16> to vector<8x128xbf16>
    %228 = vector.extract_strided_slice %215 {offsets = [0, 256], sizes = [8, 128], strides = [1, 1]} : vector<8x384xf32> to vector<8x128xf32>
    %229 = arith.mulf %225, %228 : vector<8x128xf32>
    %230 = arith.extf %227 : vector<8x128xbf16> to vector<8x128xf32>
    %231 = arith.addf %230, %229 : vector<8x128xf32>
    %232 = math.tanh %231 : vector<8x128xf32>
    %233 = arith.subf %206, %232 : vector<8x128xf32>
    %234 = arith.mulf %226, %233 : vector<8x128xf32>
    %235 = arith.addf %232, %234 : vector<8x128xf32>
    %c40_114 = arith.constant 40 : index
    %c0_115 = arith.constant 0 : index
    %236 = vector.load %arg12[%c40_114, %c0_115] : memref<256x128xbf16, #tpu.memory_space<vmem>>, vector<8x128xbf16>
    %237 = arith.extf %236 : vector<8x128xbf16> to vector<8x128xf32>
    %238 = arith.addf %235, %237 : vector<8x128xf32>
    %239 = arith.truncf %238 : vector<8x128xf32> to vector<8x128xbf16>
    %c40_116 = arith.constant 40 : index
    %c0_117 = arith.constant 0 : index
    %240 = vector.load %arg12[%c40_116, %c0_117] : memref<256x128xbf16, #tpu.memory_space<vmem>>, vector<8x128xbf16>
    tpu.vector_store %arg12[%c40_116, %c0_117], %239 {strides = array<i32>} : memref<256x128xbf16, #tpu.memory_space<vmem>>, vector<8x128xbf16>,
    %c48 = arith.constant 48 : index
    %c0_118 = arith.constant 0 : index
    %241 = vector.load %arg13[%c48, %c0_118] : memref<256x384xbf16, #tpu.memory_space<vmem>>, vector<8x384xbf16>
    %242 = arith.truncf %235 : vector<8x128xf32> to vector<8x128xbf16>
    %cst_119 = arith.constant dense<0.000000e+00> : vector<8x384xf32>
    %243 = tpu.matmul %242, %50, %cst_119 {dimension_numbers = #tpu.dot_dimension_numbers<[1], [0], [0], [1], [0, 0, 1, 1], [], []>} : vector<8x128xbf16>, vector<128x384xbf16>, vector<8x384xf32> -> vector<8x384xf32>
    %244 = arith.addf %243, %64 : vector<8x384xf32>
    %245 = vector.extract_strided_slice %241 {offsets = [0, 0], sizes = [8, 256], strides = [1, 1]} : vector<8x384xbf16> to vector<8x256xbf16>
    %246 = vector.extract_strided_slice %244 {offsets = [0, 0], sizes = [8, 256], strides = [1, 1]} : vector<8x384xf32> to vector<8x256xf32>
    %247 = arith.extf %245 : vector<8x256xbf16> to vector<8x256xf32>
    %248 = arith.addf %247, %246 : vector<8x256xf32>
    %249 = arith.negf %248 : vector<8x256xf32>
    %250 = math.exp %249 : vector<8x256xf32>
    %cst_120 = arith.constant 1.000000e+00 : f32
    %251 = vector.broadcast %cst_120 : f32 to vector<8x256xf32>
    %252 = arith.addf %251, %250 : vector<8x256xf32>
    %253 = arith.divf %251, %252 : vector<8x256xf32>
    %254 = vector.extract_strided_slice %253 {offsets = [0, 0], sizes = [8, 128], strides = [1, 1]} : vector<8x256xf32> to vector<8x128xf32>
    %255 = vector.extract_strided_slice %253 {offsets = [0, 128], sizes = [8, 128], strides = [1, 1]} : vector<8x256xf32> to vector<8x128xf32>
    %256 = vector.extract_strided_slice %241 {offsets = [0, 256], sizes = [8, 128], strides = [1, 1]} : vector<8x384xbf16> to vector<8x128xbf16>
    %257 = vector.extract_strided_slice %244 {offsets = [0, 256], sizes = [8, 128], strides = [1, 1]} : vector<8x384xf32> to vector<8x128xf32>
    %258 = arith.mulf %254, %257 : vector<8x128xf32>
    %259 = arith.extf %256 : vector<8x128xbf16> to vector<8x128xf32>
    %260 = arith.addf %259, %258 : vector<8x128xf32>
    %261 = math.tanh %260 : vector<8x128xf32>
    %262 = arith.subf %235, %261 : vector<8x128xf32>
    %263 = arith.mulf %255, %262 : vector<8x128xf32>
    %264 = arith.addf %261, %263 : vector<8x128xf32>
    %c48_121 = arith.constant 48 : index
    %c0_122 = arith.constant 0 : index
    %265 = vector.load %arg12[%c48_121, %c0_122] : memref<256x128xbf16, #tpu.memory_space<vmem>>, vector<8x128xbf16>
    %266 = arith.extf %265 : vector<8x128xbf16> to vector<8x128xf32>
    %267 = arith.addf %264, %266 : vector<8x128xf32>
    %268 = arith.truncf %267 : vector<8x128xf32> to vector<8x128xbf16>
    %c48_123 = arith.constant 48 : index
    %c0_124 = arith.constant 0 : index
    %269 = vector.load %arg12[%c48_123, %c0_124] : memref<256x128xbf16, #tpu.memory_space<vmem>>, vector<8x128xbf16>
    tpu.vector_store %arg12[%c48_123, %c0_124], %268 {strides = array<i32>} : memref<256x128xbf16, #tpu.memory_space<vmem>>, vector<8x128xbf16>,
    %c56 = arith.constant 56 : index
    %c0_125 = arith.constant 0 : index
    %270 = vector.load %arg13[%c56, %c0_125] : memref<256x384xbf16, #tpu.memory_space<vmem>>, vector<8x384xbf16>
    %271 = arith.truncf %264 : vector<8x128xf32> to vector<8x128xbf16>
    %cst_126 = arith.constant dense<0.000000e+00> : vector<8x384xf32>
    %272 = tpu.matmul %271, %50, %cst_126 {dimension_numbers = #tpu.dot_dimension_numbers<[1], [0], [0], [1], [0, 0, 1, 1], [], []>} : vector<8x128xbf16>, vector<128x384xbf16>, vector<8x384xf32> -> vector<8x384xf32>
    %273 = arith.addf %272, %64 : vector<8x384xf32>
    %274 = vector.extract_strided_slice %270 {offsets = [0, 0], sizes = [8, 256], strides = [1, 1]} : vector<8x384xbf16> to vector<8x256xbf16>
    %275 = vector.extract_strided_slice %273 {offsets = [0, 0], sizes = [8, 256], strides = [1, 1]} : vector<8x384xf32> to vector<8x256xf32>
    %276 = arith.extf %274 : vector<8x256xbf16> to vector<8x256xf32>
    %277 = arith.addf %276, %275 : vector<8x256xf32>
    %278 = arith.negf %277 : vector<8x256xf32>
    %279 = math.exp %278 : vector<8x256xf32>
    %cst_127 = arith.constant 1.000000e+00 : f32
    %280 = vector.broadcast %cst_127 : f32 to vector<8x256xf32>
    %281 = arith.addf %280, %279 : vector<8x256xf32>
    %282 = arith.divf %280, %281 : vector<8x256xf32>
    %283 = vector.extract_strided_slice %282 {offsets = [0, 0], sizes = [8, 128], strides = [1, 1]} : vector<8x256xf32> to vector<8x128xf32>
    %284 = vector.extract_strided_slice %282 {offsets = [0, 128], sizes = [8, 128], strides = [1, 1]} : vector<8x256xf32> to vector<8x128xf32>
    %285 = vector.extract_strided_slice %270 {offsets = [0, 256], sizes = [8, 128], strides = [1, 1]} : vector<8x384xbf16> to vector<8x128xbf16>
    %286 = vector.extract_strided_slice %273 {offsets = [0, 256], sizes = [8, 128], strides = [1, 1]} : vector<8x384xf32> to vector<8x128xf32>
    %287 = arith.mulf %283, %286 : vector<8x128xf32>
    %288 = arith.extf %285 : vector<8x128xbf16> to vector<8x128xf32>
    %289 = arith.addf %288, %287 : vector<8x128xf32>
    %290 = math.tanh %289 : vector<8x128xf32>
    %291 = arith.subf %264, %290 : vector<8x128xf32>
    %292 = arith.mulf %284, %291 : vector<8x128xf32>
    %293 = arith.addf %290, %292 : vector<8x128xf32>
    %c56_128 = arith.constant 56 : index
    %c0_129 = arith.constant 0 : index
    %294 = vector.load %arg12[%c56_128, %c0_129] : memref<256x128xbf16, #tpu.memory_space<vmem>>, vector<8x128xbf16>
    %295 = arith.extf %294 : vector<8x128xbf16> to vector<8x128xf32>
    %296 = arith.addf %293, %295 : vector<8x128xf32>
    %297 = arith.truncf %296 : vector<8x128xf32> to vector<8x128xbf16>
    %c56_130 = arith.constant 56 : index
    %c0_131 = arith.constant 0 : index
    %298 = vector.load %arg12[%c56_130, %c0_131] : memref<256x128xbf16, #tpu.memory_space<vmem>>, vector<8x128xbf16>
    tpu.vector_store %arg12[%c56_130, %c0_131], %297 {strides = array<i32>} : memref<256x128xbf16, #tpu.memory_space<vmem>>, vector<8x128xbf16>,
    %c0_132 = arith.constant 0 : index
    %c0_133 = arith.constant 0 : index
    %c0_134 = arith.constant 0 : index
    %299 = vector.load %arg11[%c0_132, %c0_133, %c0_134] : memref<2x8x128xf32, #tpu.memory_space<vmem>>, vector<1x8x128xf32>
    %300 = vector.shape_cast %299 : vector<1x8x128xf32> to vector<8x128xf32>
    %301 = vector.shape_cast %293 : vector<8x128xf32> to vector<1x8x128xf32>
    tpu.vector_store %arg11[%c0_132, %c0_133, %c0_134], %301 {strides = array<i32>} : memref<2x8x128xf32, #tpu.memory_space<vmem>>, vector<1x8x128xf32>,
    %c1_i32_135 = arith.constant 1 : i32
    %c1_i32_136 = arith.constant 1 : i32
    %c0_i32_137 = arith.constant 0 : i32
    %c1_i32_138 = arith.constant 1 : i32
    %c0_i32_139 = arith.constant 0 : i32
    %c0_i32_140 = arith.constant 0 : i32
    %302 = tpu.memref_slice %arg4[%c1_i32_135, %c0_i32_139, %c0_i32_140] : memref<2x128x384xbf16, #tpu.memory_space<any>> -> memref<1x128x384xbf16, #tpu.memory_space<any>>
    %303 = tpu.memref_squeeze %302 : memref<1x128x384xbf16, #tpu.memory_space<any>> -> memref<128x384xbf16, #tpu.memory_space<any>>
    %c0_i32_141 = arith.constant 0 : i32
    %c0_i32_142 = arith.constant 0 : i32
    %304 = tpu.memref_slice %arg14[%c1_i32_136, %c0_i32_141, %c0_i32_142] : memref<2x128x384xbf16, #tpu.memory_space<vmem>> -> memref<1x128x384xbf16, #tpu.memory_space<vmem>>
    %305 = tpu.memref_squeeze %304 : memref<1x128x384xbf16, #tpu.memory_space<vmem>> -> memref<128x384xbf16, #tpu.memory_space<vmem>>
    %306 = tpu.memref_slice %arg16[%c0_i32_137, %c1_i32_138] : memref<2x2x!tpu.dma_semaphore, #tpu.memory_space<semaphore_mem>> -> memref<1x1x!tpu.dma_semaphore, #tpu.memory_space<semaphore_mem>>
    %307 = tpu.memref_squeeze %306 : memref<1x1x!tpu.dma_semaphore, #tpu.memory_space<semaphore_mem>> -> memref<!tpu.dma_semaphore, #tpu.memory_space<semaphore_mem>>
    tpu.wait_dma2 semaphore(%307 : memref<!tpu.dma_semaphore, #tpu.memory_space<semaphore_mem>>) src(%303 : memref<128x384xbf16, #tpu.memory_space<any>>) dst(%305 : memref<128x384xbf16, #tpu.memory_space<vmem>>)
    %c1_i32_143 = arith.constant 1 : i32
    %c1_i32_144 = arith.constant 1 : i32
    %c1_i32_145 = arith.constant 1 : i32
    %c1_i32_146 = arith.constant 1 : i32
    %c0_i32_147 = arith.constant 0 : i32
    %c0_i32_148 = arith.constant 0 : i32
    %308 = tpu.memref_slice %arg5[%c1_i32_143, %c0_i32_147, %c0_i32_148] : memref<2x128x384xbf16, #tpu.memory_space<any>> -> memref<1x128x384xbf16, #tpu.memory_space<any>>
    %309 = tpu.memref_squeeze %308 : memref<1x128x384xbf16, #tpu.memory_space<any>> -> memref<128x384xbf16, #tpu.memory_space<any>>
    %c0_i32_149 = arith.constant 0 : i32
    %c0_i32_150 = arith.constant 0 : i32
    %310 = tpu.memref_slice %arg15[%c1_i32_144, %c0_i32_149, %c0_i32_150] : memref<2x128x384xbf16, #tpu.memory_space<vmem>> -> memref<1x128x384xbf16, #tpu.memory_space<vmem>>
    %311 = tpu.memref_squeeze %310 : memref<1x128x384xbf16, #tpu.memory_space<vmem>> -> memref<128x384xbf16, #tpu.memory_space<vmem>>
    %312 = tpu.memref_slice %arg16[%c1_i32_145, %c1_i32_146] : memref<2x2x!tpu.dma_semaphore, #tpu.memory_space<semaphore_mem>> -> memref<1x1x!tpu.dma_semaphore, #tpu.memory_space<semaphore_mem>>
    %313 = tpu.memref_squeeze %312 : memref<1x1x!tpu.dma_semaphore, #tpu.memory_space<semaphore_mem>> -> memref<!tpu.dma_semaphore, #tpu.memory_space<semaphore_mem>>
    tpu.wait_dma2 semaphore(%313 : memref<!tpu.dma_semaphore, #tpu.memory_space<semaphore_mem>>) src(%309 : memref<128x384xbf16, #tpu.memory_space<any>>) dst(%311 : memref<128x384xbf16, #tpu.memory_space<vmem>>)
    %c1 = arith.constant 1 : index
    %c0_151 = arith.constant 0 : index
    %c0_152 = arith.constant 0 : index
    %314 = vector.load %arg15[%c1, %c0_151, %c0_152] : memref<2x128x384xbf16, #tpu.memory_space<vmem>>, vector<1x128x384xbf16>
    %315 = vector.shape_cast %314 : vector<1x128x384xbf16> to vector<128x384xbf16>
    %c0_153 = arith.constant 0 : index
    %c0_154 = arith.constant 0 : index
    %316 = vector.load %arg12[%c0_153, %c0_154] : memref<256x128xbf16, #tpu.memory_space<vmem>>, vector<256x128xbf16>
    %c1_155 = arith.constant 1 : index
    %c0_156 = arith.constant 0 : index
    %c0_157 = arith.constant 0 : index
    %317 = vector.load %arg14[%c1_155, %c0_156, %c0_157] : memref<2x128x384xbf16, #tpu.memory_space<vmem>>, vector<1x128x384xbf16>
    %318 = vector.shape_cast %317 : vector<1x128x384xbf16> to vector<128x384xbf16>
    %cst_158 = arith.constant dense<0.000000e+00> : vector<256x384xf32>
    %319 = tpu.matmul %316, %318, %cst_158 {dimension_numbers = #tpu.dot_dimension_numbers<[1], [0], [0], [1], [0, 0, 1, 1], [], []>} : vector<256x128xbf16>, vector<128x384xbf16>, vector<256x384xf32> -> vector<256x384xf32>
    %c1_159 = arith.constant 1 : index
    %c0_160 = arith.constant 0 : index
    %c0_161 = arith.constant 0 : index
    %320 = vector.load %arg6[%c1_159, %c0_160, %c0_161] : memref<2x1x384xf32, #tpu.memory_space<vmem>>, vector<1x1x384xf32>
    %321 = vector.shape_cast %320 : vector<1x1x384xf32> to vector<1x384xf32>
    %322 = vector.broadcast %321 : vector<1x384xf32> to vector<256x384xf32>
    %323 = arith.addf %319, %322 : vector<256x384xf32>
    %324 = arith.truncf %323 : vector<256x384xf32> to vector<256x384xbf16>
    %c0_162 = arith.constant 0 : index
    %c0_163 = arith.constant 0 : index
    %325 = vector.load %arg13[%c0_162, %c0_163] : memref<256x384xbf16, #tpu.memory_space<vmem>>, vector<256x384xbf16>
    tpu.vector_store %arg13[%c0_162, %c0_163], %324 {strides = array<i32>} : memref<256x384xbf16, #tpu.memory_space<vmem>>, vector<256x384xbf16>,
    %c1_164 = arith.constant 1 : index
    %c0_165 = arith.constant 0 : index
    %c0_166 = arith.constant 0 : index
    %326 = vector.load %arg7[%c1_164, %c0_165, %c0_166] : memref<2x1x384xf32, #tpu.memory_space<vmem>>, vector<1x1x384xf32>
    %327 = vector.shape_cast %326 : vector<1x1x384xf32> to vector<1x384xf32>
    %328 = vector.shape_cast %327 : vector<1x384xf32> to vector<1x384xf32>
    %329 = vector.broadcast %328 : vector<1x384xf32> to vector<8x384xf32>
    %c1_167 = arith.constant 1 : index
    %c0_168 = arith.constant 0 : index
    %c0_169 = arith.constant 0 : index
    %330 = vector.load %arg1[%c1_167, %c0_168, %c0_169] : memref<2x8x128xf32, #tpu.memory_space<vmem>>, vector<1x8x128xf32>
    %331 = vector.shape_cast %330 : vector<1x8x128xf32> to vector<8x128xf32>
    %c0_170 = arith.constant 0 : index
    %c0_171 = arith.constant 0 : index
    %332 = vector.load %arg13[%c0_170, %c0_171] : memref<256x384xbf16, #tpu.memory_space<vmem>>, vector<8x384xbf16>
    %333 = arith.truncf %331 : vector<8x128xf32> to vector<8x128xbf16>
    %cst_172 = arith.constant dense<0.000000e+00> : vector<8x384xf32>
    %334 = tpu.matmul %333, %315, %cst_172 {dimension_numbers = #tpu.dot_dimension_numbers<[1], [0], [0], [1], [0, 0, 1, 1], [], []>} : vector<8x128xbf16>, vector<128x384xbf16>, vector<8x384xf32> -> vector<8x384xf32>
    %335 = arith.addf %334, %329 : vector<8x384xf32>
    %336 = vector.extract_strided_slice %332 {offsets = [0, 0], sizes = [8, 256], strides = [1, 1]} : vector<8x384xbf16> to vector<8x256xbf16>
    %337 = vector.extract_strided_slice %335 {offsets = [0, 0], sizes = [8, 256], strides = [1, 1]} : vector<8x384xf32> to vector<8x256xf32>
    %338 = arith.extf %336 : vector<8x256xbf16> to vector<8x256xf32>
    %339 = arith.addf %338, %337 : vector<8x256xf32>
    %340 = arith.negf %339 : vector<8x256xf32>
    %341 = math.exp %340 : vector<8x256xf32>
    %cst_173 = arith.constant 1.000000e+00 : f32
    %342 = vector.broadcast %cst_173 : f32 to vector<8x256xf32>
    %343 = arith.addf %342, %341 : vector<8x256xf32>
    %344 = arith.divf %342, %343 : vector<8x256xf32>
    %345 = vector.extract_strided_slice %344 {offsets = [0, 0], sizes = [8, 128], strides = [1, 1]} : vector<8x256xf32> to vector<8x128xf32>
    %346 = vector.extract_strided_slice %344 {offsets = [0, 128], sizes = [8, 128], strides = [1, 1]} : vector<8x256xf32> to vector<8x128xf32>
    %347 = vector.extract_strided_slice %332 {offsets = [0, 256], sizes = [8, 128], strides = [1, 1]} : vector<8x384xbf16> to vector<8x128xbf16>
    %348 = vector.extract_strided_slice %335 {offsets = [0, 256], sizes = [8, 128], strides = [1, 1]} : vector<8x384xf32> to vector<8x128xf32>
    %349 = arith.mulf %345, %348 : vector<8x128xf32>
    %350 = arith.extf %347 : vector<8x128xbf16> to vector<8x128xf32>
    %351 = arith.addf %350, %349 : vector<8x128xf32>
    %352 = math.tanh %351 : vector<8x128xf32>
    %353 = arith.subf %331, %352 : vector<8x128xf32>
    %354 = arith.mulf %346, %353 : vector<8x128xf32>
    %355 = arith.addf %352, %354 : vector<8x128xf32>
    %c0_174 = arith.constant 0 : index
    %c0_175 = arith.constant 0 : index
    %356 = vector.load %arg12[%c0_174, %c0_175] : memref<256x128xbf16, #tpu.memory_space<vmem>>, vector<8x128xbf16>
    %357 = arith.extf %356 : vector<8x128xbf16> to vector<8x128xf32>
    %358 = arith.addf %355, %357 : vector<8x128xf32>
    %359 = arith.truncf %358 : vector<8x128xf32> to vector<8x128xbf16>
    %c0_176 = arith.constant 0 : index
    %c0_177 = arith.constant 0 : index
    %360 = vector.load %arg12[%c0_176, %c0_177] : memref<256x128xbf16, #tpu.memory_space<vmem>>, vector<8x128xbf16>
    tpu.vector_store %arg12[%c0_176, %c0_177], %359 {strides = array<i32>} : memref<256x128xbf16, #tpu.memory_space<vmem>>, vector<8x128xbf16>,
    %c8_178 = arith.constant 8 : index
    %c0_179 = arith.constant 0 : index
    %361 = vector.load %arg13[%c8_178, %c0_179] : memref<256x384xbf16, #tpu.memory_space<vmem>>, vector<8x384xbf16>
    %362 = arith.truncf %355 : vector<8x128xf32> to vector<8x128xbf16>
    %cst_180 = arith.constant dense<0.000000e+00> : vector<8x384xf32>
    %363 = tpu.matmul %362, %315, %cst_180 {dimension_numbers = #tpu.dot_dimension_numbers<[1], [0], [0], [1], [0, 0, 1, 1], [], []>} : vector<8x128xbf16>, vector<128x384xbf16>, vector<8x384xf32> -> vector<8x384xf32>
    %364 = arith.addf %363, %329 : vector<8x384xf32>
    %365 = vector.extract_strided_slice %361 {offsets = [0, 0], sizes = [8, 256], strides = [1, 1]} : vector<8x384xbf16> to vector<8x256xbf16>
    %366 = vector.extract_strided_slice %364 {offsets = [0, 0], sizes = [8, 256], strides = [1, 1]} : vector<8x384xf32> to vector<8x256xf32>
    %367 = arith.extf %365 : vector<8x256xbf16> to vector<8x256xf32>
    %368 = arith.addf %367, %366 : vector<8x256xf32>
    %369 = arith.negf %368 : vector<8x256xf32>
    %370 = math.exp %369 : vector<8x256xf32>
    %cst_181 = arith.constant 1.000000e+00 : f32
    %371 = vector.broadcast %cst_181 : f32 to vector<8x256xf32>
    %372 = arith.addf %371, %370 : vector<8x256xf32>
    %373 = arith.divf %371, %372 : vector<8x256xf32>
    %374 = vector.extract_strided_slice %373 {offsets = [0, 0], sizes = [8, 128], strides = [1, 1]} : vector<8x256xf32> to vector<8x128xf32>
    %375 = vector.extract_strided_slice %373 {offsets = [0, 128], sizes = [8, 128], strides = [1, 1]} : vector<8x256xf32> to vector<8x128xf32>
    %376 = vector.extract_strided_slice %361 {offsets = [0, 256], sizes = [8, 128], strides = [1, 1]} : vector<8x384xbf16> to vector<8x128xbf16>
    %377 = vector.extract_strided_slice %364 {offsets = [0, 256], sizes = [8, 128], strides = [1, 1]} : vector<8x384xf32> to vector<8x128xf32>
    %378 = arith.mulf %374, %377 : vector<8x128xf32>
    %379 = arith.extf %376 : vector<8x128xbf16> to vector<8x128xf32>
    %380 = arith.addf %379, %378 : vector<8x128xf32>
    %381 = math.tanh %380 : vector<8x128xf32>
    %382 = arith.subf %355, %381 : vector<8x128xf32>
    %383 = arith.mulf %375, %382 : vector<8x128xf32>
    %384 = arith.addf %381, %383 : vector<8x128xf32>
    %c8_182 = arith.constant 8 : index
    %c0_183 = arith.constant 0 : index
    %385 = vector.load %arg12[%c8_182, %c0_183] : memref<256x128xbf16, #tpu.memory_space<vmem>>, vector<8x128xbf16>
    %386 = arith.extf %385 : vector<8x128xbf16> to vector<8x128xf32>
    %387 = arith.addf %384, %386 : vector<8x128xf32>
    %388 = arith.truncf %387 : vector<8x128xf32> to vector<8x128xbf16>
    %c8_184 = arith.constant 8 : index
    %c0_185 = arith.constant 0 : index
    %389 = vector.load %arg12[%c8_184, %c0_185] : memref<256x128xbf16, #tpu.memory_space<vmem>>, vector<8x128xbf16>
    tpu.vector_store %arg12[%c8_184, %c0_185], %388 {strides = array<i32>} : memref<256x128xbf16, #tpu.memory_space<vmem>>, vector<8x128xbf16>,
    %c16_186 = arith.constant 16 : index
    %c0_187 = arith.constant 0 : index
    %390 = vector.load %arg13[%c16_186, %c0_187] : memref<256x384xbf16, #tpu.memory_space<vmem>>, vector<8x384xbf16>
    %391 = arith.truncf %384 : vector<8x128xf32> to vector<8x128xbf16>
    %cst_188 = arith.constant dense<0.000000e+00> : vector<8x384xf32>
    %392 = tpu.matmul %391, %315, %cst_188 {dimension_numbers = #tpu.dot_dimension_numbers<[1], [0], [0], [1], [0, 0, 1, 1], [], []>} : vector<8x128xbf16>, vector<128x384xbf16>, vector<8x384xf32> -> vector<8x384xf32>
    %393 = arith.addf %392, %329 : vector<8x384xf32>
    %394 = vector.extract_strided_slice %390 {offsets = [0, 0], sizes = [8, 256], strides = [1, 1]} : vector<8x384xbf16> to vector<8x256xbf16>
    %395 = vector.extract_strided_slice %393 {offsets = [0, 0], sizes = [8, 256], strides = [1, 1]} : vector<8x384xf32> to vector<8x256xf32>
    %396 = arith.extf %394 : vector<8x256xbf16> to vector<8x256xf32>
    %397 = arith.addf %396, %395 : vector<8x256xf32>
    %398 = arith.negf %397 : vector<8x256xf32>
    %399 = math.exp %398 : vector<8x256xf32>
    %cst_189 = arith.constant 1.000000e+00 : f32
    %400 = vector.broadcast %cst_189 : f32 to vector<8x256xf32>
    %401 = arith.addf %400, %399 : vector<8x256xf32>
    %402 = arith.divf %400, %401 : vector<8x256xf32>
    %403 = vector.extract_strided_slice %402 {offsets = [0, 0], sizes = [8, 128], strides = [1, 1]} : vector<8x256xf32> to vector<8x128xf32>
    %404 = vector.extract_strided_slice %402 {offsets = [0, 128], sizes = [8, 128], strides = [1, 1]} : vector<8x256xf32> to vector<8x128xf32>
    %405 = vector.extract_strided_slice %390 {offsets = [0, 256], sizes = [8, 128], strides = [1, 1]} : vector<8x384xbf16> to vector<8x128xbf16>
    %406 = vector.extract_strided_slice %393 {offsets = [0, 256], sizes = [8, 128], strides = [1, 1]} : vector<8x384xf32> to vector<8x128xf32>
    %407 = arith.mulf %403, %406 : vector<8x128xf32>
    %408 = arith.extf %405 : vector<8x128xbf16> to vector<8x128xf32>
    %409 = arith.addf %408, %407 : vector<8x128xf32>
    %410 = math.tanh %409 : vector<8x128xf32>
    %411 = arith.subf %384, %410 : vector<8x128xf32>
    %412 = arith.mulf %404, %411 : vector<8x128xf32>
    %413 = arith.addf %410, %412 : vector<8x128xf32>
    %c16_190 = arith.constant 16 : index
    %c0_191 = arith.constant 0 : index
    %414 = vector.load %arg12[%c16_190, %c0_191] : memref<256x128xbf16, #tpu.memory_space<vmem>>, vector<8x128xbf16>
    %415 = arith.extf %414 : vector<8x128xbf16> to vector<8x128xf32>
    %416 = arith.addf %413, %415 : vector<8x128xf32>
    %417 = arith.truncf %416 : vector<8x128xf32> to vector<8x128xbf16>
    %c16_192 = arith.constant 16 : index
    %c0_193 = arith.constant 0 : index
    %418 = vector.load %arg12[%c16_192, %c0_193] : memref<256x128xbf16, #tpu.memory_space<vmem>>, vector<8x128xbf16>
    tpu.vector_store %arg12[%c16_192, %c0_193], %417 {strides = array<i32>} : memref<256x128xbf16, #tpu.memory_space<vmem>>, vector<8x128xbf16>,
    %c24_194 = arith.constant 24 : index
    %c0_195 = arith.constant 0 : index
    %419 = vector.load %arg13[%c24_194, %c0_195] : memref<256x384xbf16, #tpu.memory_space<vmem>>, vector<8x384xbf16>
    %420 = arith.truncf %413 : vector<8x128xf32> to vector<8x128xbf16>
    %cst_196 = arith.constant dense<0.000000e+00> : vector<8x384xf32>
    %421 = tpu.matmul %420, %315, %cst_196 {dimension_numbers = #tpu.dot_dimension_numbers<[1], [0], [0], [1], [0, 0, 1, 1], [], []>} : vector<8x128xbf16>, vector<128x384xbf16>, vector<8x384xf32> -> vector<8x384xf32>
    %422 = arith.addf %421, %329 : vector<8x384xf32>
    %423 = vector.extract_strided_slice %419 {offsets = [0, 0], sizes = [8, 256], strides = [1, 1]} : vector<8x384xbf16> to vector<8x256xbf16>
    %424 = vector.extract_strided_slice %422 {offsets = [0, 0], sizes = [8, 256], strides = [1, 1]} : vector<8x384xf32> to vector<8x256xf32>
    %425 = arith.extf %423 : vector<8x256xbf16> to vector<8x256xf32>
    %426 = arith.addf %425, %424 : vector<8x256xf32>
    %427 = arith.negf %426 : vector<8x256xf32>
    %428 = math.exp %427 : vector<8x256xf32>
    %cst_197 = arith.constant 1.000000e+00 : f32
    %429 = vector.broadcast %cst_197 : f32 to vector<8x256xf32>
    %430 = arith.addf %429, %428 : vector<8x256xf32>
    %431 = arith.divf %429, %430 : vector<8x256xf32>
    %432 = vector.extract_strided_slice %431 {offsets = [0, 0], sizes = [8, 128], strides = [1, 1]} : vector<8x256xf32> to vector<8x128xf32>
    %433 = vector.extract_strided_slice %431 {offsets = [0, 128], sizes = [8, 128], strides = [1, 1]} : vector<8x256xf32> to vector<8x128xf32>
    %434 = vector.extract_strided_slice %419 {offsets = [0, 256], sizes = [8, 128], strides = [1, 1]} : vector<8x384xbf16> to vector<8x128xbf16>
    %435 = vector.extract_strided_slice %422 {offsets = [0, 256], sizes = [8, 128], strides = [1, 1]} : vector<8x384xf32> to vector<8x128xf32>
    %436 = arith.mulf %432, %435 : vector<8x128xf32>
    %437 = arith.extf %434 : vector<8x128xbf16> to vector<8x128xf32>
    %438 = arith.addf %437, %436 : vector<8x128xf32>
    %439 = math.tanh %438 : vector<8x128xf32>
    %440 = arith.subf %413, %439 : vector<8x128xf32>
    %441 = arith.mulf %433, %440 : vector<8x128xf32>
    %442 = arith.addf %439, %441 : vector<8x128xf32>
    %c24_198 = arith.constant 24 : index
    %c0_199 = arith.constant 0 : index
    %443 = vector.load %arg12[%c24_198, %c0_199] : memref<256x128xbf16, #tpu.memory_space<vmem>>, vector<8x128xbf16>
    %444 = arith.extf %443 : vector<8x128xbf16> to vector<8x128xf32>
    %445 = arith.addf %442, %444 : vector<8x128xf32>
    %446 = arith.truncf %445 : vector<8x128xf32> to vector<8x128xbf16>
    %c24_200 = arith.constant 24 : index
    %c0_201 = arith.constant 0 : index
    %447 = vector.load %arg12[%c24_200, %c0_201] : memref<256x128xbf16, #tpu.memory_space<vmem>>, vector<8x128xbf16>
    tpu.vector_store %arg12[%c24_200, %c0_201], %446 {strides = array<i32>} : memref<256x128xbf16, #tpu.memory_space<vmem>>, vector<8x128xbf16>,
    %c32_202 = arith.constant 32 : index
    %c0_203 = arith.constant 0 : index
    %448 = vector.load %arg13[%c32_202, %c0_203] : memref<256x384xbf16, #tpu.memory_space<vmem>>, vector<8x384xbf16>
    %449 = arith.truncf %442 : vector<8x128xf32> to vector<8x128xbf16>
    %cst_204 = arith.constant dense<0.000000e+00> : vector<8x384xf32>
    %450 = tpu.matmul %449, %315, %cst_204 {dimension_numbers = #tpu.dot_dimension_numbers<[1], [0], [0], [1], [0, 0, 1, 1], [], []>} : vector<8x128xbf16>, vector<128x384xbf16>, vector<8x384xf32> -> vector<8x384xf32>
    %451 = arith.addf %450, %329 : vector<8x384xf32>
    %452 = vector.extract_strided_slice %448 {offsets = [0, 0], sizes = [8, 256], strides = [1, 1]} : vector<8x384xbf16> to vector<8x256xbf16>
    %453 = vector.extract_strided_slice %451 {offsets = [0, 0], sizes = [8, 256], strides = [1, 1]} : vector<8x384xf32> to vector<8x256xf32>
    %454 = arith.extf %452 : vector<8x256xbf16> to vector<8x256xf32>
    %455 = arith.addf %454, %453 : vector<8x256xf32>
    %456 = arith.negf %455 : vector<8x256xf32>
    %457 = math.exp %456 : vector<8x256xf32>
    %cst_205 = arith.constant 1.000000e+00 : f32
    %458 = vector.broadcast %cst_205 : f32 to vector<8x256xf32>
    %459 = arith.addf %458, %457 : vector<8x256xf32>
    %460 = arith.divf %458, %459 : vector<8x256xf32>
    %461 = vector.extract_strided_slice %460 {offsets = [0, 0], sizes = [8, 128], strides = [1, 1]} : vector<8x256xf32> to vector<8x128xf32>
    %462 = vector.extract_strided_slice %460 {offsets = [0, 128], sizes = [8, 128], strides = [1, 1]} : vector<8x256xf32> to vector<8x128xf32>
    %463 = vector.extract_strided_slice %448 {offsets = [0, 256], sizes = [8, 128], strides = [1, 1]} : vector<8x384xbf16> to vector<8x128xbf16>
    %464 = vector.extract_strided_slice %451 {offsets = [0, 256], sizes = [8, 128], strides = [1, 1]} : vector<8x384xf32> to vector<8x128xf32>
    %465 = arith.mulf %461, %464 : vector<8x128xf32>
    %466 = arith.extf %463 : vector<8x128xbf16> to vector<8x128xf32>
    %467 = arith.addf %466, %465 : vector<8x128xf32>
    %468 = math.tanh %467 : vector<8x128xf32>
    %469 = arith.subf %442, %468 : vector<8x128xf32>
    %470 = arith.mulf %462, %469 : vector<8x128xf32>
    %471 = arith.addf %468, %470 : vector<8x128xf32>
    %c32_206 = arith.constant 32 : index
    %c0_207 = arith.constant 0 : index
    %472 = vector.load %arg12[%c32_206, %c0_207] : memref<256x128xbf16, #tpu.memory_space<vmem>>, vector<8x128xbf16>
    %473 = arith.extf %472 : vector<8x128xbf16> to vector<8x128xf32>
    %474 = arith.addf %471, %473 : vector<8x128xf32>
    %475 = arith.truncf %474 : vector<8x128xf32> to vector<8x128xbf16>
    %c32_208 = arith.constant 32 : index
    %c0_209 = arith.constant 0 : index
    %476 = vector.load %arg12[%c32_208, %c0_209] : memref<256x128xbf16, #tpu.memory_space<vmem>>, vector<8x128xbf16>
    tpu.vector_store %arg12[%c32_208, %c0_209], %475 {strides = array<i32>} : memref<256x128xbf16, #tpu.memory_space<vmem>>, vector<8x128xbf16>,
    %c40_210 = arith.constant 40 : index
    %c0_211 = arith.constant 0 : index
    %477 = vector.load %arg13[%c40_210, %c0_211] : memref<256x384xbf16, #tpu.memory_space<vmem>>, vector<8x384xbf16>
    %478 = arith.truncf %471 : vector<8x128xf32> to vector<8x128xbf16>
    %cst_212 = arith.constant dense<0.000000e+00> : vector<8x384xf32>
    %479 = tpu.matmul %478, %315, %cst_212 {dimension_numbers = #tpu.dot_dimension_numbers<[1], [0], [0], [1], [0, 0, 1, 1], [], []>} : vector<8x128xbf16>, vector<128x384xbf16>, vector<8x384xf32> -> vector<8x384xf32>
    %480 = arith.addf %479, %329 : vector<8x384xf32>
    %481 = vector.extract_strided_slice %477 {offsets = [0, 0], sizes = [8, 256], strides = [1, 1]} : vector<8x384xbf16> to vector<8x256xbf16>
    %482 = vector.extract_strided_slice %480 {offsets = [0, 0], sizes = [8, 256], strides = [1, 1]} : vector<8x384xf32> to vector<8x256xf32>
    %483 = arith.extf %481 : vector<8x256xbf16> to vector<8x256xf32>
    %484 = arith.addf %483, %482 : vector<8x256xf32>
    %485 = arith.negf %484 : vector<8x256xf32>
    %486 = math.exp %485 : vector<8x256xf32>
    %cst_213 = arith.constant 1.000000e+00 : f32
    %487 = vector.broadcast %cst_213 : f32 to vector<8x256xf32>
    %488 = arith.addf %487, %486 : vector<8x256xf32>
    %489 = arith.divf %487, %488 : vector<8x256xf32>
    %490 = vector.extract_strided_slice %489 {offsets = [0, 0], sizes = [8, 128], strides = [1, 1]} : vector<8x256xf32> to vector<8x128xf32>
    %491 = vector.extract_strided_slice %489 {offsets = [0, 128], sizes = [8, 128], strides = [1, 1]} : vector<8x256xf32> to vector<8x128xf32>
    %492 = vector.extract_strided_slice %477 {offsets = [0, 256], sizes = [8, 128], strides = [1, 1]} : vector<8x384xbf16> to vector<8x128xbf16>
    %493 = vector.extract_strided_slice %480 {offsets = [0, 256], sizes = [8, 128], strides = [1, 1]} : vector<8x384xf32> to vector<8x128xf32>
    %494 = arith.mulf %490, %493 : vector<8x128xf32>
    %495 = arith.extf %492 : vector<8x128xbf16> to vector<8x128xf32>
    %496 = arith.addf %495, %494 : vector<8x128xf32>
    %497 = math.tanh %496 : vector<8x128xf32>
    %498 = arith.subf %471, %497 : vector<8x128xf32>
    %499 = arith.mulf %491, %498 : vector<8x128xf32>
    %500 = arith.addf %497, %499 : vector<8x128xf32>
    %c40_214 = arith.constant 40 : index
    %c0_215 = arith.constant 0 : index
    %501 = vector.load %arg12[%c40_214, %c0_215] : memref<256x128xbf16, #tpu.memory_space<vmem>>, vector<8x128xbf16>
    %502 = arith.extf %501 : vector<8x128xbf16> to vector<8x128xf32>
    %503 = arith.addf %500, %502 : vector<8x128xf32>
    %504 = arith.truncf %503 : vector<8x128xf32> to vector<8x128xbf16>
    %c40_216 = arith.constant 40 : index
    %c0_217 = arith.constant 0 : index
    %505 = vector.load %arg12[%c40_216, %c0_217] : memref<256x128xbf16, #tpu.memory_space<vmem>>, vector<8x128xbf16>
    tpu.vector_store %arg12[%c40_216, %c0_217], %504 {strides = array<i32>} : memref<256x128xbf16, #tpu.memory_space<vmem>>, vector<8x128xbf16>,
    %c48_218 = arith.constant 48 : index
    %c0_219 = arith.constant 0 : index
    %506 = vector.load %arg13[%c48_218, %c0_219] : memref<256x384xbf16, #tpu.memory_space<vmem>>, vector<8x384xbf16>
    %507 = arith.truncf %500 : vector<8x128xf32> to vector<8x128xbf16>
    %cst_220 = arith.constant dense<0.000000e+00> : vector<8x384xf32>
    %508 = tpu.matmul %507, %315, %cst_220 {dimension_numbers = #tpu.dot_dimension_numbers<[1], [0], [0], [1], [0, 0, 1, 1], [], []>} : vector<8x128xbf16>, vector<128x384xbf16>, vector<8x384xf32> -> vector<8x384xf32>
    %509 = arith.addf %508, %329 : vector<8x384xf32>
    %510 = vector.extract_strided_slice %506 {offsets = [0, 0], sizes = [8, 256], strides = [1, 1]} : vector<8x384xbf16> to vector<8x256xbf16>
    %511 = vector.extract_strided_slice %509 {offsets = [0, 0], sizes = [8, 256], strides = [1, 1]} : vector<8x384xf32> to vector<8x256xf32>
    %512 = arith.extf %510 : vector<8x256xbf16> to vector<8x256xf32>
    %513 = arith.addf %512, %511 : vector<8x256xf32>
    %514 = arith.negf %513 : vector<8x256xf32>
    %515 = math.exp %514 : vector<8x256xf32>
    %cst_221 = arith.constant 1.000000e+00 : f32
    %516 = vector.broadcast %cst_221 : f32 to vector<8x256xf32>
    %517 = arith.addf %516, %515 : vector<8x256xf32>
    %518 = arith.divf %516, %517 : vector<8x256xf32>
    %519 = vector.extract_strided_slice %518 {offsets = [0, 0], sizes = [8, 128], strides = [1, 1]} : vector<8x256xf32> to vector<8x128xf32>
    %520 = vector.extract_strided_slice %518 {offsets = [0, 128], sizes = [8, 128], strides = [1, 1]} : vector<8x256xf32> to vector<8x128xf32>
    %521 = vector.extract_strided_slice %506 {offsets = [0, 256], sizes = [8, 128], strides = [1, 1]} : vector<8x384xbf16> to vector<8x128xbf16>
    %522 = vector.extract_strided_slice %509 {offsets = [0, 256], sizes = [8, 128], strides = [1, 1]} : vector<8x384xf32> to vector<8x128xf32>
    %523 = arith.mulf %519, %522 : vector<8x128xf32>
    %524 = arith.extf %521 : vector<8x128xbf16> to vector<8x128xf32>
    %525 = arith.addf %524, %523 : vector<8x128xf32>
    %526 = math.tanh %525 : vector<8x128xf32>
    %527 = arith.subf %500, %526 : vector<8x128xf32>
    %528 = arith.mulf %520, %527 : vector<8x128xf32>
    %529 = arith.addf %526, %528 : vector<8x128xf32>
    %c48_222 = arith.constant 48 : index
    %c0_223 = arith.constant 0 : index
    %530 = vector.load %arg12[%c48_222, %c0_223] : memref<256x128xbf16, #tpu.memory_space<vmem>>, vector<8x128xbf16>
    %531 = arith.extf %530 : vector<8x128xbf16> to vector<8x128xf32>
    %532 = arith.addf %529, %531 : vector<8x128xf32>
    %533 = arith.truncf %532 : vector<8x128xf32> to vector<8x128xbf16>
    %c48_224 = arith.constant 48 : index
    %c0_225 = arith.constant 0 : index
    %534 = vector.load %arg12[%c48_224, %c0_225] : memref<256x128xbf16, #tpu.memory_space<vmem>>, vector<8x128xbf16>
    tpu.vector_store %arg12[%c48_224, %c0_225], %533 {strides = array<i32>} : memref<256x128xbf16, #tpu.memory_space<vmem>>, vector<8x128xbf16>,
    %c56_226 = arith.constant 56 : index
    %c0_227 = arith.constant 0 : index
    %535 = vector.load %arg13[%c56_226, %c0_227] : memref<256x384xbf16, #tpu.memory_space<vmem>>, vector<8x384xbf16>
    %536 = arith.truncf %529 : vector<8x128xf32> to vector<8x128xbf16>
    %cst_228 = arith.constant dense<0.000000e+00> : vector<8x384xf32>
    %537 = tpu.matmul %536, %315, %cst_228 {dimension_numbers = #tpu.dot_dimension_numbers<[1], [0], [0], [1], [0, 0, 1, 1], [], []>} : vector<8x128xbf16>, vector<128x384xbf16>, vector<8x384xf32> -> vector<8x384xf32>
    %538 = arith.addf %537, %329 : vector<8x384xf32>
    %539 = vector.extract_strided_slice %535 {offsets = [0, 0], sizes = [8, 256], strides = [1, 1]} : vector<8x384xbf16> to vector<8x256xbf16>
    %540 = vector.extract_strided_slice %538 {offsets = [0, 0], sizes = [8, 256], strides = [1, 1]} : vector<8x384xf32> to vector<8x256xf32>
    %541 = arith.extf %539 : vector<8x256xbf16> to vector<8x256xf32>
    %542 = arith.addf %541, %540 : vector<8x256xf32>
    %543 = arith.negf %542 : vector<8x256xf32>
    %544 = math.exp %543 : vector<8x256xf32>
    %cst_229 = arith.constant 1.000000e+00 : f32
    %545 = vector.broadcast %cst_229 : f32 to vector<8x256xf32>
    %546 = arith.addf %545, %544 : vector<8x256xf32>
    %547 = arith.divf %545, %546 : vector<8x256xf32>
    %548 = vector.extract_strided_slice %547 {offsets = [0, 0], sizes = [8, 128], strides = [1, 1]} : vector<8x256xf32> to vector<8x128xf32>
    %549 = vector.extract_strided_slice %547 {offsets = [0, 128], sizes = [8, 128], strides = [1, 1]} : vector<8x256xf32> to vector<8x128xf32>
    %550 = vector.extract_strided_slice %535 {offsets = [0, 256], sizes = [8, 128], strides = [1, 1]} : vector<8x384xbf16> to vector<8x128xbf16>
    %551 = vector.extract_strided_slice %538 {offsets = [0, 256], sizes = [8, 128], strides = [1, 1]} : vector<8x384xf32> to vector<8x128xf32>
    %552 = arith.mulf %548, %551 : vector<8x128xf32>
    %553 = arith.extf %550 : vector<8x128xbf16> to vector<8x128xf32>
    %554 = arith.addf %553, %552 : vector<8x128xf32>
    %555 = math.tanh %554 : vector<8x128xf32>
    %556 = arith.subf %529, %555 : vector<8x128xf32>
    %557 = arith.mulf %549, %556 : vector<8x128xf32>
    %558 = arith.addf %555, %557 : vector<8x128xf32>
    %c56_230 = arith.constant 56 : index
    %c0_231 = arith.constant 0 : index
    %559 = vector.load %arg12[%c56_230, %c0_231] : memref<256x128xbf16, #tpu.memory_space<vmem>>, vector<8x128xbf16>
    %560 = arith.extf %559 : vector<8x128xbf16> to vector<8x128xf32>
    %561 = arith.addf %558, %560 : vector<8x128xf32>
    %562 = arith.truncf %561 : vector<8x128xf32> to vector<8x128xbf16>
    %c56_232 = arith.constant 56 : index
    %c0_233 = arith.constant 0 : index
    %563 = vector.load %arg12[%c56_232, %c0_233] : memref<256x128xbf16, #tpu.memory_space<vmem>>, vector<8x128xbf16>
    tpu.vector_store %arg12[%c56_232, %c0_233], %562 {strides = array<i32>} : memref<256x128xbf16, #tpu.memory_space<vmem>>, vector<8x128xbf16>,
    %c1_234 = arith.constant 1 : index
    %c0_235 = arith.constant 0 : index
    %c0_236 = arith.constant 0 : index
    %564 = vector.load %arg11[%c1_234, %c0_235, %c0_236] : memref<2x8x128xf32, #tpu.memory_space<vmem>>, vector<1x8x128xf32>
    %565 = vector.shape_cast %564 : vector<1x8x128xf32> to vector<8x128xf32>
    %566 = vector.shape_cast %558 : vector<8x128xf32> to vector<1x8x128xf32>
    tpu.vector_store %arg11[%c1_234, %c0_235, %c0_236], %566 {strides = array<i32>} : memref<2x8x128xf32, #tpu.memory_space<vmem>>, vector<1x8x128xf32>,
    %c0_237 = arith.constant 0 : index
    %c0_238 = arith.constant 0 : index
    %567 = vector.load %arg12[%c0_237, %c0_238] : memref<256x128xbf16, #tpu.memory_space<vmem>>, vector<256x128xbf16>
    %c0_239 = arith.constant 0 : index
    %c0_240 = arith.constant 0 : index
    %568 = vector.load %arg8[%c0_239, %c0_240] : memref<128x128xbf16, #tpu.memory_space<vmem>>, vector<128x128xbf16>
    %cst_241 = arith.constant dense<0.000000e+00> : vector<256x128xf32>
    %569 = tpu.matmul %567, %568, %cst_241 {dimension_numbers = #tpu.dot_dimension_numbers<[1], [0], [0], [1], [0, 0, 1, 1], [], []>} : vector<256x128xbf16>, vector<128x128xbf16>, vector<256x128xf32> -> vector<256x128xf32>
    %c0_242 = arith.constant 0 : index
    %c0_243 = arith.constant 0 : index
    %570 = vector.load %arg9[%c0_242, %c0_243] : memref<1x128xf32, #tpu.memory_space<vmem>>, vector<1x128xf32>
    %571 = vector.broadcast %570 : vector<1x128xf32> to vector<256x128xf32>
    %572 = arith.addf %569, %571 : vector<256x128xf32>
    %cst_244 = arith.constant 0.000000e+00 : f32
    %573 = vector.broadcast %cst_244 : f32 to vector<256x128xf32>
    %574 = arith.cmpf oge, %572, %573 : vector<256x128xf32>
    %cst_245 = arith.constant 0.00999999977 : f32
    %575 = vector.broadcast %cst_245 : f32 to vector<256x128xf32>
    %576 = arith.mulf %575, %572 : vector<256x128xf32>
    %577 = arith.select %574, %572, %576 : vector<256x128xi1>, vector<256x128xf32>
    %578 = arith.truncf %577 : vector<256x128xf32> to vector<256x128xbf16>
    %c0_246 = arith.constant 0 : index
    %c0_247 = arith.constant 0 : index
    %579 = vector.load %arg10[%c0_246, %c0_247] : memref<256x128xbf16, #tpu.memory_space<vmem>>, vector<256x128xbf16>
    tpu.vector_store %arg10[%c0_246, %c0_247], %578 {strides = array<i32>} : memref<256x128xbf16, #tpu.memory_space<vmem>>, vector<256x128xbf16>,
    return
  }
}

</mosaic_0001>

<llo_original>
// kernel: leaky_residual_approximator.3
$region0: #{leaky_residual_approximator.3}
  #allocation0 [shape = 'u32[]', space=smem, size = 0x4, offset = 0x4, fixed_abs, tag = 'smem constant byte address 0x4 - core index']
  #allocation1 [shape = 'u32[72,128]{1,0:T(1,128)}', space=vmem, size = 0x9000, scoped, tag = 'internal scratch']
  %s0 = inlined_call_operand.vmem [shape: bf16[256,128], index: 0, kind: input, shape index: {}]
  %s1 = inlined_call_operand.vmem [shape: bf16[128,128], index: 1, kind: input, shape index: {}]
  %s2 = inlined_call_operand.vmem [shape: f32[1,128], index: 2, kind: input, shape index: {}]
  %s3 = inlined_call_operand.vmem [shape: f32[256,128], index: 3, kind: output, shape index: {}]
  %s4 = sld [smem:[#allocation0]]
  $region22: #{leaky_residual_approximator.3} parent=0
    _
  %s6 = ssub.s32 1, %s4
  %s7 = scalar_select 0, %s6, %s4
  // Predicated region
  $region2: #{leaky_residual_approximator.3} parent=0 // pred_check
    _
  $region3: #{leaky_residual_approximator.3} parent=0 // pred_check_branch
    %9 = sbr.rel (0) target = $region5
  $region4: #{leaky_residual_approximator.3} parent=0 // pred_region
    _
  $region5: #{leaky_residual_approximator.3} parent=0 // pred_fallthru
    _
  // Predicated region
  $region6: #{leaky_residual_approximator.3} parent=0 // pred_check
    _
  $region7: #{leaky_residual_approximator.3} parent=0 // pred_check_branch
    %11 = sbr.rel (0) target = $region9
  $region8: #{leaky_residual_approximator.3} parent=0 // pred_region
    _
  $region9: #{leaky_residual_approximator.3} parent=0 // pred_fallthru
    _
  // Predicated region
  $region10: #{leaky_residual_approximator.3} parent=0 // pred_check
    _
  $region11: #{leaky_residual_approximator.3} parent=0 // pred_check_branch
    %13 = sbr.rel (0) target = $region13
  $region12: #{leaky_residual_approximator.3} parent=0 // pred_region
    _
  $region13: #{leaky_residual_approximator.3} parent=0 // pred_fallthru
    _
  %v14 = vld [vmem:[%s0] sm:$0xf]
  %v15 = vld [vmem:[%s0 + $0x4] sm:$0xf]
  %v16 = vld [vmem:[%s0 + $0x8] sm:$0xf]
  %v17 = vld [vmem:[%s0 + $0xc] sm:$0xf]
  %v18 = vld [vmem:[%s0 + $0x10] sm:$0xf]
  %v19 = vld [vmem:[%s0 + $0x14] sm:$0xf]
  %v20 = vld [vmem:[%s0 + $0x18] sm:$0xf]
  %v21 = vld [vmem:[%s0 + $0x1c] sm:$0xf]
  %v22 = vld [vmem:[%s0 + $0x20] sm:$0xf]
  %v23 = vld [vmem:[%s0 + $0x24] sm:$0xf]
  %v24 = vld [vmem:[%s0 + $0x28] sm:$0xf]
  %v25 = vld [vmem:[%s0 + $0x2c] sm:$0xf]
  %v26 = vld [vmem:[%s0 + $0x30] sm:$0xf]
  %v27 = vld [vmem:[%s0 + $0x34] sm:$0xf]
  %v28 = vld [vmem:[%s0 + $0x38] sm:$0xf]
  %v29 = vld [vmem:[%s0 + $0x3c] sm:$0xf]
  %v30 = vld [vmem:[%s0 + $0x40] sm:$0xf]
  %v31 = vld [vmem:[%s0 + $0x44] sm:$0xf]
  %v32 = vld [vmem:[%s0 + $0x48] sm:$0xf]
  %v33 = vld [vmem:[%s0 + $0x4c] sm:$0xf]
  %v34 = vld [vmem:[%s0 + $0x50] sm:$0xf]
  %v35 = vld [vmem:[%s0 + $0x54] sm:$0xf]
  %v36 = vld [vmem:[%s0 + $0x58] sm:$0xf]
  %v37 = vld [vmem:[%s0 + $0x5c] sm:$0xf]
  %v38 = vld [vmem:[%s0 + $0x60] sm:$0xf]
  %v39 = vld [vmem:[%s0 + $0x64] sm:$0xf]
  %v40 = vld [vmem:[%s0 + $0x68] sm:$0xf]
  %v41 = vld [vmem:[%s0 + $0x6c] sm:$0xf]
  %v42 = vld [vmem:[%s0 + $0x70] sm:$0xf]
  %v43 = vld [vmem:[%s0 + $0x74] sm:$0xf]
  %v44 = vld [vmem:[%s0 + $0x78] sm:$0xf]
  %v45 = vld [vmem:[%s0 + $0x7c] sm:$0xf]
  %v46 = vld [vmem:[%s1] sm:$0xf]
  %v47 = vld [vmem:[%s1 + $0x4] sm:$0xf]
  %v48 = vld [vmem:[%s1 + $0x8] sm:$0xf]
  %v49 = vld [vmem:[%s1 + $0xc] sm:$0xf]
  %v50 = vld [vmem:[%s1 + $0x10] sm:$0xf]
  %v51 = vld [vmem:[%s1 + $0x14] sm:$0xf]
  %v52 = vld [vmem:[%s1 + $0x18] sm:$0xf]
  %v53 = vld [vmem:[%s1 + $0x1c] sm:$0xf]
  %v54 = vld [vmem:[%s1 + $0x20] sm:$0xf]
  %v55 = vld [vmem:[%s1 + $0x24] sm:$0xf]
  %v56 = vld [vmem:[%s1 + $0x28] sm:$0xf]
  %v57 = vld [vmem:[%s1 + $0x2c] sm:$0xf]
  %v58 = vld [vmem:[%s1 + $0x30] sm:$0xf]
  %v59 = vld [vmem:[%s1 + $0x34] sm:$0xf]
  %v60 = vld [vmem:[%s1 + $0x38] sm:$0xf]
  %v61 = vld [vmem:[%s1 + $0x3c] sm:$0xf]
  %v62 = vld [vmem:[%s2] sm:$0x1]
  %v64 = vperm.slane %v62, 0
  %v98 = vunpack.c.l.b16 %v14
  %v99 = vunpack.c.l.b16 %v15
  %v100 = vunpack.c.l.b16 %v16
  %v101 = vunpack.c.l.b16 %v17
  %v102 = vunpack.c.l.b16 %v18
  %v103 = vunpack.c.l.b16 %v19
  %v104 = vunpack.c.l.b16 %v20
  %v105 = vunpack.c.l.b16 %v21
  %v106 = vunpack.c.l.b16 %v22
  %v107 = vunpack.c.l.b16 %v23
  %v108 = vunpack.c.l.b16 %v24
  %v109 = vunpack.c.l.b16 %v25
  %v110 = vunpack.c.l.b16 %v26
  %v111 = vunpack.c.l.b16 %v27
  %v112 = vunpack.c.l.b16 %v28
  %v113 = vunpack.c.l.b16 %v29
  %v114 = vunpack.c.l.b16 %v30
  %v115 = vunpack.c.l.b16 %v31
  %v116 = vunpack.c.l.b16 %v32
  %v117 = vunpack.c.l.b16 %v33
  %v118 = vunpack.c.l.b16 %v34
  %v119 = vunpack.c.l.b16 %v35
  %v120 = vunpack.c.l.b16 %v36
  %v121 = vunpack.c.l.b16 %v37
  %v122 = vunpack.c.l.b16 %v38
  %v123 = vunpack.c.l.b16 %v39
  %v124 = vunpack.c.l.b16 %v40
  %v125 = vunpack.c.l.b16 %v41
  %v126 = vunpack.c.l.b16 %v42
  %v127 = vunpack.c.l.b16 %v43
  %v128 = vunpack.c.l.b16 %v44
  %v129 = vunpack.c.l.b16 %v45
  %v130 = vpack.c.b16 %v99, %v98
  %v131 = vpack.c.b16 %v101, %v100
  %v132 = vpack.c.b16 %v103, %v102
  %v133 = vpack.c.b16 %v105, %v104
  %v134 = vpack.c.b16 %v107, %v106
  %v135 = vpack.c.b16 %v109, %v108
  %v136 = vpack.c.b16 %v111, %v110
  %v137 = vpack.c.b16 %v113, %v112
  %v138 = vpack.c.b16 %v115, %v114
  %v139 = vpack.c.b16 %v117, %v116
  %v140 = vpack.c.b16 %v119, %v118
  %v141 = vpack.c.b16 %v121, %v120
  %v142 = vpack.c.b16 %v123, %v122
  %v143 = vpack.c.b16 %v125, %v124
  %v144 = vpack.c.b16 %v127, %v126
  %v145 = vpack.c.b16 %v129, %v128
  %v178 = vunpack.c.l.b16 %v46
  %v179 = vunpack.c.l.b16 %v47
  %v180 = vunpack.c.l.b16 %v48
  %v181 = vunpack.c.l.b16 %v49
  %v182 = vunpack.c.l.b16 %v50
  %v183 = vunpack.c.l.b16 %v51
  %v184 = vunpack.c.l.b16 %v52
  %v185 = vunpack.c.l.b16 %v53
  %v186 = vunpack.c.l.b16 %v54
  %v187 = vunpack.c.l.b16 %v55
  %v188 = vunpack.c.l.b16 %v56
  %v189 = vunpack.c.l.b16 %v57
  %v190 = vunpack.c.l.b16 %v58
  %v191 = vunpack.c.l.b16 %v59
  %v192 = vunpack.c.l.b16 %v60
  %v193 = vunpack.c.l.b16 %v61
  %v194 = vpack.c.b16 %v179, %v178
  %v195 = vpack.c.b16 %v181, %v180
  %v196 = vpack.c.b16 %v183, %v182
  %v197 = vpack.c.b16 %v185, %v184
  %v198 = vpack.c.b16 %v187, %v186
  %v199 = vpack.c.b16 %v189, %v188
  %v200 = vpack.c.b16 %v191, %v190
  %v201 = vpack.c.b16 %v193, %v192
  %210 = vmatpush.bf16.msra.mxu0 %v201
  %211 = vmatpush.bf16.msra.mxu0 %v200
  %212 = vmatpush.bf16.msra.mxu0 %v199
  %213 = vmatpush.bf16.msra.mxu0 %v198
  %214 = vmatpush.bf16.msra.mxu0 %v197
  %215 = vmatpush.bf16.msra.mxu0 %v196
  %216 = vmatpush.bf16.msra.mxu0 %v195
  %217 = vmatpush.bf16.msra.mxu0 %v194
  %218 = vmatmul.bf16.gmra.mxu0 %v130
  %v219 = vpop.f32.mrf.mxu0
  %v220 = vadd.f32 %v64, %v219
  %v221 = vpop.f32.mrf.mxu0
  %v222 = vadd.f32 %v64, %v221
  %223 = vmatmul.bf16.gmra.mxu0 %v131
  %v224 = vpop.f32.mrf.mxu0
  %v225 = vadd.f32 %v64, %v224
  %v226 = vpop.f32.mrf.mxu0
  %v227 = vadd.f32 %v64, %v226
  %228 = vmatmul.bf16.gmra.mxu0 %v132
  %v229 = vpop.f32.mrf.mxu0
  %v230 = vadd.f32 %v64, %v229
  %v231 = vpop.f32.mrf.mxu0
  %v232 = vadd.f32 %v64, %v231
  %233 = vmatmul.bf16.gmra.mxu0 %v133
  %v234 = vpop.f32.mrf.mxu0
  %v235 = vadd.f32 %v64, %v234
  %v236 = vpop.f32.mrf.mxu0
  %v237 = vadd.f32 %v64, %v236
  %238 = vmatmul.bf16.gmra.mxu0 %v134
  %v239 = vpop.f32.mrf.mxu0
  %v240 = vadd.f32 %v64, %v239
  %v241 = vpop.f32.mrf.mxu0
  %v242 = vadd.f32 %v64, %v241
  %243 = vmatmul.bf16.gmra.mxu0 %v135
  %v244 = vpop.f32.mrf.mxu0
  %v245 = vadd.f32 %v64, %v244
  %v246 = vpop.f32.mrf.mxu0
  %v247 = vadd.f32 %v64, %v246
  %248 = vmatmul.bf16.gmra.mxu0 %v136
  %v249 = vpop.f32.mrf.mxu0
  %v250 = vadd.f32 %v64, %v249
  %v251 = vpop.f32.mrf.mxu0
  %v252 = vadd.f32 %v64, %v251
  %253 = vmatmul.bf16.gmra.mxu0 %v137
  %v254 = vpop.f32.mrf.mxu0
  %v255 = vadd.f32 %v64, %v254
  %v256 = vpop.f32.mrf.mxu0
  %v257 = vadd.f32 %v64, %v256
  %258 = vmatmul.bf16.gmra.mxu0 %v138
  %v259 = vpop.f32.mrf.mxu0
  %v260 = vadd.f32 %v64, %v259
  %v261 = vpop.f32.mrf.mxu0
  %v262 = vadd.f32 %v64, %v261
  %263 = vmatmul.bf16.gmra.mxu0 %v139
  %v264 = vpop.f32.mrf.mxu0
  %v265 = vadd.f32 %v64, %v264
  %v266 = vpop.f32.mrf.mxu0
  %v267 = vadd.f32 %v64, %v266
  %268 = vmatmul.bf16.gmra.mxu0 %v140
  %v269 = vpop.f32.mrf.mxu0
  %v270 = vadd.f32 %v64, %v269
  %v271 = vpop.f32.mrf.mxu0
  %v272 = vadd.f32 %v64, %v271
  %273 = vmatmul.bf16.gmra.mxu0 %v141
  %v274 = vpop.f32.mrf.mxu0
  %v275 = vadd.f32 %v64, %v274
  %v276 = vpop.f32.mrf.mxu0
  %v277 = vadd.f32 %v64, %v276
  %278 = vmatmul.bf16.gmra.mxu0 %v142
  %v279 = vpop.f32.mrf.mxu0
  %v280 = vadd.f32 %v64, %v279
  %v281 = vpop.f32.mrf.mxu0
  %v282 = vadd.f32 %v64, %v281
  %283 = vmatmul.bf16.gmra.mxu0 %v143
  %v284 = vpop.f32.mrf.mxu0
  %v285 = vadd.f32 %v64, %v284
  %v286 = vpop.f32.mrf.mxu0
  %v287 = vadd.f32 %v64, %v286
  %288 = vmatmul.bf16.gmra.mxu0 %v144
  %v289 = vpop.f32.mrf.mxu0
  %v290 = vadd.f32 %v64, %v289
  %v291 = vpop.f32.mrf.mxu0
  %v292 = vadd.f32 %v64, %v291
  %293 = vmatmul.bf16.gmra.mxu0 %v145
  %v294 = vpop.f32.mrf.mxu0
  %v295 = vadd.f32 %v64, %v294
  %v296 = vpop.f32.mrf.mxu0
  %v297 = vadd.f32 %v64, %v296
  %298 = vdwg.mxu0
  %299 = vst [vmem:[%s3] sm:$0xff] %v220
  %300 = vst [vmem:[%s3 + $0x8] sm:$0xff] %v222
  %301 = vst [vmem:[%s3 + $0x10] sm:$0xff] %v225
  %302 = vst [vmem:[%s3 + $0x18] sm:$0xff] %v227
  %303 = vst [vmem:[%s3 + $0x20] sm:$0xff] %v230
  %304 = vst [vmem:[%s3 + $0x28] sm:$0xff] %v232
  %305 = vst [vmem:[%s3 + $0x30] sm:$0xff] %v235
  %306 = vst [vmem:[%s3 + $0x38] sm:$0xff] %v237
  %307 = vst [vmem:[%s3 + $0x40] sm:$0xff] %v240
  %308 = vst [vmem:[%s3 + $0x48] sm:$0xff] %v242
  %309 = vst [vmem:[%s3 + $0x50] sm:$0xff] %v245
  %310 = vst [vmem:[%s3 + $0x58] sm:$0xff] %v247
  %311 = vst [vmem:[%s3 + $0x60] sm:$0xff] %v250
  %312 = vst [vmem:[%s3 + $0x68] sm:$0xff] %v252
  %313 = vst [vmem:[%s3 + $0x70] sm:$0xff] %v255
  %314 = vst [vmem:[%s3 + $0x78] sm:$0xff] %v257
  %315 = vst [vmem:[%s3 + $0x80] sm:$0xff] %v260
  %316 = vst [vmem:[%s3 + $0x88] sm:$0xff] %v262
  %317 = vst [vmem:[%s3 + $0x90] sm:$0xff] %v265
  %318 = vst [vmem:[%s3 + $0x98] sm:$0xff] %v267
  %319 = vst [vmem:[%s3 + $0xa0] sm:$0xff] %v270
  %320 = vst [vmem:[%s3 + $0xa8] sm:$0xff] %v272
  %321 = vst [vmem:[%s3 + $0xb0] sm:$0xff] %v275
  %322 = vst [vmem:[%s3 + $0xb8] sm:$0xff] %v277
  %323 = vst [vmem:[%s3 + $0xc0] sm:$0xff] %v280
  %324 = vst [vmem:[%s3 + $0xc8] sm:$0xff] %v282
  %325 = vst [vmem:[%s3 + $0xd0] sm:$0xff] %v285
  %326 = vst [vmem:[%s3 + $0xd8] sm:$0xff] %v287
  %327 = vst [vmem:[%s3 + $0xe0] sm:$0xff] %v290
  %328 = vst [vmem:[%s3 + $0xe8] sm:$0xff] %v292
  %329 = vst [vmem:[%s3 + $0xf0] sm:$0xff] %v295
  %330 = vst [vmem:[%s3 + $0xf8] sm:$0xff] %v297
  // Predicated region
  $region14: #{leaky_residual_approximator.3} parent=0 // pred_check
    _
  $region15: #{leaky_residual_approximator.3} parent=0 // pred_check_branch
    %332 = sbr.rel (0) target = $region17
  $region16: #{leaky_residual_approximator.3} parent=0 // pred_region
    _
  $region17: #{leaky_residual_approximator.3} parent=0 // pred_fallthru
    _
  // Predicated region
  $region18: #{leaky_residual_approximator.3} parent=0 // pred_check
    _
  $region19: #{leaky_residual_approximator.3} parent=0 // pred_check_branch
    %334 = sbr.rel (0) target = $region21
  $region20: #{leaky_residual_approximator.3} parent=0 // pred_region
    _
  $region21: #{leaky_residual_approximator.3} parent=0 // pred_fallthru
    _

// kernel: leaky_residual_approximator.2
$region0: #{leaky_residual_approximator.2}
  #allocation0 [shape = 'u32[]', space=smem, size = 0x4, offset = 0x4, fixed_abs, tag = 'smem constant byte address 0x4 - core index']
  #allocation1 [shape = 'u32[72,128]{1,0:T(1,128)}', space=vmem, size = 0x9000, scoped, tag = 'internal scratch']
  #allocation2 [shape = 'bf16[256,128]{1,0:T(8,128)(2,1)}', space=vmem, size = 0x10000, scoped, tag = 'scratch operand']
  #allocation3 [shape = 'bf16[256,384]{1,0:T(8,128)(2,1)}', space=vmem, size = 0x30000, scoped, tag = 'scratch operand']
  #allocation4 [shape = 'bf16[2,128,384]{2,1,0:T(8,128)(2,1)}', space=vmem, size = 0x30000, scoped, tag = 'scratch operand']
  #allocation5 [shape = 'bf16[2,128,384]{2,1,0:T(8,128)(2,1)}', space=vmem, size = 0x30000, scoped, tag = 'scratch operand']
  #allocation6 [shape = 's32[4]{0}', space=sflag, size = 0x10, scoped, tag = 'scratch operand']
  #allocation7 [shape = 's32[]', space=sflag, size = 0x4, offset = 0, fixed_abs, tag = 'sflag constant byte address 0x0 - dummy sync flag']
  #allocation8 [shape = 's32[]', space=sflag, size = 0x4, offset = 0, fixed_abs, tag = 'sflag constant byte address 0x0 - dummy sync flag']
  #allocation9 [shape = 's32[]', space=sflag, size = 0x4, offset = 0, fixed_abs, tag = 'sflag constant byte address 0x0 - dummy sync flag']
  #allocation10 [shape = 's32[]', space=sflag, size = 0x4, offset = 0, fixed_abs, tag = 'sflag constant byte address 0x0 - dummy sync flag']
  %s0 = inlined_call_operand.vmem [shape: bf16[256,128], index: 0, kind: input, shape index: {}]
  %s1 = inlined_call_operand.vmem [shape: f32[2,8,128], index: 1, kind: input, shape index: {}]
  %s2 = inlined_call_operand.vmem [shape: bf16[128,128], index: 2, kind: input, shape index: {}]
  %s3 = inlined_call_operand.vmem [shape: f32[1,128], index: 3, kind: input, shape index: {}]
  %s4 = inlined_call_operand.vmem [shape: bf16[2,128,384], index: 4, kind: input, shape index: {}]
  %s5 = inlined_call_operand.vmem [shape: bf16[2,128,384], index: 5, kind: input, shape index: {}]
  %s6 = inlined_call_operand.vmem [shape: f32[2,1,384], index: 6, kind: input, shape index: {}]
  %s7 = inlined_call_operand.vmem [shape: f32[2,1,384], index: 7, kind: input, shape index: {}]
  %s8 = inlined_call_operand.vmem [shape: bf16[128,128], index: 8, kind: input, shape index: {}]
  %s9 = inlined_call_operand.vmem [shape: f32[1,128], index: 9, kind: input, shape index: {}]
  %s10 = inlined_call_operand.vmem [shape: bf16[256,128], index: 10, kind: output, shape index: {0}]
  %s11 = inlined_call_operand.vmem [shape: f32[2,8,128], index: 11, kind: output, shape index: {1}]
  %12 = xla_tuple %s10, %s11
  %s13 = sld [smem:[#allocation0]]
  $region126: #{leaky_residual_approximator.2} parent=0
    _
  %s15 = ssub.s32 1, %s13
  %s16 = scalar_select 0, %s15, %s13
  // Predicated region
  $region2: #{leaky_residual_approximator.2} parent=0 // pred_check
    _
  $region3: #{leaky_residual_approximator.2} parent=0 // pred_check_branch
    %18 = sbr.rel (0) target = $region5
  $region4: #{leaky_residual_approximator.2} parent=0 // pred_region
    _
  $region5: #{leaky_residual_approximator.2} parent=0 // pred_fallthru
    _
  // Predicated region
  $region6: #{leaky_residual_approximator.2} parent=0 // pred_check
    _
  $region7: #{leaky_residual_approximator.2} parent=0 // pred_check_branch
    %20 = sbr.rel (0) target = $region9
  $region8: #{leaky_residual_approximator.2} parent=0 // pred_region
    _
  $region9: #{leaky_residual_approximator.2} parent=0 // pred_fallthru
    _
  // Predicated region
  $region10: #{leaky_residual_approximator.2} parent=0 // pred_check
    _
  $region11: #{leaky_residual_approximator.2} parent=0 // pred_check_branch
    %22 = sbr.rel (0) target = $region13
  $region12: #{leaky_residual_approximator.2} parent=0 // pred_region
    _
  $region13: #{leaky_residual_approximator.2} parent=0 // pred_fallthru
    _
  // Predicated region
  $region14: #{leaky_residual_approximator.2} parent=0 // pred_check
    _
  $region15: #{leaky_residual_approximator.2} parent=0 // pred_check_branch
    %24 = sbr.rel (0) target = $region17
  $region16: #{leaky_residual_approximator.2} parent=0 // pred_region
    _
  $region17: #{leaky_residual_approximator.2} parent=0 // pred_fallthru
    _
  // Predicated region
  $region18: #{leaky_residual_approximator.2} parent=0 // pred_check
    _
  $region19: #{leaky_residual_approximator.2} parent=0 // pred_check_branch
    %26 = sbr.rel (0) target = $region21
  $region20: #{leaky_residual_approximator.2} parent=0 // pred_region
    _
  $region21: #{leaky_residual_approximator.2} parent=0 // pred_fallthru
    _
  // Predicated region
  $region22: #{leaky_residual_approximator.2} parent=0 // pred_check
    _
  $region23: #{leaky_residual_approximator.2} parent=0 // pred_check_branch
    %28 = sbr.rel (0) target = $region25
  $region24: #{leaky_residual_approximator.2} parent=0 // pred_region
    _
  $region25: #{leaky_residual_approximator.2} parent=0 // pred_fallthru
    _
  // Predicated region
  $region26: #{leaky_residual_approximator.2} parent=0 // pred_check
    _
  $region27: #{leaky_residual_approximator.2} parent=0 // pred_check_branch
    %30 = sbr.rel (0) target = $region29
  $region28: #{leaky_residual_approximator.2} parent=0 // pred_region
    _
  $region29: #{leaky_residual_approximator.2} parent=0 // pred_fallthru
    _
  // Predicated region
  $region30: #{leaky_residual_approximator.2} parent=0 // pred_check
    _
  $region31: #{leaky_residual_approximator.2} parent=0 // pred_check_branch
    %32 = sbr.rel (0) target = $region33
  $region32: #{leaky_residual_approximator.2} parent=0 // pred_region
    _
  $region33: #{leaky_residual_approximator.2} parent=0 // pred_fallthru
    _
  // Predicated region
  $region34: #{leaky_residual_approximator.2} parent=0 // pred_check
    _
  $region35: #{leaky_residual_approximator.2} parent=0 // pred_check_branch
    %34 = sbr.rel (0) target = $region37
  $region36: #{leaky_residual_approximator.2} parent=0 // pred_region
    loop: start=0, step=1, limit=1
    $region38: #{leaky_residual_approximator.2} parent=36 // loop_pre_header
      _
    $region39: #{leaky_residual_approximator.2} parent=36 // loop_header
      %s36 = sphi 0, %s40
      %p37 = scmp.ge.s32.totalorder %s36, 1
      %s41 = sphi %s4, %s4
      %s42 = sphi [#allocation4], [#allocation4]
    $region40: #{leaky_residual_approximator.2} parent=36 // loop_header_branch
      %39 = sbr.rel (%p37) target = $region44
    $region41: #{leaky_residual_approximator.2} parent=36 // loop_body
      %v43 = vld [vmem:[%s41] sm:$0xff]
      %44 = vst [vmem:[%s42] sm:$0xff] %v43
      %v45 = vld [vmem:[%s41 + $0x8] sm:$0xff]
      %46 = vst [vmem:[%s42 + $0x8] sm:$0xff] %v45
      %v47 = vld [vmem:[%s41 + $0x10] sm:$0xff]
      %48 = vst [vmem:[%s42 + $0x10] sm:$0xff] %v47
      %v49 = vld [vmem:[%s41 + $0x18] sm:$0xff]
      %50 = vst [vmem:[%s42 + $0x18] sm:$0xff] %v49
      %v51 = vld [vmem:[%s41 + $0x20] sm:$0xff]
      %52 = vst [vmem:[%s42 + $0x20] sm:$0xff] %v51
      %v53 = vld [vmem:[%s41 + $0x28] sm:$0xff]
      %54 = vst [vmem:[%s42 + $0x28] sm:$0xff] %v53
      %v55 = vld [vmem:[%s41 + $0x30] sm:$0xff]
      %56 = vst [vmem:[%s42 + $0x30] sm:$0xff] %v55
      %v57 = vld [vmem:[%s41 + $0x38] sm:$0xff]
      %58 = vst [vmem:[%s42 + $0x38] sm:$0xff] %v57
      %v59 = vld [vmem:[%s41 + $0x40] sm:$0xff]
      %60 = vst [vmem:[%s42 + $0x40] sm:$0xff] %v59
      %v61 = vld [vmem:[%s41 + $0x48] sm:$0xff]
      %62 = vst [vmem:[%s42 + $0x48] sm:$0xff] %v61
      %v63 = vld [vmem:[%s41 + $0x50] sm:$0xff]
      %64 = vst [vmem:[%s42 + $0x50] sm:$0xff] %v63
      %v65 = vld [vmem:[%s41 + $0x58] sm:$0xff]
      %66 = vst [vmem:[%s42 + $0x58] sm:$0xff] %v65
      %v67 = vld [vmem:[%s41 + $0x60] sm:$0xff]
      %68 = vst [vmem:[%s42 + $0x60] sm:$0xff] %v67
      %v69 = vld [vmem:[%s41 + $0x68] sm:$0xff]
      %70 = vst [vmem:[%s42 + $0x68] sm:$0xff] %v69
      %v71 = vld [vmem:[%s41 + $0x70] sm:$0xff]
      %72 = vst [vmem:[%s42 + $0x70] sm:$0xff] %v71
      %v73 = vld [vmem:[%s41 + $0x78] sm:$0xff]
      %74 = vst [vmem:[%s42 + $0x78] sm:$0xff] %v73
      %v75 = vld [vmem:[%s41 + $0x80] sm:$0xff]
      %76 = vst [vmem:[%s42 + $0x80] sm:$0xff] %v75
      %v77 = vld [vmem:[%s41 + $0x88] sm:$0xff]
      %78 = vst [vmem:[%s42 + $0x88] sm:$0xff] %v77
      %v79 = vld [vmem:[%s41 + $0x90] sm:$0xff]
      %80 = vst [vmem:[%s42 + $0x90] sm:$0xff] %v79
      %v81 = vld [vmem:[%s41 + $0x98] sm:$0xff]
      %82 = vst [vmem:[%s42 + $0x98] sm:$0xff] %v81
      %v83 = vld [vmem:[%s41 + $0xa0] sm:$0xff]
      %84 = vst [vmem:[%s42 + $0xa0] sm:$0xff] %v83
      %v85 = vld [vmem:[%s41 + $0xa8] sm:$0xff]
      %86 = vst [vmem:[%s42 + $0xa8] sm:$0xff] %v85
      %v87 = vld [vmem:[%s41 + $0xb0] sm:$0xff]
      %88 = vst [vmem:[%s42 + $0xb0] sm:$0xff] %v87
      %v89 = vld [vmem:[%s41 + $0xb8] sm:$0xff]
      %90 = vst [vmem:[%s42 + $0xb8] sm:$0xff] %v89
    $region42: #{leaky_residual_approximator.2} parent=36 // loop_footer
      %s40 = sadd.s32 1, %s36
    $region43: #{leaky_residual_approximator.2} parent=36 // loop_footer_branch
      %35 = sbr.rel target = $region39
    $region44: #{leaky_residual_approximator.2} parent=36 // loop_exit
      _
  $region37: #{leaky_residual_approximator.2} parent=0 // pred_fallthru
    _
  // Predicated region
  $region45: #{leaky_residual_approximator.2} parent=0 // pred_check
    _
  $region46: #{leaky_residual_approximator.2} parent=0 // pred_check_branch
    %92 = sbr.rel target = $region48
  $region47: #{leaky_residual_approximator.2} parent=0 // pred_region
    _
  $region48: #{leaky_residual_approximator.2} parent=0 // pred_fallthru
    _
  // Predicated region
  $region49: #{leaky_residual_approximator.2} parent=0 // pred_check
    _
  $region50: #{leaky_residual_approximator.2} parent=0 // pred_check_branch
    %95 = sbr.rel (0) target = $region52
  $region51: #{leaky_residual_approximator.2} parent=0 // pred_region
    %96 = vsyncadd [#allocation6], 3072
  $region52: #{leaky_residual_approximator.2} parent=0 // pred_fallthru
    _
  %s97 = scalar_lea.sflag [#allocation6], 2
  // Predicated region
  $region53: #{leaky_residual_approximator.2} parent=0 // pred_check
    _
  $region54: #{leaky_residual_approximator.2} parent=0 // pred_check_branch
    %99 = sbr.rel (0) target = $region56
  $region55: #{leaky_residual_approximator.2} parent=0 // pred_region
    loop: start=0, step=1, limit=1
    $region57: #{leaky_residual_approximator.2} parent=55 // loop_pre_header
      _
    $region58: #{leaky_residual_approximator.2} parent=55 // loop_header
      %s101 = sphi 0, %s105
      %p102 = scmp.ge.s32.totalorder %s101, 1
      %s106 = sphi %s5, %s5
      %s107 = sphi [#allocation5], [#allocation5]
    $region59: #{leaky_residual_approximator.2} parent=55 // loop_header_branch
      %104 = sbr.rel (%p102) target = $region63
    $region60: #{leaky_residual_approximator.2} parent=55 // loop_body
      %v108 = vld [vmem:[%s106] sm:$0xff]
      %109 = vst [vmem:[%s107] sm:$0xff] %v108
      %v110 = vld [vmem:[%s106 + $0x8] sm:$0xff]
      %111 = vst [vmem:[%s107 + $0x8] sm:$0xff] %v110
      %v112 = vld [vmem:[%s106 + $0x10] sm:$0xff]
      %113 = vst [vmem:[%s107 + $0x10] sm:$0xff] %v112
      %v114 = vld [vmem:[%s106 + $0x18] sm:$0xff]
      %115 = vst [vmem:[%s107 + $0x18] sm:$0xff] %v114
      %v116 = vld [vmem:[%s106 + $0x20] sm:$0xff]
      %117 = vst [vmem:[%s107 + $0x20] sm:$0xff] %v116
      %v118 = vld [vmem:[%s106 + $0x28] sm:$0xff]
      %119 = vst [vmem:[%s107 + $0x28] sm:$0xff] %v118
      %v120 = vld [vmem:[%s106 + $0x30] sm:$0xff]
      %121 = vst [vmem:[%s107 + $0x30] sm:$0xff] %v120
      %v122 = vld [vmem:[%s106 + $0x38] sm:$0xff]
      %123 = vst [vmem:[%s107 + $0x38] sm:$0xff] %v122
      %v124 = vld [vmem:[%s106 + $0x40] sm:$0xff]
      %125 = vst [vmem:[%s107 + $0x40] sm:$0xff] %v124
      %v126 = vld [vmem:[%s106 + $0x48] sm:$0xff]
      %127 = vst [vmem:[%s107 + $0x48] sm:$0xff] %v126
      %v128 = vld [vmem:[%s106 + $0x50] sm:$0xff]
      %129 = vst [vmem:[%s107 + $0x50] sm:$0xff] %v128
      %v130 = vld [vmem:[%s106 + $0x58] sm:$0xff]
      %131 = vst [vmem:[%s107 + $0x58] sm:$0xff] %v130
      %v132 = vld [vmem:[%s106 + $0x60] sm:$0xff]
      %133 = vst [vmem:[%s107 + $0x60] sm:$0xff] %v132
      %v134 = vld [vmem:[%s106 + $0x68] sm:$0xff]
      %135 = vst [vmem:[%s107 + $0x68] sm:$0xff] %v134
      %v136 = vld [vmem:[%s106 + $0x70] sm:$0xff]
      %137 = vst [vmem:[%s107 + $0x70] sm:$0xff] %v136
      %v138 = vld [vmem:[%s106 + $0x78] sm:$0xff]
      %139 = vst [vmem:[%s107 + $0x78] sm:$0xff] %v138
      %v140 = vld [vmem:[%s106 + $0x80] sm:$0xff]
      %141 = vst [vmem:[%s107 + $0x80] sm:$0xff] %v140
      %v142 = vld [vmem:[%s106 + $0x88] sm:$0xff]
      %143 = vst [vmem:[%s107 + $0x88] sm:$0xff] %v142
      %v144 = vld [vmem:[%s106 + $0x90] sm:$0xff]
      %145 = vst [vmem:[%s107 + $0x90] sm:$0xff] %v144
      %v146 = vld [vmem:[%s106 + $0x98] sm:$0xff]
      %147 = vst [vmem:[%s107 + $0x98] sm:$0xff] %v146
      %v148 = vld [vmem:[%s106 + $0xa0] sm:$0xff]
      %149 = vst [vmem:[%s107 + $0xa0] sm:$0xff] %v148
      %v150 = vld [vmem:[%s106 + $0xa8] sm:$0xff]
      %151 = vst [vmem:[%s107 + $0xa8] sm:$0xff] %v150
      %v152 = vld [vmem:[%s106 + $0xb0] sm:$0xff]
      %153 = vst [vmem:[%s107 + $0xb0] sm:$0xff] %v152
      %v154 = vld [vmem:[%s106 + $0xb8] sm:$0xff]
      %155 = vst [vmem:[%s107 + $0xb8] sm:$0xff] %v154
    $region61: #{leaky_residual_approximator.2} parent=55 // loop_footer
      %s105 = sadd.s32 1, %s101
    $region62: #{leaky_residual_approximator.2} parent=55 // loop_footer_branch
      %100 = sbr.rel target = $region58
    $region63: #{leaky_residual_approximator.2} parent=55 // loop_exit
      _
  $region56: #{leaky_residual_approximator.2} parent=0 // pred_fallthru
    _
  // Predicated region
  $region64: #{leaky_residual_approximator.2} parent=0 // pred_check
    _
  $region65: #{leaky_residual_approximator.2} parent=0 // pred_check_branch
    %157 = sbr.rel target = $region67
  $region66: #{leaky_residual_approximator.2} parent=0 // pred_region
    _
  $region67: #{leaky_residual_approximator.2} parent=0 // pred_fallthru
    _
  // Predicated region
  $region68: #{leaky_residual_approximator.2} parent=0 // pred_check
    _
  $region69: #{leaky_residual_approximator.2} parent=0 // pred_check_branch
    %160 = sbr.rel (0) target = $region71
  $region70: #{leaky_residual_approximator.2} parent=0 // pred_region
    %161 = vsyncadd %s97, 3072
  $region71: #{leaky_residual_approximator.2} parent=0 // pred_fallthru
    _
  %v162 = vld [vmem:[%s0] sm:$0xf]
  %v163 = vld [vmem:[%s0 + $0x4] sm:$0xf]
  %v164 = vld [vmem:[%s0 + $0x8] sm:$0xf]
  %v165 = vld [vmem:[%s0 + $0xc] sm:$0xf]
  %v166 = vld [vmem:[%s0 + $0x10] sm:$0xf]
  %v167 = vld [vmem:[%s0 + $0x14] sm:$0xf]
  %v168 = vld [vmem:[%s0 + $0x18] sm:$0xf]
  %v169 = vld [vmem:[%s0 + $0x1c] sm:$0xf]
  %v170 = vld [vmem:[%s0 + $0x20] sm:$0xf]
  %v171 = vld [vmem:[%s0 + $0x24] sm:$0xf]
  %v172 = vld [vmem:[%s0 + $0x28] sm:$0xf]
  %v173 = vld [vmem:[%s0 + $0x2c] sm:$0xf]
  %v174 = vld [vmem:[%s0 + $0x30] sm:$0xf]
  %v175 = vld [vmem:[%s0 + $0x34] sm:$0xf]
  %v176 = vld [vmem:[%s0 + $0x38] sm:$0xf]
  %v177 = vld [vmem:[%s0 + $0x3c] sm:$0xf]
  %v178 = vld [vmem:[%s0 + $0x40] sm:$0xf]
  %v179 = vld [vmem:[%s0 + $0x44] sm:$0xf]
  %v180 = vld [vmem:[%s0 + $0x48] sm:$0xf]
  %v181 = vld [vmem:[%s0 + $0x4c] sm:$0xf]
  %v182 = vld [vmem:[%s0 + $0x50] sm:$0xf]
  %v183 = vld [vmem:[%s0 + $0x54] sm:$0xf]
  %v184 = vld [vmem:[%s0 + $0x58] sm:$0xf]
  %v185 = vld [vmem:[%s0 + $0x5c] sm:$0xf]
  %v186 = vld [vmem:[%s0 + $0x60] sm:$0xf]
  %v187 = vld [vmem:[%s0 + $0x64] sm:$0xf]
  %v188 = vld [vmem:[%s0 + $0x68] sm:$0xf]
  %v189 = vld [vmem:[%s0 + $0x6c] sm:$0xf]
  %v190 = vld [vmem:[%s0 + $0x70] sm:$0xf]
  %v191 = vld [vmem:[%s0 + $0x74] sm:$0xf]
  %v192 = vld [vmem:[%s0 + $0x78] sm:$0xf]
  %v193 = vld [vmem:[%s0 + $0x7c] sm:$0xf]
  %v194 = vld [vmem:[%s2] sm:$0xf]
  %v195 = vld [vmem:[%s2 + $0x4] sm:$0xf]
  %v196 = vld [vmem:[%s2 + $0x8] sm:$0xf]
  %v197 = vld [vmem:[%s2 + $0xc] sm:$0xf]
  %v198 = vld [vmem:[%s2 + $0x10] sm:$0xf]
  %v199 = vld [vmem:[%s2 + $0x14] sm:$0xf]
  %v200 = vld [vmem:[%s2 + $0x18] sm:$0xf]
  %v201 = vld [vmem:[%s2 + $0x1c] sm:$0xf]
  %v202 = vld [vmem:[%s2 + $0x20] sm:$0xf]
  %v203 = vld [vmem:[%s2 + $0x24] sm:$0xf]
  %v204 = vld [vmem:[%s2 + $0x28] sm:$0xf]
  %v205 = vld [vmem:[%s2 + $0x2c] sm:$0xf]
  %v206 = vld [vmem:[%s2 + $0x30] sm:$0xf]
  %v207 = vld [vmem:[%s2 + $0x34] sm:$0xf]
  %v208 = vld [vmem:[%s2 + $0x38] sm:$0xf]
  %v209 = vld [vmem:[%s2 + $0x3c] sm:$0xf]
  %v210 = vld [vmem:[%s3] sm:$0x1]
  %v212 = vperm.slane %v210, 0
  %v246 = vunpack.c.l.b16 %v162
  %v247 = vunpack.c.l.b16 %v163
  %v248 = vunpack.c.l.b16 %v164
  %v249 = vunpack.c.l.b16 %v165
  %v250 = vunpack.c.l.b16 %v166
  %v251 = vunpack.c.l.b16 %v167
  %v252 = vunpack.c.l.b16 %v168
  %v253 = vunpack.c.l.b16 %v169
  %v254 = vunpack.c.l.b16 %v170
  %v255 = vunpack.c.l.b16 %v171
  %v256 = vunpack.c.l.b16 %v172
  %v257 = vunpack.c.l.b16 %v173
  %v258 = vunpack.c.l.b16 %v174
  %v259 = vunpack.c.l.b16 %v175
  %v260 = vunpack.c.l.b16 %v176
  %v261 = vunpack.c.l.b16 %v177
  %v262 = vunpack.c.l.b16 %v178
  %v263 = vunpack.c.l.b16 %v179
  %v264 = vunpack.c.l.b16 %v180
  %v265 = vunpack.c.l.b16 %v181
  %v266 = vunpack.c.l.b16 %v182
  %v267 = vunpack.c.l.b16 %v183
  %v268 = vunpack.c.l.b16 %v184
  %v269 = vunpack.c.l.b16 %v185
  %v270 = vunpack.c.l.b16 %v186
  %v271 = vunpack.c.l.b16 %v187
  %v272 = vunpack.c.l.b16 %v188
  %v273 = vunpack.c.l.b16 %v189
  %v274 = vunpack.c.l.b16 %v190
  %v275 = vunpack.c.l.b16 %v191
  %v276 = vunpack.c.l.b16 %v192
  %v277 = vunpack.c.l.b16 %v193
  %v278 = vpack.c.b16 %v247, %v246
  %v279 = vpack.c.b16 %v249, %v248
  %v280 = vpack.c.b16 %v251, %v250
  %v281 = vpack.c.b16 %v253, %v252
  %v282 = vpack.c.b16 %v255, %v254
  %v283 = vpack.c.b16 %v257, %v256
  %v284 = vpack.c.b16 %v259, %v258
  %v285 = vpack.c.b16 %v261, %v260
  %v286 = vpack.c.b16 %v263, %v262
  %v287 = vpack.c.b16 %v265, %v264
  %v288 = vpack.c.b16 %v267, %v266
  %v289 = vpack.c.b16 %v269, %v268
  %v290 = vpack.c.b16 %v271, %v270
  %v291 = vpack.c.b16 %v273, %v272
  %v292 = vpack.c.b16 %v275, %v274
  %v293 = vpack.c.b16 %v277, %v276
  %v326 = vunpack.c.l.b16 %v194
  %v327 = vunpack.c.l.b16 %v195
  %v328 = vunpack.c.l.b16 %v196
  %v329 = vunpack.c.l.b16 %v197
  %v330 = vunpack.c.l.b16 %v198
  %v331 = vunpack.c.l.b16 %v199
  %v332 = vunpack.c.l.b16 %v200
  %v333 = vunpack.c.l.b16 %v201
  %v334 = vunpack.c.l.b16 %v202
  %v335 = vunpack.c.l.b16 %v203
  %v336 = vunpack.c.l.b16 %v204
  %v337 = vunpack.c.l.b16 %v205
  %v338 = vunpack.c.l.b16 %v206
  %v339 = vunpack.c.l.b16 %v207
  %v340 = vunpack.c.l.b16 %v208
  %v341 = vunpack.c.l.b16 %v209
  %v342 = vpack.c.b16 %v327, %v326
  %v343 = vpack.c.b16 %v329, %v328
  %v344 = vpack.c.b16 %v331, %v330
  %v345 = vpack.c.b16 %v333, %v332
  %v346 = vpack.c.b16 %v335, %v334
  %v347 = vpack.c.b16 %v337, %v336
  %v348 = vpack.c.b16 %v339, %v338
  %v349 = vpack.c.b16 %v341, %v340
  %358 = vmatpush.bf16.msra.mxu0 %v349
  %359 = vmatpush.bf16.msra.mxu0 %v348
  %360 = vmatpush.bf16.msra.mxu0 %v347
  %361 = vmatpush.bf16.msra.mxu0 %v346
  %362 = vmatpush.bf16.msra.mxu0 %v345
  %363 = vmatpush.bf16.msra.mxu0 %v344
  %364 = vmatpush.bf16.msra.mxu0 %v343
  %365 = vmatpush.bf16.msra.mxu0 %v342
  %366 = vmatmul.bf16.gmra.mxu0 %v278
  %v367 = vpop.f32.mrf.mxu0
  %v368 = vadd.f32 %v212, %v367
  %v369 = vpop.f32.mrf.mxu0
  %v370 = vadd.f32 %v212, %v369
  %371 = vmatmul.bf16.gmra.mxu0 %v279
  %v372 = vpop.f32.mrf.mxu0
  %v373 = vadd.f32 %v212, %v372
  %v374 = vpop.f32.mrf.mxu0
  %v375 = vadd.f32 %v212, %v374
  %376 = vmatmul.bf16.gmra.mxu0 %v280
  %v377 = vpop.f32.mrf.mxu0
  %v378 = vadd.f32 %v212, %v377
  %v379 = vpop.f32.mrf.mxu0
  %v380 = vadd.f32 %v212, %v379
  %381 = vmatmul.bf16.gmra.mxu0 %v281
  %v382 = vpop.f32.mrf.mxu0
  %v383 = vadd.f32 %v212, %v382
  %v384 = vpop.f32.mrf.mxu0
  %v385 = vadd.f32 %v212, %v384
  %386 = vmatmul.bf16.gmra.mxu0 %v282
  %v387 = vpop.f32.mrf.mxu0
  %v388 = vadd.f32 %v212, %v387
  %v389 = vpop.f32.mrf.mxu0
  %v390 = vadd.f32 %v212, %v389
  %391 = vmatmul.bf16.gmra.mxu0 %v283
  %v392 = vpop.f32.mrf.mxu0
  %v393 = vadd.f32 %v212, %v392
  %v394 = vpop.f32.mrf.mxu0
  %v395 = vadd.f32 %v212, %v394
  %396 = vmatmul.bf16.gmra.mxu0 %v284
  %v397 = vpop.f32.mrf.mxu0
  %v398 = vadd.f32 %v212, %v397
  %v399 = vpop.f32.mrf.mxu0
  %v400 = vadd.f32 %v212, %v399
  %401 = vmatmul.bf16.gmra.mxu0 %v285
  %v402 = vpop.f32.mrf.mxu0
  %v403 = vadd.f32 %v212, %v402
  %v404 = vpop.f32.mrf.mxu0
  %v405 = vadd.f32 %v212, %v404
  %406 = vmatmul.bf16.gmra.mxu0 %v286
  %v407 = vpop.f32.mrf.mxu0
  %v408 = vadd.f32 %v212, %v407
  %v409 = vpop.f32.mrf.mxu0
  %v410 = vadd.f32 %v212, %v409
  %411 = vmatmul.bf16.gmra.mxu0 %v287
  %v412 = vpop.f32.mrf.mxu0
  %v413 = vadd.f32 %v212, %v412
  %v414 = vpop.f32.mrf.mxu0
  %v415 = vadd.f32 %v212, %v414
  %416 = vmatmul.bf16.gmra.mxu0 %v288
  %v417 = vpop.f32.mrf.mxu0
  %v418 = vadd.f32 %v212, %v417
  %v419 = vpop.f32.mrf.mxu0
  %v420 = vadd.f32 %v212, %v419
  %421 = vmatmul.bf16.gmra.mxu0 %v289
  %v422 = vpop.f32.mrf.mxu0
  %v423 = vadd.f32 %v212, %v422
  %v424 = vpop.f32.mrf.mxu0
  %v425 = vadd.f32 %v212, %v424
  %426 = vmatmul.bf16.gmra.mxu0 %v290
  %v427 = vpop.f32.mrf.mxu0
  %v428 = vadd.f32 %v212, %v427
  %v429 = vpop.f32.mrf.mxu0
  %v430 = vadd.f32 %v212, %v429
  %431 = vmatmul.bf16.gmra.mxu0 %v291
  %v432 = vpop.f32.mrf.mxu0
  %v433 = vadd.f32 %v212, %v432
  %v434 = vpop.f32.mrf.mxu0
  %v435 = vadd.f32 %v212, %v434
  %436 = vmatmul.bf16.gmra.mxu0 %v292
  %v437 = vpop.f32.mrf.mxu0
  %v438 = vadd.f32 %v212, %v437
  %v439 = vpop.f32.mrf.mxu0
  %v440 = vadd.f32 %v212, %v439
  %441 = vmatmul.bf16.gmra.mxu0 %v293
  %v442 = vpop.f32.mrf.mxu0
  %v443 = vadd.f32 %v212, %v442
  %v444 = vpop.f32.mrf.mxu0
  %v445 = vadd.f32 %v212, %v444
  %446 = vdwg.mxu0
  %vm447 = vcmp.ge.f32.partialorder %v368, 0.0
  %vm448 = vcmp.ge.f32.partialorder %v370, 0.0
  %vm449 = vcmp.ge.f32.partialorder %v373, 0.0
  %vm450 = vcmp.ge.f32.partialorder %v375, 0.0
  %vm451 = vcmp.ge.f32.partialorder %v378, 0.0
  %vm452 = vcmp.ge.f32.partialorder %v380, 0.0
  %vm453 = vcmp.ge.f32.partialorder %v383, 0.0
  %vm454 = vcmp.ge.f32.partialorder %v385, 0.0
  %vm455 = vcmp.ge.f32.partialorder %v388, 0.0
  %vm456 = vcmp.ge.f32.partialorder %v390, 0.0
  %vm457 = vcmp.ge.f32.partialorder %v393, 0.0
  %vm458 = vcmp.ge.f32.partialorder %v395, 0.0
  %vm459 = vcmp.ge.f32.partialorder %v398, 0.0
  %vm460 = vcmp.ge.f32.partialorder %v400, 0.0
  %vm461 = vcmp.ge.f32.partialorder %v403, 0.0
  %vm462 = vcmp.ge.f32.partialorder %v405, 0.0
  %vm463 = vcmp.ge.f32.partialorder %v408, 0.0
  %vm464 = vcmp.ge.f32.partialorder %v410, 0.0
  %vm465 = vcmp.ge.f32.partialorder %v413, 0.0
  %vm466 = vcmp.ge.f32.partialorder %v415, 0.0
  %vm467 = vcmp.ge.f32.partialorder %v418, 0.0
  %vm468 = vcmp.ge.f32.partialorder %v420, 0.0
  %vm469 = vcmp.ge.f32.partialorder %v423, 0.0
  %vm470 = vcmp.ge.f32.partialorder %v425, 0.0
  %vm471 = vcmp.ge.f32.partialorder %v428, 0.0
  %vm472 = vcmp.ge.f32.partialorder %v430, 0.0
  %vm473 = vcmp.ge.f32.partialorder %v433, 0.0
  %vm474 = vcmp.ge.f32.partialorder %v435, 0.0
  %vm475 = vcmp.ge.f32.partialorder %v438, 0.0
  %vm476 = vcmp.ge.f32.partialorder %v440, 0.0
  %vm477 = vcmp.ge.f32.partialorder %v443, 0.0
  %vm478 = vcmp.ge.f32.partialorder %v445, 0.0
  %v479 = vmul.f32 %v368, 0.01
  %v480 = vmul.f32 %v370, 0.01
  %v481 = vmul.f32 %v373, 0.01
  %v482 = vmul.f32 %v375, 0.01
  %v483 = vmul.f32 %v378, 0.01
  %v484 = vmul.f32 %v380, 0.01
  %v485 = vmul.f32 %v383, 0.01
  %v486 = vmul.f32 %v385, 0.01
  %v487 = vmul.f32 %v388, 0.01
  %v488 = vmul.f32 %v390, 0.01
  %v489 = vmul.f32 %v393, 0.01
  %v490 = vmul.f32 %v395, 0.01
  %v491 = vmul.f32 %v398, 0.01
  %v492 = vmul.f32 %v400, 0.01
  %v493 = vmul.f32 %v403, 0.01
  %v494 = vmul.f32 %v405, 0.01
  %v495 = vmul.f32 %v408, 0.01
  %v496 = vmul.f32 %v410, 0.01
  %v497 = vmul.f32 %v413, 0.01
  %v498 = vmul.f32 %v415, 0.01
  %v499 = vmul.f32 %v418, 0.01
  %v500 = vmul.f32 %v420, 0.01
  %v501 = vmul.f32 %v423, 0.01
  %v502 = vmul.f32 %v425, 0.01
  %v503 = vmul.f32 %v428, 0.01
  %v504 = vmul.f32 %v430, 0.01
  %v505 = vmul.f32 %v433, 0.01
  %v506 = vmul.f32 %v435, 0.01
  %v507 = vmul.f32 %v438, 0.01
  %v508 = vmul.f32 %v440, 0.01
  %v509 = vmul.f32 %v443, 0.01
  %v510 = vmul.f32 %v445, 0.01
  %v511 = vsel %vm447, %v368, %v479
  %v512 = vsel %vm448, %v370, %v480
  %v513 = vsel %vm449, %v373, %v481
  %v514 = vsel %vm450, %v375, %v482
  %v515 = vsel %vm451, %v378, %v483
  %v516 = vsel %vm452, %v380, %v484
  %v517 = vsel %vm453, %v383, %v485
  %v518 = vsel %vm454, %v385, %v486
  %v519 = vsel %vm455, %v388, %v487
  %v520 = vsel %vm456, %v390, %v488
  %v521 = vsel %vm457, %v393, %v489
  %v522 = vsel %vm458, %v395, %v490
  %v523 = vsel %vm459, %v398, %v491
  %v524 = vsel %vm460, %v400, %v492
  %v525 = vsel %vm461, %v403, %v493
  %v526 = vsel %vm462, %v405, %v494
  %v527 = vsel %vm463, %v408, %v495
  %v528 = vsel %vm464, %v410, %v496
  %v529 = vsel %vm465, %v413, %v497
  %v530 = vsel %vm466, %v415, %v498
  %v531 = vsel %vm467, %v418, %v499
  %v532 = vsel %vm468, %v420, %v500
  %v533 = vsel %vm469, %v423, %v501
  %v534 = vsel %vm470, %v425, %v502
  %v535 = vsel %vm471, %v428, %v503
  %v536 = vsel %vm472, %v430, %v504
  %v537 = vsel %vm473, %v433, %v505
  %v538 = vsel %vm474, %v435, %v506
  %v539 = vsel %vm475, %v438, %v507
  %v540 = vsel %vm476, %v440, %v508
  %v541 = vsel %vm477, %v443, %v509
  %v542 = vsel %vm478, %v445, %v510
  %v543 = vpack.c.bf16 %v511, %v511
  %v544 = vpack.c.bf16 %v512, %v512
  %v545 = vpack.c.bf16 %v513, %v513
  %v546 = vpack.c.bf16 %v514, %v514
  %v547 = vpack.c.bf16 %v515, %v515
  %v548 = vpack.c.bf16 %v516, %v516
  %v549 = vpack.c.bf16 %v517, %v517
  %v550 = vpack.c.bf16 %v518, %v518
  %v551 = vpack.c.bf16 %v519, %v519
  %v552 = vpack.c.bf16 %v520, %v520
  %v553 = vpack.c.bf16 %v521, %v521
  %v554 = vpack.c.bf16 %v522, %v522
  %v555 = vpack.c.bf16 %v523, %v523
  %v556 = vpack.c.bf16 %v524, %v524
  %v557 = vpack.c.bf16 %v525, %v525
  %v558 = vpack.c.bf16 %v526, %v526
  %v559 = vpack.c.bf16 %v527, %v527
  %v560 = vpack.c.bf16 %v528, %v528
  %v561 = vpack.c.bf16 %v529, %v529
  %v562 = vpack.c.bf16 %v530, %v530
  %v563 = vpack.c.bf16 %v531, %v531
  %v564 = vpack.c.bf16 %v532, %v532
  %v565 = vpack.c.bf16 %v533, %v533
  %v566 = vpack.c.bf16 %v534, %v534
  %v567 = vpack.c.bf16 %v535, %v535
  %v568 = vpack.c.bf16 %v536, %v536
  %v569 = vpack.c.bf16 %v537, %v537
  %v570 = vpack.c.bf16 %v538, %v538
  %v571 = vpack.c.bf16 %v539, %v539
  %v572 = vpack.c.bf16 %v540, %v540
  %v573 = vpack.c.bf16 %v541, %v541
  %v574 = vpack.c.bf16 %v542, %v542
  %575 = vst [vmem:[#allocation2] sm:$0xf] %v543
  %576 = vst [vmem:[#allocation2 + $0x4] sm:$0xf] %v544
  %577 = vst [vmem:[#allocation2 + $0x8] sm:$0xf] %v545
  %578 = vst [vmem:[#allocation2 + $0xc] sm:$0xf] %v546
  %579 = vst [vmem:[#allocation2 + $0x10] sm:$0xf] %v547
  %580 = vst [vmem:[#allocation2 + $0x14] sm:$0xf] %v548
  %581 = vst [vmem:[#allocation2 + $0x18] sm:$0xf] %v549
  %582 = vst [vmem:[#allocation2 + $0x1c] sm:$0xf] %v550
  %583 = vst [vmem:[#allocation2 + $0x20] sm:$0xf] %v551
  %584 = vst [vmem:[#allocation2 + $0x24] sm:$0xf] %v552
  %585 = vst [vmem:[#allocation2 + $0x28] sm:$0xf] %v553
  %586 = vst [vmem:[#allocation2 + $0x2c] sm:$0xf] %v554
  %587 = vst [vmem:[#allocation2 + $0x30] sm:$0xf] %v555
  %588 = vst [vmem:[#allocation2 + $0x34] sm:$0xf] %v556
  %589 = vst [vmem:[#allocation2 + $0x38] sm:$0xf] %v557
  %590 = vst [vmem:[#allocation2 + $0x3c] sm:$0xf] %v558
  %591 = vst [vmem:[#allocation2 + $0x40] sm:$0xf] %v559
  %592 = vst [vmem:[#allocation2 + $0x44] sm:$0xf] %v560
  %593 = vst [vmem:[#allocation2 + $0x48] sm:$0xf] %v561
  %594 = vst [vmem:[#allocation2 + $0x4c] sm:$0xf] %v562
  %595 = vst [vmem:[#allocation2 + $0x50] sm:$0xf] %v563
  %596 = vst [vmem:[#allocation2 + $0x54] sm:$0xf] %v564
  %597 = vst [vmem:[#allocation2 + $0x58] sm:$0xf] %v565
  %598 = vst [vmem:[#allocation2 + $0x5c] sm:$0xf] %v566
  %599 = vst [vmem:[#allocation2 + $0x60] sm:$0xf] %v567
  %600 = vst [vmem:[#allocation2 + $0x64] sm:$0xf] %v568
  %601 = vst [vmem:[#allocation2 + $0x68] sm:$0xf] %v569
  %602 = vst [vmem:[#allocation2 + $0x6c] sm:$0xf] %v570
  %603 = vst [vmem:[#allocation2 + $0x70] sm:$0xf] %v571
  %604 = vst [vmem:[#allocation2 + $0x74] sm:$0xf] %v572
  %605 = vst [vmem:[#allocation2 + $0x78] sm:$0xf] %v573
  %606 = vst [vmem:[#allocation2 + $0x7c] sm:$0xf] %v574
  %s607 = scalar_lea.vmem %s4, 192
  %s608 = scalar_lea.vmem [#allocation4], 192
  %s609 = scalar_lea.sflag [#allocation6], 1
  // Predicated region
  $region72: #{leaky_residual_approximator.2} parent=0 // pred_check
    _
  $region73: #{leaky_residual_approximator.2} parent=0 // pred_check_branch
    %611 = sbr.rel (0) target = $region75
  $region74: #{leaky_residual_approximator.2} parent=0 // pred_region
    loop: start=0, step=1, limit=1
    $region76: #{leaky_residual_approximator.2} parent=74 // loop_pre_header
      _
    $region77: #{leaky_residual_approximator.2} parent=74 // loop_header
      %s613 = sphi 0, %s617
      %p614 = scmp.ge.s32.totalorder %s613, 1
      %s618 = sphi %s607, %s607
      %s619 = sphi %s608, %s608
    $region78: #{leaky_residual_approximator.2} parent=74 // loop_header_branch
      %616 = sbr.rel (%p614) target = $region82
    $region79: #{leaky_residual_approximator.2} parent=74 // loop_body
      %v620 = vld [vmem:[%s618] sm:$0xff]
      %621 = vst [vmem:[%s619] sm:$0xff] %v620
      %v622 = vld [vmem:[%s618 + $0x8] sm:$0xff]
      %623 = vst [vmem:[%s619 + $0x8] sm:$0xff] %v622
      %v624 = vld [vmem:[%s618 + $0x10] sm:$0xff]
      %625 = vst [vmem:[%s619 + $0x10] sm:$0xff] %v624
      %v626 = vld [vmem:[%s618 + $0x18] sm:$0xff]
      %627 = vst [vmem:[%s619 + $0x18] sm:$0xff] %v626
      %v628 = vld [vmem:[%s618 + $0x20] sm:$0xff]
      %629 = vst [vmem:[%s619 + $0x20] sm:$0xff] %v628
      %v630 = vld [vmem:[%s618 + $0x28] sm:$0xff]
      %631 = vst [vmem:[%s619 + $0x28] sm:$0xff] %v630
      %v632 = vld [vmem:[%s618 + $0x30] sm:$0xff]
      %633 = vst [vmem:[%s619 + $0x30] sm:$0xff] %v632
      %v634 = vld [vmem:[%s618 + $0x38] sm:$0xff]
      %635 = vst [vmem:[%s619 + $0x38] sm:$0xff] %v634
      %v636 = vld [vmem:[%s618 + $0x40] sm:$0xff]
      %637 = vst [vmem:[%s619 + $0x40] sm:$0xff] %v636
      %v638 = vld [vmem:[%s618 + $0x48] sm:$0xff]
      %639 = vst [vmem:[%s619 + $0x48] sm:$0xff] %v638
      %v640 = vld [vmem:[%s618 + $0x50] sm:$0xff]
      %641 = vst [vmem:[%s619 + $0x50] sm:$0xff] %v640
      %v642 = vld [vmem:[%s618 + $0x58] sm:$0xff]
      %643 = vst [vmem:[%s619 + $0x58] sm:$0xff] %v642
      %v644 = vld [vmem:[%s618 + $0x60] sm:$0xff]
      %645 = vst [vmem:[%s619 + $0x60] sm:$0xff] %v644
      %v646 = vld [vmem:[%s618 + $0x68] sm:$0xff]
      %647 = vst [vmem:[%s619 + $0x68] sm:$0xff] %v646
      %v648 = vld [vmem:[%s618 + $0x70] sm:$0xff]
      %649 = vst [vmem:[%s619 + $0x70] sm:$0xff] %v648
      %v650 = vld [vmem:[%s618 + $0x78] sm:$0xff]
      %651 = vst [vmem:[%s619 + $0x78] sm:$0xff] %v650
      %v652 = vld [vmem:[%s618 + $0x80] sm:$0xff]
      %653 = vst [vmem:[%s619 + $0x80] sm:$0xff] %v652
      %v654 = vld [vmem:[%s618 + $0x88] sm:$0xff]
      %655 = vst [vmem:[%s619 + $0x88] sm:$0xff] %v654
      %v656 = vld [vmem:[%s618 + $0x90] sm:$0xff]
      %657 = vst [vmem:[%s619 + $0x90] sm:$0xff] %v656
      %v658 = vld [vmem:[%s618 + $0x98] sm:$0xff]
      %659 = vst [vmem:[%s619 + $0x98] sm:$0xff] %v658
      %v660 = vld [vmem:[%s618 + $0xa0] sm:$0xff]
      %661 = vst [vmem:[%s619 + $0xa0] sm:$0xff] %v660
      %v662 = vld [vmem:[%s618 + $0xa8] sm:$0xff]
      %663 = vst [vmem:[%s619 + $0xa8] sm:$0xff] %v662
      %v664 = vld [vmem:[%s618 + $0xb0] sm:$0xff]
      %665 = vst [vmem:[%s619 + $0xb0] sm:$0xff] %v664
      %v666 = vld [vmem:[%s618 + $0xb8] sm:$0xff]
      %667 = vst [vmem:[%s619 + $0xb8] sm:$0xff] %v666
    $region80: #{leaky_residual_approximator.2} parent=74 // loop_footer
      %s617 = sadd.s32 1, %s613
    $region81: #{leaky_residual_approximator.2} parent=74 // loop_footer_branch
      %612 = sbr.rel target = $region77
    $region82: #{leaky_residual_approximator.2} parent=74 // loop_exit
      _
  $region75: #{leaky_residual_approximator.2} parent=0 // pred_fallthru
    _
  // Predicated region
  $region83: #{leaky_residual_approximator.2} parent=0 // pred_check
    _
  $region84: #{leaky_residual_approximator.2} parent=0 // pred_check_branch
    %669 = sbr.rel target = $region86
  $region85: #{leaky_residual_approximator.2} parent=0 // pred_region
    _
  $region86: #{leaky_residual_approximator.2} parent=0 // pred_fallthru
    _
  // Predicated region
  $region87: #{leaky_residual_approximator.2} parent=0 // pred_check
    _
  $region88: #{leaky_residual_approximator.2} parent=0 // pred_check_branch
    %672 = sbr.rel (0) target = $region90
  $region89: #{leaky_residual_approximator.2} parent=0 // pred_region
    %673 = vsyncadd %s609, 3072
  $region90: #{leaky_residual_approximator.2} parent=0 // pred_fallthru
    _
  %s674 = scalar_lea.vmem %s5, 192
  %s675 = scalar_lea.vmem [#allocation5], 192
  %s676 = scalar_lea.sflag [#allocation6], 3
  // Predicated region
  $region91: #{leaky_residual_approximator.2} parent=0 // pred_check
    _
  $region92: #{leaky_residual_approximator.2} parent=0 // pred_check_branch
    %678 = sbr.rel (0) target = $region94
  $region93: #{leaky_residual_approximator.2} parent=0 // pred_region
    loop: start=0, step=1, limit=1
    $region95: #{leaky_residual_approximator.2} parent=93 // loop_pre_header
      _
    $region96: #{leaky_residual_approximator.2} parent=93 // loop_header
      %s680 = sphi 0, %s684
      %p681 = scmp.ge.s32.totalorder %s680, 1
      %s685 = sphi %s674, %s674
      %s686 = sphi %s675, %s675
    $region97: #{leaky_residual_approximator.2} parent=93 // loop_header_branch
      %683 = sbr.rel (%p681) target = $region101
    $region98: #{leaky_residual_approximator.2} parent=93 // loop_body
      %v687 = vld [vmem:[%s685] sm:$0xff]
      %688 = vst [vmem:[%s686] sm:$0xff] %v687
      %v689 = vld [vmem:[%s685 + $0x8] sm:$0xff]
      %690 = vst [vmem:[%s686 + $0x8] sm:$0xff] %v689
      %v691 = vld [vmem:[%s685 + $0x10] sm:$0xff]
      %692 = vst [vmem:[%s686 + $0x10] sm:$0xff] %v691
      %v693 = vld [vmem:[%s685 + $0x18] sm:$0xff]
      %694 = vst [vmem:[%s686 + $0x18] sm:$0xff] %v693
      %v695 = vld [vmem:[%s685 + $0x20] sm:$0xff]
      %696 = vst [vmem:[%s686 + $0x20] sm:$0xff] %v695
      %v697 = vld [vmem:[%s685 + $0x28] sm:$0xff]
      %698 = vst [vmem:[%s686 + $0x28] sm:$0xff] %v697
      %v699 = vld [vmem:[%s685 + $0x30] sm:$0xff]
      %700 = vst [vmem:[%s686 + $0x30] sm:$0xff] %v699
      %v701 = vld [vmem:[%s685 + $0x38] sm:$0xff]
      %702 = vst [vmem:[%s686 + $0x38] sm:$0xff] %v701
      %v703 = vld [vmem:[%s685 + $0x40] sm:$0xff]
      %704 = vst [vmem:[%s686 + $0x40] sm:$0xff] %v703
      %v705 = vld [vmem:[%s685 + $0x48] sm:$0xff]
      %706 = vst [vmem:[%s686 + $0x48] sm:$0xff] %v705
      %v707 = vld [vmem:[%s685 + $0x50] sm:$0xff]
      %708 = vst [vmem:[%s686 + $0x50] sm:$0xff] %v707
      %v709 = vld [vmem:[%s685 + $0x58] sm:$0xff]
      %710 = vst [vmem:[%s686 + $0x58] sm:$0xff] %v709
      %v711 = vld [vmem:[%s685 + $0x60] sm:$0xff]
      %712 = vst [vmem:[%s686 + $0x60] sm:$0xff] %v711
      %v713 = vld [vmem:[%s685 + $0x68] sm:$0xff]
      %714 = vst [vmem:[%s686 + $0x68] sm:$0xff] %v713
      %v715 = vld [vmem:[%s685 + $0x70] sm:$0xff]
      %716 = vst [vmem:[%s686 + $0x70] sm:$0xff] %v715
      %v717 = vld [vmem:[%s685 + $0x78] sm:$0xff]
      %718 = vst [vmem:[%s686 + $0x78] sm:$0xff] %v717
      %v719 = vld [vmem:[%s685 + $0x80] sm:$0xff]
      %720 = vst [vmem:[%s686 + $0x80] sm:$0xff] %v719
      %v721 = vld [vmem:[%s685 + $0x88] sm:$0xff]
      %722 = vst [vmem:[%s686 + $0x88] sm:$0xff] %v721
      %v723 = vld [vmem:[%s685 + $0x90] sm:$0xff]
      %724 = vst [vmem:[%s686 + $0x90] sm:$0xff] %v723
      %v725 = vld [vmem:[%s685 + $0x98] sm:$0xff]
      %726 = vst [vmem:[%s686 + $0x98] sm:$0xff] %v725
      %v727 = vld [vmem:[%s685 + $0xa0] sm:$0xff]
      %728 = vst [vmem:[%s686 + $0xa0] sm:$0xff] %v727
      %v729 = vld [vmem:[%s685 + $0xa8] sm:$0xff]
      %730 = vst [vmem:[%s686 + $0xa8] sm:$0xff] %v729
      %v731 = vld [vmem:[%s685 + $0xb0] sm:$0xff]
      %732 = vst [vmem:[%s686 + $0xb0] sm:$0xff] %v731
      %v733 = vld [vmem:[%s685 + $0xb8] sm:$0xff]
      %734 = vst [vmem:[%s686 + $0xb8] sm:$0xff] %v733
    $region99: #{leaky_residual_approximator.2} parent=93 // loop_footer
      %s684 = sadd.s32 1, %s680
    $region100: #{leaky_residual_approximator.2} parent=93 // loop_footer_branch
      %679 = sbr.rel target = $region96
    $region101: #{leaky_residual_approximator.2} parent=93 // loop_exit
      _
  $region94: #{leaky_residual_approximator.2} parent=0 // pred_fallthru
    _
  // Predicated region
  $region102: #{leaky_residual_approximator.2} parent=0 // pred_check
    _
  $region103: #{leaky_residual_approximator.2} parent=0 // pred_check_branch
    %736 = sbr.rel target = $region105
  $region104: #{leaky_residual_approximator.2} parent=0 // pred_region
    _
  $region105: #{leaky_residual_approximator.2} parent=0 // pred_fallthru
    _
  // Predicated region
  $region106: #{leaky_residual_approximator.2} parent=0 // pred_check
    _
  $region107: #{leaky_residual_approximator.2} parent=0 // pred_check_branch
    %739 = sbr.rel (0) target = $region109
  $region108: #{leaky_residual_approximator.2} parent=0 // pred_region
    %740 = vsyncadd %s676, 3072
  $region109: #{leaky_residual_approximator.2} parent=0 // pred_fallthru
    _
  %s741 = smul.u32 4, 16
  %s742 = smul.u32 %s741, 3
  %s743 = sshll.u32 %s742, 4
  %744 = dma.done [#allocation6], %s743
  %s745 = sshll.u32 %s742, 4
  %746 = dma.done %s97, %s745
  %v747 = vld [vmem:[#allocation5] sm:$0xff]
  %v748 = vld [vmem:[#allocation5 + $0x8] sm:$0xf]
  %v749 = vld [vmem:[#allocation5 + $0xc] sm:$0xff]
  %v750 = vld [vmem:[#allocation5 + $0x14] sm:$0xf]
  %v751 = vld [vmem:[#allocation5 + $0x18] sm:$0xff]
  %v752 = vld [vmem:[#allocation5 + $0x20] sm:$0xf]
  %v753 = vld [vmem:[#allocation5 + $0x24] sm:$0xff]
  %v754 = vld [vmem:[#allocation5 + $0x2c] sm:$0xf]
  %v755 = vld [vmem:[#allocation5 + $0x30] sm:$0xff]
  %v756 = vld [vmem:[#allocation5 + $0x38] sm:$0xf]
  %v757 = vld [vmem:[#allocation5 + $0x3c] sm:$0xff]
  %v758 = vld [vmem:[#allocation5 + $0x44] sm:$0xf]
  %v759 = vld [vmem:[#allocation5 + $0x48] sm:$0xff]
  %v760 = vld [vmem:[#allocation5 + $0x50] sm:$0xf]
  %v761 = vld [vmem:[#allocation5 + $0x54] sm:$0xff]
  %v762 = vld [vmem:[#allocation5 + $0x5c] sm:$0xf]
  %v763 = vld [vmem:[#allocation5 + $0x60] sm:$0xff]
  %v764 = vld [vmem:[#allocation5 + $0x68] sm:$0xf]
  %v765 = vld [vmem:[#allocation5 + $0x6c] sm:$0xff]
  %v766 = vld [vmem:[#allocation5 + $0x74] sm:$0xf]
  %v767 = vld [vmem:[#allocation5 + $0x78] sm:$0xff]
  %v768 = vld [vmem:[#allocation5 + $0x80] sm:$0xf]
  %v769 = vld [vmem:[#allocation5 + $0x84] sm:$0xff]
  %v770 = vld [vmem:[#allocation5 + $0x8c] sm:$0xf]
  %v771 = vld [vmem:[#allocation5 + $0x90] sm:$0xff]
  %v772 = vld [vmem:[#allocation5 + $0x98] sm:$0xf]
  %v773 = vld [vmem:[#allocation5 + $0x9c] sm:$0xff]
  %v774 = vld [vmem:[#allocation5 + $0xa4] sm:$0xf]
  %v775 = vld [vmem:[#allocation5 + $0xa8] sm:$0xff]
  %v776 = vld [vmem:[#allocation5 + $0xb0] sm:$0xf]
  %v777 = vld [vmem:[#allocation5 + $0xb4] sm:$0xff]
  %v778 = vld [vmem:[#allocation5 + $0xbc] sm:$0xf]
  %v779 = vld [vmem:[#allocation2] sm:$0xf]
  %v780 = vld [vmem:[#allocation2 + $0x4] sm:$0xf]
  %v781 = vld [vmem:[#allocation2 + $0x8] sm:$0xf]
  %v782 = vld [vmem:[#allocation2 + $0xc] sm:$0xf]
  %v783 = vld [vmem:[#allocation2 + $0x10] sm:$0xf]
  %v784 = vld [vmem:[#allocation2 + $0x14] sm:$0xf]
  %v785 = vld [vmem:[#allocation2 + $0x18] sm:$0xf]
  %v786 = vld [vmem:[#allocation2 + $0x1c] sm:$0xf]
  %v787 = vld [vmem:[#allocation2 + $0x20] sm:$0xf]
  %v788 = vld [vmem:[#allocation2 + $0x24] sm:$0xf]
  %v789 = vld [vmem:[#allocation2 + $0x28] sm:$0xf]
  %v790 = vld [vmem:[#allocation2 + $0x2c] sm:$0xf]
  %v791 = vld [vmem:[#allocation2 + $0x30] sm:$0xf]
  %v792 = vld [vmem:[#allocation2 + $0x34] sm:$0xf]
  %v793 = vld [vmem:[#allocation2 + $0x38] sm:$0xf]
  %v794 = vld [vmem:[#allocation2 + $0x3c] sm:$0xf]
  %v795 = vld [vmem:[#allocation2 + $0x40] sm:$0xf]
  %v796 = vld [vmem:[#allocation2 + $0x44] sm:$0xf]
  %v797 = vld [vmem:[#allocation2 + $0x48] sm:$0xf]
  %v798 = vld [vmem:[#allocation2 + $0x4c] sm:$0xf]
  %v799 = vld [vmem:[#allocation2 + $0x50] sm:$0xf]
  %v800 = vld [vmem:[#allocation2 + $0x54] sm:$0xf]
  %v801 = vld [vmem:[#allocation2 + $0x58] sm:$0xf]
  %v802 = vld [vmem:[#allocation2 + $0x5c] sm:$0xf]
  %v803 = vld [vmem:[#allocation2 + $0x60] sm:$0xf]
  %v804 = vld [vmem:[#allocation2 + $0x64] sm:$0xf]
  %v805 = vld [vmem:[#allocation2 + $0x68] sm:$0xf]
  %v806 = vld [vmem:[#allocation2 + $0x6c] sm:$0xf]
  %v807 = vld [vmem:[#allocation2 + $0x70] sm:$0xf]
  %v808 = vld [vmem:[#allocation2 + $0x74] sm:$0xf]
  %v809 = vld [vmem:[#allocation2 + $0x78] sm:$0xf]
  %v810 = vld [vmem:[#allocation2 + $0x7c] sm:$0xf]
  %v811 = vld [vmem:[#allocation4] sm:$0xff]
  %v812 = vld [vmem:[#allocation4 + $0x8] sm:$0xf]
  %v813 = vld [vmem:[#allocation4 + $0xc] sm:$0xff]
  %v814 = vld [vmem:[#allocation4 + $0x14] sm:$0xf]
  %v815 = vld [vmem:[#allocation4 + $0x18] sm:$0xff]
  %v816 = vld [vmem:[#allocation4 + $0x20] sm:$0xf]
  %v817 = vld [vmem:[#allocation4 + $0x24] sm:$0xff]
  %v818 = vld [vmem:[#allocation4 + $0x2c] sm:$0xf]
  %v819 = vld [vmem:[#allocation4 + $0x30] sm:$0xff]
  %v820 = vld [vmem:[#allocation4 + $0x38] sm:$0xf]
  %v821 = vld [vmem:[#allocation4 + $0x3c] sm:$0xff]
  %v822 = vld [vmem:[#allocation4 + $0x44] sm:$0xf]
  %v823 = vld [vmem:[#allocation4 + $0x48] sm:$0xff]
  %v824 = vld [vmem:[#allocation4 + $0x50] sm:$0xf]
  %v825 = vld [vmem:[#allocation4 + $0x54] sm:$0xff]
  %v826 = vld [vmem:[#allocation4 + $0x5c] sm:$0xf]
  %v827 = vld [vmem:[#allocation4 + $0x60] sm:$0xff]
  %v828 = vld [vmem:[#allocation4 + $0x68] sm:$0xf]
  %v829 = vld [vmem:[#allocation4 + $0x6c] sm:$0xff]
  %v830 = vld [vmem:[#allocation4 + $0x74] sm:$0xf]
  %v831 = vld [vmem:[#allocation4 + $0x78] sm:$0xff]
  %v832 = vld [vmem:[#allocation4 + $0x80] sm:$0xf]
  %v833 = vld [vmem:[#allocation4 + $0x84] sm:$0xff]
  %v834 = vld [vmem:[#allocation4 + $0x8c] sm:$0xf]
  %v835 = vld [vmem:[#allocation4 + $0x90] sm:$0xff]
  %v836 = vld [vmem:[#allocation4 + $0x98] sm:$0xf]
  %v837 = vld [vmem:[#allocation4 + $0x9c] sm:$0xff]
  %v838 = vld [vmem:[#allocation4 + $0xa4] sm:$0xf]
  %v839 = vld [vmem:[#allocation4 + $0xa8] sm:$0xff]
  %v840 = vld [vmem:[#allocation4 + $0xb0] sm:$0xf]
  %v841 = vld [vmem:[#allocation4 + $0xb4] sm:$0xff]
  %v842 = vld [vmem:[#allocation4 + $0xbc] sm:$0xf]
  %v843 = vld [vmem:[%s6] sm:$0x7]
  %v845 = vperm.slane %v843, 0
  %v846 = vperm.slane %v843, 1
  %v847 = vperm.slane %v843, 2
  %v883 = vunpack.c.l.b16 %v779
  %v884 = vunpack.c.l.b16 %v780
  %v885 = vunpack.c.l.b16 %v781
  %v886 = vunpack.c.l.b16 %v782
  %v887 = vunpack.c.l.b16 %v783
  %v888 = vunpack.c.l.b16 %v784
  %v889 = vunpack.c.l.b16 %v785
  %v890 = vunpack.c.l.b16 %v786
  %v891 = vunpack.c.l.b16 %v787
  %v892 = vunpack.c.l.b16 %v788
  %v893 = vunpack.c.l.b16 %v789
  %v894 = vunpack.c.l.b16 %v790
  %v895 = vunpack.c.l.b16 %v791
  %v896 = vunpack.c.l.b16 %v792
  %v897 = vunpack.c.l.b16 %v793
  %v898 = vunpack.c.l.b16 %v794
  %v899 = vunpack.c.l.b16 %v795
  %v900 = vunpack.c.l.b16 %v796
  %v901 = vunpack.c.l.b16 %v797
  %v902 = vunpack.c.l.b16 %v798
  %v903 = vunpack.c.l.b16 %v799
  %v904 = vunpack.c.l.b16 %v800
  %v905 = vunpack.c.l.b16 %v801
  %v906 = vunpack.c.l.b16 %v802
  %v907 = vunpack.c.l.b16 %v803
  %v908 = vunpack.c.l.b16 %v804
  %v909 = vunpack.c.l.b16 %v805
  %v910 = vunpack.c.l.b16 %v806
  %v911 = vunpack.c.l.b16 %v807
  %v912 = vunpack.c.l.b16 %v808
  %v913 = vunpack.c.l.b16 %v809
  %v914 = vunpack.c.l.b16 %v810
  %v915 = vpack.c.b16 %v884, %v883
  %v916 = vpack.c.b16 %v886, %v885
  %v917 = vpack.c.b16 %v888, %v887
  %v918 = vpack.c.b16 %v890, %v889
  %v919 = vpack.c.b16 %v892, %v891
  %v920 = vpack.c.b16 %v894, %v893
  %v921 = vpack.c.b16 %v896, %v895
  %v922 = vpack.c.b16 %v898, %v897
  %v923 = vpack.c.b16 %v900, %v899
  %v924 = vpack.c.b16 %v902, %v901
  %v925 = vpack.c.b16 %v904, %v903
  %v926 = vpack.c.b16 %v906, %v905
  %v927 = vpack.c.b16 %v908, %v907
  %v928 = vpack.c.b16 %v910, %v909
  %v929 = vpack.c.b16 %v912, %v911
  %v930 = vpack.c.b16 %v914, %v913
  %v979 = vunpack.c.l.b16 %v811
  %v980 = vunpack.c.h.b16 %v811
  %v981 = vunpack.c.l.b16 %v812
  %v982 = vunpack.c.l.b16 %v813
  %v983 = vunpack.c.h.b16 %v813
  %v984 = vunpack.c.l.b16 %v814
  %v985 = vunpack.c.l.b16 %v815
  %v986 = vunpack.c.h.b16 %v815
  %v987 = vunpack.c.l.b16 %v816
  %v988 = vunpack.c.l.b16 %v817
  %v989 = vunpack.c.h.b16 %v817
  %v990 = vunpack.c.l.b16 %v818
  %v991 = vunpack.c.l.b16 %v819
  %v992 = vunpack.c.h.b16 %v819
  %v993 = vunpack.c.l.b16 %v820
  %v994 = vunpack.c.l.b16 %v821
  %v995 = vunpack.c.h.b16 %v821
  %v996 = vunpack.c.l.b16 %v822
  %v997 = vunpack.c.l.b16 %v823
  %v998 = vunpack.c.h.b16 %v823
  %v999 = vunpack.c.l.b16 %v824
  %v1000 = vunpack.c.l.b16 %v825
  %v1001 = vunpack.c.h.b16 %v825
  %v1002 = vunpack.c.l.b16 %v826
  %v1003 = vunpack.c.l.b16 %v827
  %v1004 = vunpack.c.h.b16 %v827
  %v1005 = vunpack.c.l.b16 %v828
  %v1006 = vunpack.c.l.b16 %v829
  %v1007 = vunpack.c.h.b16 %v829
  %v1008 = vunpack.c.l.b16 %v830
  %v1009 = vunpack.c.l.b16 %v831
  %v1010 = vunpack.c.h.b16 %v831
  %v1011 = vunpack.c.l.b16 %v832
  %v1012 = vunpack.c.l.b16 %v833
  %v1013 = vunpack.c.h.b16 %v833
  %v1014 = vunpack.c.l.b16 %v834
  %v1015 = vunpack.c.l.b16 %v835
  %v1016 = vunpack.c.h.b16 %v835
  %v1017 = vunpack.c.l.b16 %v836
  %v1018 = vunpack.c.l.b16 %v837
  %v1019 = vunpack.c.h.b16 %v837
  %v1020 = vunpack.c.l.b16 %v838
  %v1021 = vunpack.c.l.b16 %v839
  %v1022 = vunpack.c.h.b16 %v839
  %v1023 = vunpack.c.l.b16 %v840
  %v1024 = vunpack.c.l.b16 %v841
  %v1025 = vunpack.c.h.b16 %v841
  %v1026 = vunpack.c.l.b16 %v842
  %v1027 = vpack.c.b16 %v982, %v979
  %v1028 = vpack.c.b16 %v983, %v980
  %v1029 = vpack.c.b16 %v984, %v981
  %v1030 = vpack.c.b16 %v988, %v985
  %v1031 = vpack.c.b16 %v989, %v986
  %v1032 = vpack.c.b16 %v990, %v987
  %v1033 = vpack.c.b16 %v994, %v991
  %v1034 = vpack.c.b16 %v995, %v992
  %v1035 = vpack.c.b16 %v996, %v993
  %v1036 = vpack.c.b16 %v1000, %v997
  %v1037 = vpack.c.b16 %v1001, %v998
  %v1038 = vpack.c.b16 %v1002, %v999
  %v1039 = vpack.c.b16 %v1006, %v1003
  %v1040 = vpack.c.b16 %v1007, %v1004
  %v1041 = vpack.c.b16 %v1008, %v1005
  %v1042 = vpack.c.b16 %v1012, %v1009
  %v1043 = vpack.c.b16 %v1013, %v1010
  %v1044 = vpack.c.b16 %v1014, %v1011
  %v1045 = vpack.c.b16 %v1018, %v1015
  %v1046 = vpack.c.b16 %v1019, %v1016
  %v1047 = vpack.c.b16 %v1020, %v1017
  %v1048 = vpack.c.b16 %v1024, %v1021
  %v1049 = vpack.c.b16 %v1025, %v1022
  %v1050 = vpack.c.b16 %v1026, %v1023
  %1075 = vmatpush.bf16.msra.mxu0 %v1048
  %1076 = vmatpush.bf16.msra.mxu0 %v1045
  %1077 = vmatpush.bf16.msra.mxu0 %v1042
  %1078 = vmatpush.bf16.msra.mxu0 %v1039
  %1079 = vmatpush.bf16.msra.mxu0 %v1036
  %1080 = vmatpush.bf16.msra.mxu0 %v1033
  %1081 = vmatpush.bf16.msra.mxu0 %v1030
  %1082 = vmatpush.bf16.msra.mxu0 %v1027
  %1083 = vmatmul.bf16.gmra.mxu0 %v915
  %v1084 = vpop.f32.mrf.mxu0
  %v1085 = vadd.f32 %v845, %v1084
  %v1086 = vpop.f32.mrf.mxu0
  %v1087 = vadd.f32 %v845, %v1086
  %1088 = vmatmul.bf16.gmra.mxu0 %v916
  %v1089 = vpop.f32.mrf.mxu0
  %v1090 = vadd.f32 %v845, %v1089
  %v1091 = vpop.f32.mrf.mxu0
  %v1092 = vadd.f32 %v845, %v1091
  %1093 = vmatmul.bf16.gmra.mxu0 %v917
  %v1094 = vpop.f32.mrf.mxu0
  %v1095 = vadd.f32 %v845, %v1094
  %v1096 = vpop.f32.mrf.mxu0
  %v1097 = vadd.f32 %v845, %v1096
  %1098 = vmatmul.bf16.gmra.mxu0 %v918
  %v1099 = vpop.f32.mrf.mxu0
  %v1100 = vadd.f32 %v845, %v1099
  %v1101 = vpop.f32.mrf.mxu0
  %v1102 = vadd.f32 %v845, %v1101
  %1103 = vmatmul.bf16.gmra.mxu0 %v919
  %v1104 = vpop.f32.mrf.mxu0
  %v1105 = vadd.f32 %v845, %v1104
  %v1106 = vpop.f32.mrf.mxu0
  %v1107 = vadd.f32 %v845, %v1106
  %1108 = vmatmul.bf16.gmra.mxu0 %v920
  %v1109 = vpop.f32.mrf.mxu0
  %v1110 = vadd.f32 %v845, %v1109
  %v1111 = vpop.f32.mrf.mxu0
  %v1112 = vadd.f32 %v845, %v1111
  %1113 = vmatmul.bf16.gmra.mxu0 %v921
  %v1114 = vpop.f32.mrf.mxu0
  %v1115 = vadd.f32 %v845, %v1114
  %v1116 = vpop.f32.mrf.mxu0
  %v1117 = vadd.f32 %v845, %v1116
  %1118 = vmatmul.bf16.gmra.mxu0 %v922
  %v1119 = vpop.f32.mrf.mxu0
  %v1120 = vadd.f32 %v845, %v1119
  %v1121 = vpop.f32.mrf.mxu0
  %v1122 = vadd.f32 %v845, %v1121
  %1123 = vmatmul.bf16.gmra.mxu0 %v923
  %v1124 = vpop.f32.mrf.mxu0
  %v1125 = vadd.f32 %v845, %v1124
  %v1126 = vpop.f32.mrf.mxu0
  %v1127 = vadd.f32 %v845, %v1126
  %1128 = vmatmul.bf16.gmra.mxu0 %v924
  %v1129 = vpop.f32.mrf.mxu0
  %v1130 = vadd.f32 %v845, %v1129
  %v1131 = vpop.f32.mrf.mxu0
  %v1132 = vadd.f32 %v845, %v1131
  %1133 = vmatmul.bf16.gmra.mxu0 %v925
  %v1134 = vpop.f32.mrf.mxu0
  %v1135 = vadd.f32 %v845, %v1134
  %v1136 = vpop.f32.mrf.mxu0
  %v1137 = vadd.f32 %v845, %v1136
  %1138 = vmatmul.bf16.gmra.mxu0 %v926
  %v1139 = vpop.f32.mrf.mxu0
  %v1140 = vadd.f32 %v845, %v1139
  %v1141 = vpop.f32.mrf.mxu0
  %v1142 = vadd.f32 %v845, %v1141
  %1143 = vmatmul.bf16.gmra.mxu0 %v927
  %v1144 = vpop.f32.mrf.mxu0
  %v1145 = vadd.f32 %v845, %v1144
  %v1146 = vpop.f32.mrf.mxu0
  %v1147 = vadd.f32 %v845, %v1146
  %1148 = vmatmul.bf16.gmra.mxu0 %v928
  %v1149 = vpop.f32.mrf.mxu0
  %v1150 = vadd.f32 %v845, %v1149
  %v1151 = vpop.f32.mrf.mxu0
  %v1152 = vadd.f32 %v845, %v1151
  %1153 = vmatmul.bf16.gmra.mxu0 %v929
  %v1154 = vpop.f32.mrf.mxu0
  %v1155 = vadd.f32 %v845, %v1154
  %v1156 = vpop.f32.mrf.mxu0
  %v1157 = vadd.f32 %v845, %v1156
  %1158 = vmatmul.bf16.gmra.mxu0 %v930
  %v1159 = vpop.f32.mrf.mxu0
  %v1160 = vadd.f32 %v845, %v1159
  %v1161 = vpop.f32.mrf.mxu0
  %v1162 = vadd.f32 %v845, %v1161
  %1163 = vdwg.mxu0
  %1164 = vmatpush.bf16.msra.mxu0 %v1049
  %1165 = vmatpush.bf16.msra.mxu0 %v1046
  %1166 = vmatpush.bf16.msra.mxu0 %v1043
  %1167 = vmatpush.bf16.msra.mxu0 %v1040
  %1168 = vmatpush.bf16.msra.mxu0 %v1037
  %1169 = vmatpush.bf16.msra.mxu0 %v1034
  %1170 = vmatpush.bf16.msra.mxu0 %v1031
  %1171 = vmatpush.bf16.msra.mxu0 %v1028
  %1172 = vmatmul.bf16.gmra.mxu0 %v915
  %v1173 = vpop.f32.mrf.mxu0
  %v1174 = vadd.f32 %v846, %v1173
  %v1175 = vpop.f32.mrf.mxu0
  %v1176 = vadd.f32 %v846, %v1175
  %1177 = vmatmul.bf16.gmra.mxu0 %v916
  %v1178 = vpop.f32.mrf.mxu0
  %v1179 = vadd.f32 %v846, %v1178
  %v1180 = vpop.f32.mrf.mxu0
  %v1181 = vadd.f32 %v846, %v1180
  %1182 = vmatmul.bf16.gmra.mxu0 %v917
  %v1183 = vpop.f32.mrf.mxu0
  %v1184 = vadd.f32 %v846, %v1183
  %v1185 = vpop.f32.mrf.mxu0
  %v1186 = vadd.f32 %v846, %v1185
  %1187 = vmatmul.bf16.gmra.mxu0 %v918
  %v1188 = vpop.f32.mrf.mxu0
  %v1189 = vadd.f32 %v846, %v1188
  %v1190 = vpop.f32.mrf.mxu0
  %v1191 = vadd.f32 %v846, %v1190
  %1192 = vmatmul.bf16.gmra.mxu0 %v919
  %v1193 = vpop.f32.mrf.mxu0
  %v1194 = vadd.f32 %v846, %v1193
  %v1195 = vpop.f32.mrf.mxu0
  %v1196 = vadd.f32 %v846, %v1195
  %1197 = vmatmul.bf16.gmra.mxu0 %v920
  %v1198 = vpop.f32.mrf.mxu0
  %v1199 = vadd.f32 %v846, %v1198
  %v1200 = vpop.f32.mrf.mxu0
  %v1201 = vadd.f32 %v846, %v1200
  %1202 = vmatmul.bf16.gmra.mxu0 %v921
  %v1203 = vpop.f32.mrf.mxu0
  %v1204 = vadd.f32 %v846, %v1203
  %v1205 = vpop.f32.mrf.mxu0
  %v1206 = vadd.f32 %v846, %v1205
  %1207 = vmatmul.bf16.gmra.mxu0 %v922
  %v1208 = vpop.f32.mrf.mxu0
  %v1209 = vadd.f32 %v846, %v1208
  %v1210 = vpop.f32.mrf.mxu0
  %v1211 = vadd.f32 %v846, %v1210
  %1212 = vmatmul.bf16.gmra.mxu0 %v923
  %v1213 = vpop.f32.mrf.mxu0
  %v1214 = vadd.f32 %v846, %v1213
  %v1215 = vpop.f32.mrf.mxu0
  %v1216 = vadd.f32 %v846, %v1215
  %1217 = vmatmul.bf16.gmra.mxu0 %v924
  %v1218 = vpop.f32.mrf.mxu0
  %v1219 = vadd.f32 %v846, %v1218
  %v1220 = vpop.f32.mrf.mxu0
  %v1221 = vadd.f32 %v846, %v1220
  %1222 = vmatmul.bf16.gmra.mxu0 %v925
  %v1223 = vpop.f32.mrf.mxu0
  %v1224 = vadd.f32 %v846, %v1223
  %v1225 = vpop.f32.mrf.mxu0
  %v1226 = vadd.f32 %v846, %v1225
  %1227 = vmatmul.bf16.gmra.mxu0 %v926
  %v1228 = vpop.f32.mrf.mxu0
  %v1229 = vadd.f32 %v846, %v1228
  %v1230 = vpop.f32.mrf.mxu0
  %v1231 = vadd.f32 %v846, %v1230
  %1232 = vmatmul.bf16.gmra.mxu0 %v927
  %v1233 = vpop.f32.mrf.mxu0
  %v1234 = vadd.f32 %v846, %v1233
  %v1235 = vpop.f32.mrf.mxu0
  %v1236 = vadd.f32 %v846, %v1235
  %1237 = vmatmul.bf16.gmra.mxu0 %v928
  %v1238 = vpop.f32.mrf.mxu0
  %v1239 = vadd.f32 %v846, %v1238
  %v1240 = vpop.f32.mrf.mxu0
  %v1241 = vadd.f32 %v846, %v1240
  %1242 = vmatmul.bf16.gmra.mxu0 %v929
  %v1243 = vpop.f32.mrf.mxu0
  %v1244 = vadd.f32 %v846, %v1243
  %v1245 = vpop.f32.mrf.mxu0
  %v1246 = vadd.f32 %v846, %v1245
  %1247 = vmatmul.bf16.gmra.mxu0 %v930
  %v1248 = vpop.f32.mrf.mxu0
  %v1249 = vadd.f32 %v846, %v1248
  %v1250 = vpop.f32.mrf.mxu0
  %v1251 = vadd.f32 %v846, %v1250
  %1252 = vdwg.mxu0
  %1253 = vmatpush.bf16.msra.mxu0 %v1050
  %1254 = vmatpush.bf16.msra.mxu0 %v1047
  %1255 = vmatpush.bf16.msra.mxu0 %v1044
  %1256 = vmatpush.bf16.msra.mxu0 %v1041
  %1257 = vmatpush.bf16.msra.mxu0 %v1038
  %1258 = vmatpush.bf16.msra.mxu0 %v1035
  %1259 = vmatpush.bf16.msra.mxu0 %v1032
  %1260 = vmatpush.bf16.msra.mxu0 %v1029
  %1261 = vmatmul.bf16.gmra.mxu0 %v915
  %v1262 = vpop.f32.mrf.mxu0
  %v1263 = vadd.f32 %v847, %v1262
  %v1264 = vpop.f32.mrf.mxu0
  %v1265 = vadd.f32 %v847, %v1264
  %1266 = vmatmul.bf16.gmra.mxu0 %v916
  %v1267 = vpop.f32.mrf.mxu0
  %v1268 = vadd.f32 %v847, %v1267
  %v1269 = vpop.f32.mrf.mxu0
  %v1270 = vadd.f32 %v847, %v1269
  %1271 = vmatmul.bf16.gmra.mxu0 %v917
  %v1272 = vpop.f32.mrf.mxu0
  %v1273 = vadd.f32 %v847, %v1272
  %v1274 = vpop.f32.mrf.mxu0
  %v1275 = vadd.f32 %v847, %v1274
  %1276 = vmatmul.bf16.gmra.mxu0 %v918
  %v1277 = vpop.f32.mrf.mxu0
  %v1278 = vadd.f32 %v847, %v1277
  %v1279 = vpop.f32.mrf.mxu0
  %v1280 = vadd.f32 %v847, %v1279
  %1281 = vmatmul.bf16.gmra.mxu0 %v919
  %v1282 = vpop.f32.mrf.mxu0
  %v1283 = vadd.f32 %v847, %v1282
  %v1284 = vpop.f32.mrf.mxu0
  %v1285 = vadd.f32 %v847, %v1284
  %1286 = vmatmul.bf16.gmra.mxu0 %v920
  %v1287 = vpop.f32.mrf.mxu0
  %v1288 = vadd.f32 %v847, %v1287
  %v1289 = vpop.f32.mrf.mxu0
  %v1290 = vadd.f32 %v847, %v1289
  %1291 = vmatmul.bf16.gmra.mxu0 %v921
  %v1292 = vpop.f32.mrf.mxu0
  %v1293 = vadd.f32 %v847, %v1292
  %v1294 = vpop.f32.mrf.mxu0
  %v1295 = vadd.f32 %v847, %v1294
  %1296 = vmatmul.bf16.gmra.mxu0 %v922
  %v1297 = vpop.f32.mrf.mxu0
  %v1298 = vadd.f32 %v847, %v1297
  %v1299 = vpop.f32.mrf.mxu0
  %v1300 = vadd.f32 %v847, %v1299
  %1301 = vmatmul.bf16.gmra.mxu0 %v923
  %v1302 = vpop.f32.mrf.mxu0
  %v1303 = vadd.f32 %v847, %v1302
  %v1304 = vpop.f32.mrf.mxu0
  %v1305 = vadd.f32 %v847, %v1304
  %1306 = vmatmul.bf16.gmra.mxu0 %v924
  %v1307 = vpop.f32.mrf.mxu0
  %v1308 = vadd.f32 %v847, %v1307
  %v1309 = vpop.f32.mrf.mxu0
  %v1310 = vadd.f32 %v847, %v1309
  %1311 = vmatmul.bf16.gmra.mxu0 %v925
  %v1312 = vpop.f32.mrf.mxu0
  %v1313 = vadd.f32 %v847, %v1312
  %v1314 = vpop.f32.mrf.mxu0
  %v1315 = vadd.f32 %v847, %v1314
  %1316 = vmatmul.bf16.gmra.mxu0 %v926
  %v1317 = vpop.f32.mrf.mxu0
  %v1318 = vadd.f32 %v847, %v1317
  %v1319 = vpop.f32.mrf.mxu0
  %v1320 = vadd.f32 %v847, %v1319
  %1321 = vmatmul.bf16.gmra.mxu0 %v927
  %v1322 = vpop.f32.mrf.mxu0
  %v1323 = vadd.f32 %v847, %v1322
  %v1324 = vpop.f32.mrf.mxu0
  %v1325 = vadd.f32 %v847, %v1324
  %1326 = vmatmul.bf16.gmra.mxu0 %v928
  %v1327 = vpop.f32.mrf.mxu0
  %v1328 = vadd.f32 %v847, %v1327
  %v1329 = vpop.f32.mrf.mxu0
  %v1330 = vadd.f32 %v847, %v1329
  %1331 = vmatmul.bf16.gmra.mxu0 %v929
  %v1332 = vpop.f32.mrf.mxu0
  %v1333 = vadd.f32 %v847, %v1332
  %v1334 = vpop.f32.mrf.mxu0
  %v1335 = vadd.f32 %v847, %v1334
  %1336 = vmatmul.bf16.gmra.mxu0 %v930
  %v1337 = vpop.f32.mrf.mxu0
  %v1338 = vadd.f32 %v847, %v1337
  %v1339 = vpop.f32.mrf.mxu0
  %v1340 = vadd.f32 %v847, %v1339
  %1341 = vdwg.mxu0
  %v1342 = vpack.c.bf16 %v1174, %v1085
  %v1343 = vpack.c.bf16 %v1263, %v1263
  %v1344 = vpack.c.bf16 %v1176, %v1087
  %v1345 = vpack.c.bf16 %v1265, %v1265
  %v1346 = vpack.c.bf16 %v1179, %v1090
  %v1347 = vpack.c.bf16 %v1268, %v1268
  %v1348 = vpack.c.bf16 %v1181, %v1092
  %v1349 = vpack.c.bf16 %v1270, %v1270
  %v1350 = vpack.c.bf16 %v1184, %v1095
  %v1351 = vpack.c.bf16 %v1273, %v1273
  %v1352 = vpack.c.bf16 %v1186, %v1097
  %v1353 = vpack.c.bf16 %v1275, %v1275
  %v1354 = vpack.c.bf16 %v1189, %v1100
  %v1355 = vpack.c.bf16 %v1278, %v1278
  %v1356 = vpack.c.bf16 %v1191, %v1102
  %v1357 = vpack.c.bf16 %v1280, %v1280
  %v1358 = vpack.c.bf16 %v1194, %v1105
  %v1359 = vpack.c.bf16 %v1283, %v1283
  %v1360 = vpack.c.bf16 %v1196, %v1107
  %v1361 = vpack.c.bf16 %v1285, %v1285
  %v1362 = vpack.c.bf16 %v1199, %v1110
  %v1363 = vpack.c.bf16 %v1288, %v1288
  %v1364 = vpack.c.bf16 %v1201, %v1112
  %v1365 = vpack.c.bf16 %v1290, %v1290
  %v1366 = vpack.c.bf16 %v1204, %v1115
  %v1367 = vpack.c.bf16 %v1293, %v1293
  %v1368 = vpack.c.bf16 %v1206, %v1117
  %v1369 = vpack.c.bf16 %v1295, %v1295
  %v1370 = vpack.c.bf16 %v1209, %v1120
  %v1371 = vpack.c.bf16 %v1298, %v1298
  %v1372 = vpack.c.bf16 %v1211, %v1122
  %v1373 = vpack.c.bf16 %v1300, %v1300
  %v1374 = vpack.c.bf16 %v1214, %v1125
  %v1375 = vpack.c.bf16 %v1303, %v1303
  %v1376 = vpack.c.bf16 %v1216, %v1127
  %v1377 = vpack.c.bf16 %v1305, %v1305
  %v1378 = vpack.c.bf16 %v1219, %v1130
  %v1379 = vpack.c.bf16 %v1308, %v1308
  %v1380 = vpack.c.bf16 %v1221, %v1132
  %v1381 = vpack.c.bf16 %v1310, %v1310
  %v1382 = vpack.c.bf16 %v1224, %v1135
  %v1383 = vpack.c.bf16 %v1313, %v1313
  %v1384 = vpack.c.bf16 %v1226, %v1137
  %v1385 = vpack.c.bf16 %v1315, %v1315
  %v1386 = vpack.c.bf16 %v1229, %v1140
  %v1387 = vpack.c.bf16 %v1318, %v1318
  %v1388 = vpack.c.bf16 %v1231, %v1142
  %v1389 = vpack.c.bf16 %v1320, %v1320
  %v1390 = vpack.c.bf16 %v1234, %v1145
  %v1391 = vpack.c.bf16 %v1323, %v1323
  %v1392 = vpack.c.bf16 %v1236, %v1147
  %v1393 = vpack.c.bf16 %v1325, %v1325
  %v1394 = vpack.c.bf16 %v1239, %v1150
  %v1395 = vpack.c.bf16 %v1328, %v1328
  %v1396 = vpack.c.bf16 %v1241, %v1152
  %v1397 = vpack.c.bf16 %v1330, %v1330
  %v1398 = vpack.c.bf16 %v1244, %v1155
  %v1399 = vpack.c.bf16 %v1333, %v1333
  %v1400 = vpack.c.bf16 %v1246, %v1157
  %v1401 = vpack.c.bf16 %v1335, %v1335
  %v1402 = vpack.c.bf16 %v1249, %v1160
  %v1403 = vpack.c.bf16 %v1338, %v1338
  %v1404 = vpack.c.bf16 %v1251, %v1162
  %v1405 = vpack.c.bf16 %v1340, %v1340
  %1406 = vst [vmem:[#allocation3] sm:$0xff] %v1342
  %1407 = vst [vmem:[#allocation3 + $0x8] sm:$0xf] %v1343
  %1408 = vst [vmem:[#allocation3 + $0xc] sm:$0xff] %v1344
  %1409 = vst [vmem:[#allocation3 + $0x14] sm:$0xf] %v1345
  %1410 = vst [vmem:[#allocation3 + $0x18] sm:$0xff] %v1346
  %1411 = vst [vmem:[#allocation3 + $0x20] sm:$0xf] %v1347
  %1412 = vst [vmem:[#allocation3 + $0x24] sm:$0xff] %v1348
  %1413 = vst [vmem:[#allocation3 + $0x2c] sm:$0xf] %v1349
  %1414 = vst [vmem:[#allocation3 + $0x30] sm:$0xff] %v1350
  %1415 = vst [vmem:[#allocation3 + $0x38] sm:$0xf] %v1351
  %1416 = vst [vmem:[#allocation3 + $0x3c] sm:$0xff] %v1352
  %1417 = vst [vmem:[#allocation3 + $0x44] sm:$0xf] %v1353
  %1418 = vst [vmem:[#allocation3 + $0x48] sm:$0xff] %v1354
  %1419 = vst [vmem:[#allocation3 + $0x50] sm:$0xf] %v1355
  %1420 = vst [vmem:[#allocation3 + $0x54] sm:$0xff] %v1356
  %1421 = vst [vmem:[#allocation3 + $0x5c] sm:$0xf] %v1357
  %1422 = vst [vmem:[#allocation3 + $0x60] sm:$0xff] %v1358
  %1423 = vst [vmem:[#allocation3 + $0x68] sm:$0xf] %v1359
  %1424 = vst [vmem:[#allocation3 + $0x6c] sm:$0xff] %v1360
  %1425 = vst [vmem:[#allocation3 + $0x74] sm:$0xf] %v1361
  %1426 = vst [vmem:[#allocation3 + $0x78] sm:$0xff] %v1362
  %1427 = vst [vmem:[#allocation3 + $0x80] sm:$0xf] %v1363
  %1428 = vst [vmem:[#allocation3 + $0x84] sm:$0xff] %v1364
  %1429 = vst [vmem:[#allocation3 + $0x8c] sm:$0xf] %v1365
  %1430 = vst [vmem:[#allocation3 + $0x90] sm:$0xff] %v1366
  %1431 = vst [vmem:[#allocation3 + $0x98] sm:$0xf] %v1367
  %1432 = vst [vmem:[#allocation3 + $0x9c] sm:$0xff] %v1368
  %1433 = vst [vmem:[#allocation3 + $0xa4] sm:$0xf] %v1369
  %1434 = vst [vmem:[#allocation3 + $0xa8] sm:$0xff] %v1370
  %1435 = vst [vmem:[#allocation3 + $0xb0] sm:$0xf] %v1371
  %1436 = vst [vmem:[#allocation3 + $0xb4] sm:$0xff] %v1372
  %1437 = vst [vmem:[#allocation3 + $0xbc] sm:$0xf] %v1373
  %1438 = vst [vmem:[#allocation3 + $0xc0] sm:$0xff] %v1374
  %1439 = vst [vmem:[#allocation3 + $0xc8] sm:$0xf] %v1375
  %1440 = vst [vmem:[#allocation3 + $0xcc] sm:$0xff] %v1376
  %1441 = vst [vmem:[#allocation3 + $0xd4] sm:$0xf] %v1377
  %1442 = vst [vmem:[#allocation3 + $0xd8] sm:$0xff] %v1378
  %1443 = vst [vmem:[#allocation3 + $0xe0] sm:$0xf] %v1379
  %1444 = vst [vmem:[#allocation3 + $0xe4] sm:$0xff] %v1380
  %1445 = vst [vmem:[#allocation3 + $0xec] sm:$0xf] %v1381
  %1446 = vst [vmem:[#allocation3 + $0xf0] sm:$0xff] %v1382
  %1447 = vst [vmem:[#allocation3 + $0xf8] sm:$0xf] %v1383
  %1448 = vst [vmem:[#allocation3 + $0xfc] sm:$0xff] %v1384
  %1449 = vst [vmem:[#allocation3 + $0x104] sm:$0xf] %v1385
  %1450 = vst [vmem:[#allocation3 + $0x108] sm:$0xff] %v1386
  %1451 = vst [vmem:[#allocation3 + $0x110] sm:$0xf] %v1387
  %1452 = vst [vmem:[#allocation3 + $0x114] sm:$0xff] %v1388
  %1453 = vst [vmem:[#allocation3 + $0x11c] sm:$0xf] %v1389
  %1454 = vst [vmem:[#allocation3 + $0x120] sm:$0xff] %v1390
  %1455 = vst [vmem:[#allocation3 + $0x128] sm:$0xf] %v1391
  %1456 = vst [vmem:[#allocation3 + $0x12c] sm:$0xff] %v1392
  %1457 = vst [vmem:[#allocation3 + $0x134] sm:$0xf] %v1393
  %1458 = vst [vmem:[#allocation3 + $0x138] sm:$0xff] %v1394
  %1459 = vst [vmem:[#allocation3 + $0x140] sm:$0xf] %v1395
  %1460 = vst [vmem:[#allocation3 + $0x144] sm:$0xff] %v1396
  %1461 = vst [vmem:[#allocation3 + $0x14c] sm:$0xf] %v1397
  %1462 = vst [vmem:[#allocation3 + $0x150] sm:$0xff] %v1398
  %1463 = vst [vmem:[#allocation3 + $0x158] sm:$0xf] %v1399
  %1464 = vst [vmem:[#allocation3 + $0x15c] sm:$0xff] %v1400
  %1465 = vst [vmem:[#allocation3 + $0x164] sm:$0xf] %v1401
  %1466 = vst [vmem:[#allocation3 + $0x168] sm:$0xff] %v1402
  %1467 = vst [vmem:[#allocation3 + $0x170] sm:$0xf] %v1403
  %1468 = vst [vmem:[#allocation3 + $0x174] sm:$0xff] %v1404
  %1469 = vst [vmem:[#allocation3 + $0x17c] sm:$0xf] %v1405
  %v1470 = vld [vmem:[%s7] sm:$0x7]
  %v1472 = vperm.slane %v1470, 0
  %v1473 = vperm.slane %v1470, 1
  %v1474 = vperm.slane %v1470, 2
  %v1478 = vld [vmem:[%s1] sm:$0xff]
  %v1479 = vld [vmem:[#allocation3] sm:$0xff]
  %v1480 = vld [vmem:[#allocation3 + $0x8] sm:$0xf]
  %v1481 = vpack.c.bf16 %v1478, %v1478
  %v1514 = vunpack.c.l.b16 %v747
  %v1515 = vunpack.c.h.b16 %v747
  %v1516 = vunpack.c.l.b16 %v748
  %v1517 = vunpack.c.l.b16 %v749
  %v1518 = vunpack.c.h.b16 %v749
  %v1519 = vunpack.c.l.b16 %v750
  %v1520 = vunpack.c.l.b16 %v751
  %v1521 = vunpack.c.h.b16 %v751
  %v1522 = vunpack.c.l.b16 %v752
  %v1523 = vunpack.c.l.b16 %v753
  %v1524 = vunpack.c.h.b16 %v753
  %v1525 = vunpack.c.l.b16 %v754
  %v1526 = vunpack.c.l.b16 %v755
  %v1527 = vunpack.c.h.b16 %v755
  %v1528 = vunpack.c.l.b16 %v756
  %v1529 = vunpack.c.l.b16 %v757
  %v1530 = vunpack.c.h.b16 %v757
  %v1531 = vunpack.c.l.b16 %v758
  %v1532 = vunpack.c.l.b16 %v759
  %v1533 = vunpack.c.h.b16 %v759
  %v1534 = vunpack.c.l.b16 %v760
  %v1535 = vunpack.c.l.b16 %v761
  %v1536 = vunpack.c.h.b16 %v761
  %v1537 = vunpack.c.l.b16 %v762
  %v1538 = vunpack.c.l.b16 %v763
  %v1539 = vunpack.c.h.b16 %v763
  %v1540 = vunpack.c.l.b16 %v764
  %v1541 = vunpack.c.l.b16 %v765
  %v1542 = vunpack.c.h.b16 %v765
  %v1543 = vunpack.c.l.b16 %v766
  %v1544 = vunpack.c.l.b16 %v767
  %v1545 = vunpack.c.h.b16 %v767
  %v1546 = vunpack.c.l.b16 %v768
  %v1547 = vunpack.c.l.b16 %v769
  %v1548 = vunpack.c.h.b16 %v769
  %v1549 = vunpack.c.l.b16 %v770
  %v1550 = vunpack.c.l.b16 %v771
  %v1551 = vunpack.c.h.b16 %v771
  %v1552 = vunpack.c.l.b16 %v772
  %v1553 = vunpack.c.l.b16 %v773
  %v1554 = vunpack.c.h.b16 %v773
  %v1555 = vunpack.c.l.b16 %v774
  %v1556 = vunpack.c.l.b16 %v775
  %v1557 = vunpack.c.h.b16 %v775
  %v1558 = vunpack.c.l.b16 %v776
  %v1559 = vunpack.c.l.b16 %v777
  %v1560 = vunpack.c.h.b16 %v777
  %v1561 = vunpack.c.l.b16 %v778
  %v1562 = vpack.c.b16 %v1517, %v1514
  %v1563 = vpack.c.b16 %v1518, %v1515
  %v1564 = vpack.c.b16 %v1519, %v1516
  %v1565 = vpack.c.b16 %v1523, %v1520
  %v1566 = vpack.c.b16 %v1524, %v1521
  %v1567 = vpack.c.b16 %v1525, %v1522
  %v1568 = vpack.c.b16 %v1529, %v1526
  %v1569 = vpack.c.b16 %v1530, %v1527
  %v1570 = vpack.c.b16 %v1531, %v1528
  %v1571 = vpack.c.b16 %v1535, %v1532
  %v1572 = vpack.c.b16 %v1536, %v1533
  %v1573 = vpack.c.b16 %v1537, %v1534
  %v1574 = vpack.c.b16 %v1541, %v1538
  %v1575 = vpack.c.b16 %v1542, %v1539
  %v1576 = vpack.c.b16 %v1543, %v1540
  %v1577 = vpack.c.b16 %v1547, %v1544
  %v1578 = vpack.c.b16 %v1548, %v1545
  %v1579 = vpack.c.b16 %v1549, %v1546
  %v1580 = vpack.c.b16 %v1553, %v1550
  %v1581 = vpack.c.b16 %v1554, %v1551
  %v1582 = vpack.c.b16 %v1555, %v1552
  %v1583 = vpack.c.b16 %v1559, %v1556
  %v1584 = vpack.c.b16 %v1560, %v1557
  %v1585 = vpack.c.b16 %v1561, %v1558
  %1610 = vmatpush.bf16.msra.mxu0 %v1583
  %1611 = vmatpush.bf16.msra.mxu0 %v1580
  %1612 = vmatpush.bf16.msra.mxu0 %v1577
  %1613 = vmatpush.bf16.msra.mxu0 %v1574
  %1614 = vmatpush.bf16.msra.mxu0 %v1571
  %1615 = vmatpush.bf16.msra.mxu0 %v1568
  %1616 = vmatpush.bf16.msra.mxu0 %v1565
  %1617 = vmatpush.bf16.msra.mxu0 %v1562
  %1618 = vmatmul.bf16.gmra.mxu0 %v1481
  %v1619 = vpop.f32.mrf.mxu0
  %v1620 = vadd.f32 %v1472, %v1619
  %v1621 = vpop.f32.mrf.mxu0
  %1622 = vdwg.mxu0
  %1623 = vmatpush.bf16.msra.mxu0 %v1584
  %1624 = vmatpush.bf16.msra.mxu0 %v1581
  %1625 = vmatpush.bf16.msra.mxu0 %v1578
  %1626 = vmatpush.bf16.msra.mxu0 %v1575
  %1627 = vmatpush.bf16.msra.mxu0 %v1572
  %1628 = vmatpush.bf16.msra.mxu0 %v1569
  %1629 = vmatpush.bf16.msra.mxu0 %v1566
  %1630 = vmatpush.bf16.msra.mxu0 %v1563
  %1631 = vmatmul.bf16.gmra.mxu0 %v1481
  %v1632 = vpop.f32.mrf.mxu0
  %v1633 = vadd.f32 %v1473, %v1632
  %v1634 = vpop.f32.mrf.mxu0
  %1635 = vdwg.mxu0
  %1636 = vmatpush.bf16.msra.mxu0 %v1585
  %1637 = vmatpush.bf16.msra.mxu0 %v1582
  %1638 = vmatpush.bf16.msra.mxu0 %v1579
  %1639 = vmatpush.bf16.msra.mxu0 %v1576
  %1640 = vmatpush.bf16.msra.mxu0 %v1573
  %1641 = vmatpush.bf16.msra.mxu0 %v1570
  %1642 = vmatpush.bf16.msra.mxu0 %v1567
  %1643 = vmatpush.bf16.msra.mxu0 %v1564
  %1644 = vmatmul.bf16.gmra.mxu0 %v1481
  %v1645 = vpop.f32.mrf.mxu0
  %v1646 = vadd.f32 %v1474, %v1645
  %v1647 = vpop.f32.mrf.mxu0
  %1648 = vdwg.mxu0
  %v1649 = vunpack.c.l.bf16 %v1479
  %v1650 = vunpack.c.h.bf16 %v1479
  %v1651 = vadd.f32 %v1649, %v1620
  %v1652 = vadd.f32 %v1650, %v1633
  %v1653 = vxor.u32 %v1651, 2147483648
  %v1654 = vxor.u32 %v1652, 2147483648
  %v1655 = vmul.f32 %v1653, 1.442695
  %v1656 = vpow.pop %v1655
  %v1657 = vmul.f32 %v1654, 1.442695
  %v1658 = vpow.pop %v1657
  %v1659 = vadd.f32 %v1656, 1.0
  %v1660 = vadd.f32 %v1658, 1.0
  %v1661 = vrcp.pop %v1659
  %v1662 = vmul.f32 %v1659, %v1661
  %v1663 = vsub.f32 1.0, %v1662
  %v1664 = vmul.f32 %v1661, %v1663
  %v1665 = vadd.f32 %v1661, %v1664
  %vm1666 = vweird.f32 %v1659
  %vm1667 = vweird.f32 %v1661
  %vm1668 = vmor %vm1666, %vm1667
  %v1669 = vsel %vm1668, %v1661, %v1665
  %v1670 = vand.u32 2147483647, %v1659
  %vm1671 = vcmp.eq.f32.partialorder %v1670, 8.507059e+37
  %v1672 = vand.u32 %v1659, 2147483648
  %v1673 = vor.u32 1.1754944e-38, %v1672
  %v1674 = vsel %vm1671, %v1673, %v1669
  %v1675 = vmul.f32 1.0, %v1674
  %v1676 = vrcp.pop %v1660
  %v1677 = vmul.f32 %v1660, %v1676
  %v1678 = vsub.f32 1.0, %v1677
  %v1679 = vmul.f32 %v1676, %v1678
  %v1680 = vadd.f32 %v1676, %v1679
  %vm1681 = vweird.f32 %v1660
  %vm1682 = vweird.f32 %v1676
  %vm1683 = vmor %vm1681, %vm1682
  %v1684 = vsel %vm1683, %v1676, %v1680
  %v1685 = vand.u32 2147483647, %v1660
  %vm1686 = vcmp.eq.f32.partialorder %v1685, 8.507059e+37
  %v1687 = vand.u32 %v1660, 2147483648
  %v1688 = vor.u32 1.1754944e-38, %v1687
  %v1689 = vsel %vm1686, %v1688, %v1684
  %v1690 = vmul.f32 1.0, %v1689
  %v1691 = vmul.f32 %v1675, %v1646
  %v1692 = vunpack.c.l.bf16 %v1480
  %v1693 = vadd.f32 %v1692, %v1691
  %v1694 = vtanh.pop %v1693
  %v1695 = vsub.f32 %v1478, %v1694
  %v1696 = vmul.f32 %v1690, %v1695
  %v1697 = vadd.f32 %v1694, %v1696
  %v1698 = vld [vmem:[#allocation2] sm:$0xf]
  %v1699 = vunpack.c.l.bf16 %v1698
  %v1700 = vadd.f32 %v1697, %v1699
  %v1701 = vpack.c.bf16 %v1700, %v1700
  %1702 = vst [vmem:[#allocation2] sm:$0xf] %v1701
  %v1703 = vld [vmem:[#allocation3 + $0xc] sm:$0xff]
  %v1704 = vld [vmem:[#allocation3 + $0x14] sm:$0xf]
  %v1705 = vpack.c.bf16 %v1697, %v1697
  %1706 = vmatpush.bf16.msra.mxu0 %v1583
  %1707 = vmatpush.bf16.msra.mxu0 %v1580
  %1708 = vmatpush.bf16.msra.mxu0 %v1577
  %1709 = vmatpush.bf16.msra.mxu0 %v1574
  %1710 = vmatpush.bf16.msra.mxu0 %v1571
  %1711 = vmatpush.bf16.msra.mxu0 %v1568
  %1712 = vmatpush.bf16.msra.mxu0 %v1565
  %1713 = vmatpush.bf16.msra.mxu0 %v1562
  %1714 = vmatmul.bf16.gmra.mxu0 %v1705
  %v1715 = vpop.f32.mrf.mxu0
  %v1716 = vadd.f32 %v1472, %v1715
  %v1717 = vpop.f32.mrf.mxu0
  %1718 = vdwg.mxu0
  %1719 = vmatpush.bf16.msra.mxu0 %v1584
  %1720 = vmatpush.bf16.msra.mxu0 %v1581
  %1721 = vmatpush.bf16.msra.mxu0 %v1578
  %1722 = vmatpush.bf16.msra.mxu0 %v1575
  %1723 = vmatpush.bf16.msra.mxu0 %v1572
  %1724 = vmatpush.bf16.msra.mxu0 %v1569
  %1725 = vmatpush.bf16.msra.mxu0 %v1566
  %1726 = vmatpush.bf16.msra.mxu0 %v1563
  %1727 = vmatmul.bf16.gmra.mxu0 %v1705
  %v1728 = vpop.f32.mrf.mxu0
  %v1729 = vadd.f32 %v1473, %v1728
  %v1730 = vpop.f32.mrf.mxu0
  %1731 = vdwg.mxu0
  %1732 = vmatpush.bf16.msra.mxu0 %v1585
  %1733 = vmatpush.bf16.msra.mxu0 %v1582
  %1734 = vmatpush.bf16.msra.mxu0 %v1579
  %1735 = vmatpush.bf16.msra.mxu0 %v1576
  %1736 = vmatpush.bf16.msra.mxu0 %v1573
  %1737 = vmatpush.bf16.msra.mxu0 %v1570
  %1738 = vmatpush.bf16.msra.mxu0 %v1567
  %1739 = vmatpush.bf16.msra.mxu0 %v1564
  %1740 = vmatmul.bf16.gmra.mxu0 %v1705
  %v1741 = vpop.f32.mrf.mxu0
  %v1742 = vadd.f32 %v1474, %v1741
  %v1743 = vpop.f32.mrf.mxu0
  %1744 = vdwg.mxu0
  %v1745 = vunpack.c.l.bf16 %v1703
  %v1746 = vunpack.c.h.bf16 %v1703
  %v1747 = vadd.f32 %v1745, %v1716
  %v1748 = vadd.f32 %v1746, %v1729
  %v1749 = vxor.u32 %v1747, 2147483648
  %v1750 = vxor.u32 %v1748, 2147483648
  %v1751 = vmul.f32 %v1749, 1.442695
  %v1752 = vpow.pop %v1751
  %v1753 = vmul.f32 %v1750, 1.442695
  %v1754 = vpow.pop %v1753
  %v1755 = vadd.f32 %v1752, 1.0
  %v1756 = vadd.f32 %v1754, 1.0
  %v1757 = vrcp.pop %v1755
  %v1758 = vmul.f32 %v1755, %v1757
  %v1759 = vsub.f32 1.0, %v1758
  %v1760 = vmul.f32 %v1757, %v1759
  %v1761 = vadd.f32 %v1757, %v1760
  %vm1762 = vweird.f32 %v1755
  %vm1763 = vweird.f32 %v1757
  %vm1764 = vmor %vm1762, %vm1763
  %v1765 = vsel %vm1764, %v1757, %v1761
  %v1766 = vand.u32 2147483647, %v1755
  %vm1767 = vcmp.eq.f32.partialorder %v1766, 8.507059e+37
  %v1768 = vand.u32 %v1755, 2147483648
  %v1769 = vor.u32 1.1754944e-38, %v1768
  %v1770 = vsel %vm1767, %v1769, %v1765
  %v1771 = vmul.f32 1.0, %v1770
  %v1772 = vrcp.pop %v1756
  %v1773 = vmul.f32 %v1756, %v1772
  %v1774 = vsub.f32 1.0, %v1773
  %v1775 = vmul.f32 %v1772, %v1774
  %v1776 = vadd.f32 %v1772, %v1775
  %vm1777 = vweird.f32 %v1756
  %vm1778 = vweird.f32 %v1772
  %vm1779 = vmor %vm1777, %vm1778
  %v1780 = vsel %vm1779, %v1772, %v1776
  %v1781 = vand.u32 2147483647, %v1756
  %vm1782 = vcmp.eq.f32.partialorder %v1781, 8.507059e+37
  %v1783 = vand.u32 %v1756, 2147483648
  %v1784 = vor.u32 1.1754944e-38, %v1783
  %v1785 = vsel %vm1782, %v1784, %v1780
  %v1786 = vmul.f32 1.0, %v1785
  %v1787 = vmul.f32 %v1771, %v1742
  %v1788 = vunpack.c.l.bf16 %v1704
  %v1789 = vadd.f32 %v1788, %v1787
  %v1790 = vtanh.pop %v1789
  %v1791 = vsub.f32 %v1697, %v1790
  %v1792 = vmul.f32 %v1786, %v1791
  %v1793 = vadd.f32 %v1790, %v1792
  %v1794 = vld [vmem:[#allocation2 + $0x4] sm:$0xf]
  %v1795 = vunpack.c.l.bf16 %v1794
  %v1796 = vadd.f32 %v1793, %v1795
  %v1797 = vpack.c.bf16 %v1796, %v1796
  %1798 = vst [vmem:[#allocation2 + $0x4] sm:$0xf] %v1797
  %v1799 = vld [vmem:[#allocation3 + $0x18] sm:$0xff]
  %v1800 = vld [vmem:[#allocation3 + $0x20] sm:$0xf]
  %v1801 = vpack.c.bf16 %v1793, %v1793
  %1802 = vmatpush.bf16.msra.mxu0 %v1583
  %1803 = vmatpush.bf16.msra.mxu0 %v1580
  %1804 = vmatpush.bf16.msra.mxu0 %v1577
  %1805 = vmatpush.bf16.msra.mxu0 %v1574
  %1806 = vmatpush.bf16.msra.mxu0 %v1571
  %1807 = vmatpush.bf16.msra.mxu0 %v1568
  %1808 = vmatpush.bf16.msra.mxu0 %v1565
  %1809 = vmatpush.bf16.msra.mxu0 %v1562
  %1810 = vmatmul.bf16.gmra.mxu0 %v1801
  %v1811 = vpop.f32.mrf.mxu0
  %v1812 = vadd.f32 %v1472, %v1811
  %v1813 = vpop.f32.mrf.mxu0
  %1814 = vdwg.mxu0
  %1815 = vmatpush.bf16.msra.mxu0 %v1584
  %1816 = vmatpush.bf16.msra.mxu0 %v1581
  %1817 = vmatpush.bf16.msra.mxu0 %v1578
  %1818 = vmatpush.bf16.msra.mxu0 %v1575
  %1819 = vmatpush.bf16.msra.mxu0 %v1572
  %1820 = vmatpush.bf16.msra.mxu0 %v1569
  %1821 = vmatpush.bf16.msra.mxu0 %v1566
  %1822 = vmatpush.bf16.msra.mxu0 %v1563
  %1823 = vmatmul.bf16.gmra.mxu0 %v1801
  %v1824 = vpop.f32.mrf.mxu0
  %v1825 = vadd.f32 %v1473, %v1824
  %v1826 = vpop.f32.mrf.mxu0
  %1827 = vdwg.mxu0
  %1828 = vmatpush.bf16.msra.mxu0 %v1585
  %1829 = vmatpush.bf16.msra.mxu0 %v1582
  %1830 = vmatpush.bf16.msra.mxu0 %v1579
  %1831 = vmatpush.bf16.msra.mxu0 %v1576
  %1832 = vmatpush.bf16.msra.mxu0 %v1573
  %1833 = vmatpush.bf16.msra.mxu0 %v1570
  %1834 = vmatpush.bf16.msra.mxu0 %v1567
  %1835 = vmatpush.bf16.msra.mxu0 %v1564
  %1836 = vmatmul.bf16.gmra.mxu0 %v1801
  %v1837 = vpop.f32.mrf.mxu0
  %v1838 = vadd.f32 %v1474, %v1837
  %v1839 = vpop.f32.mrf.mxu0
  %1840 = vdwg.mxu0
  %v1841 = vunpack.c.l.bf16 %v1799
  %v1842 = vunpack.c.h.bf16 %v1799
  %v1843 = vadd.f32 %v1841, %v1812
  %v1844 = vadd.f32 %v1842, %v1825
  %v1845 = vxor.u32 %v1843, 2147483648
  %v1846 = vxor.u32 %v1844, 2147483648
  %v1847 = vmul.f32 %v1845, 1.442695
  %v1848 = vpow.pop %v1847
  %v1849 = vmul.f32 %v1846, 1.442695
  %v1850 = vpow.pop %v1849
  %v1851 = vadd.f32 %v1848, 1.0
  %v1852 = vadd.f32 %v1850, 1.0
  %v1853 = vrcp.pop %v1851
  %v1854 = vmul.f32 %v1851, %v1853
  %v1855 = vsub.f32 1.0, %v1854
  %v1856 = vmul.f32 %v1853, %v1855
  %v1857 = vadd.f32 %v1853, %v1856
  %vm1858 = vweird.f32 %v1851
  %vm1859 = vweird.f32 %v1853
  %vm1860 = vmor %vm1858, %vm1859
  %v1861 = vsel %vm1860, %v1853, %v1857
  %v1862 = vand.u32 2147483647, %v1851
  %vm1863 = vcmp.eq.f32.partialorder %v1862, 8.507059e+37
  %v1864 = vand.u32 %v1851, 2147483648
  %v1865 = vor.u32 1.1754944e-38, %v1864
  %v1866 = vsel %vm1863, %v1865, %v1861
  %v1867 = vmul.f32 1.0, %v1866
  %v1868 = vrcp.pop %v1852
  %v1869 = vmul.f32 %v1852, %v1868
  %v1870 = vsub.f32 1.0, %v1869
  %v1871 = vmul.f32 %v1868, %v1870
  %v1872 = vadd.f32 %v1868, %v1871
  %vm1873 = vweird.f32 %v1852
  %vm1874 = vweird.f32 %v1868
  %vm1875 = vmor %vm1873, %vm1874
  %v1876 = vsel %vm1875, %v1868, %v1872
  %v1877 = vand.u32 2147483647, %v1852
  %vm1878 = vcmp.eq.f32.partialorder %v1877, 8.507059e+37
  %v1879 = vand.u32 %v1852, 2147483648
  %v1880 = vor.u32 1.1754944e-38, %v1879
  %v1881 = vsel %vm1878, %v1880, %v1876
  %v1882 = vmul.f32 1.0, %v1881
  %v1883 = vmul.f32 %v1867, %v1838
  %v1884 = vunpack.c.l.bf16 %v1800
  %v1885 = vadd.f32 %v1884, %v1883
  %v1886 = vtanh.pop %v1885
  %v1887 = vsub.f32 %v1793, %v1886
  %v1888 = vmul.f32 %v1882, %v1887
  %v1889 = vadd.f32 %v1886, %v1888
  %v1890 = vld [vmem:[#allocation2 + $0x8] sm:$0xf]
  %v1891 = vunpack.c.l.bf16 %v1890
  %v1892 = vadd.f32 %v1889, %v1891
  %v1893 = vpack.c.bf16 %v1892, %v1892
  %1894 = vst [vmem:[#allocation2 + $0x8] sm:$0xf] %v1893
  %v1895 = vld [vmem:[#allocation3 + $0x24] sm:$0xff]
  %v1896 = vld [vmem:[#allocation3 + $0x2c] sm:$0xf]
  %v1897 = vpack.c.bf16 %v1889, %v1889
  %1898 = vmatpush.bf16.msra.mxu0 %v1583
  %1899 = vmatpush.bf16.msra.mxu0 %v1580
  %1900 = vmatpush.bf16.msra.mxu0 %v1577
  %1901 = vmatpush.bf16.msra.mxu0 %v1574
  %1902 = vmatpush.bf16.msra.mxu0 %v1571
  %1903 = vmatpush.bf16.msra.mxu0 %v1568
  %1904 = vmatpush.bf16.msra.mxu0 %v1565
  %1905 = vmatpush.bf16.msra.mxu0 %v1562
  %1906 = vmatmul.bf16.gmra.mxu0 %v1897
  %v1907 = vpop.f32.mrf.mxu0
  %v1908 = vadd.f32 %v1472, %v1907
  %v1909 = vpop.f32.mrf.mxu0
  %1910 = vdwg.mxu0
  %1911 = vmatpush.bf16.msra.mxu0 %v1584
  %1912 = vmatpush.bf16.msra.mxu0 %v1581
  %1913 = vmatpush.bf16.msra.mxu0 %v1578
  %1914 = vmatpush.bf16.msra.mxu0 %v1575
  %1915 = vmatpush.bf16.msra.mxu0 %v1572
  %1916 = vmatpush.bf16.msra.mxu0 %v1569
  %1917 = vmatpush.bf16.msra.mxu0 %v1566
  %1918 = vmatpush.bf16.msra.mxu0 %v1563
  %1919 = vmatmul.bf16.gmra.mxu0 %v1897
  %v1920 = vpop.f32.mrf.mxu0
  %v1921 = vadd.f32 %v1473, %v1920
  %v1922 = vpop.f32.mrf.mxu0
  %1923 = vdwg.mxu0
  %1924 = vmatpush.bf16.msra.mxu0 %v1585
  %1925 = vmatpush.bf16.msra.mxu0 %v1582
  %1926 = vmatpush.bf16.msra.mxu0 %v1579
  %1927 = vmatpush.bf16.msra.mxu0 %v1576
  %1928 = vmatpush.bf16.msra.mxu0 %v1573
  %1929 = vmatpush.bf16.msra.mxu0 %v1570
  %1930 = vmatpush.bf16.msra.mxu0 %v1567
  %1931 = vmatpush.bf16.msra.mxu0 %v1564
  %1932 = vmatmul.bf16.gmra.mxu0 %v1897
  %v1933 = vpop.f32.mrf.mxu0
  %v1934 = vadd.f32 %v1474, %v1933
  %v1935 = vpop.f32.mrf.mxu0
  %1936 = vdwg.mxu0
  %v1937 = vunpack.c.l.bf16 %v1895
  %v1938 = vunpack.c.h.bf16 %v1895
  %v1939 = vadd.f32 %v1937, %v1908
  %v1940 = vadd.f32 %v1938, %v1921
  %v1941 = vxor.u32 %v1939, 2147483648
  %v1942 = vxor.u32 %v1940, 2147483648
  %v1943 = vmul.f32 %v1941, 1.442695
  %v1944 = vpow.pop %v1943
  %v1945 = vmul.f32 %v1942, 1.442695
  %v1946 = vpow.pop %v1945
  %v1947 = vadd.f32 %v1944, 1.0
  %v1948 = vadd.f32 %v1946, 1.0
  %v1949 = vrcp.pop %v1947
  %v1950 = vmul.f32 %v1947, %v1949
  %v1951 = vsub.f32 1.0, %v1950
  %v1952 = vmul.f32 %v1949, %v1951
  %v1953 = vadd.f32 %v1949, %v1952
  %vm1954 = vweird.f32 %v1947
  %vm1955 = vweird.f32 %v1949
  %vm1956 = vmor %vm1954, %vm1955
  %v1957 = vsel %vm1956, %v1949, %v1953
  %v1958 = vand.u32 2147483647, %v1947
  %vm1959 = vcmp.eq.f32.partialorder %v1958, 8.507059e+37
  %v1960 = vand.u32 %v1947, 2147483648
  %v1961 = vor.u32 1.1754944e-38, %v1960
  %v1962 = vsel %vm1959, %v1961, %v1957
  %v1963 = vmul.f32 1.0, %v1962
  %v1964 = vrcp.pop %v1948
  %v1965 = vmul.f32 %v1948, %v1964
  %v1966 = vsub.f32 1.0, %v1965
  %v1967 = vmul.f32 %v1964, %v1966
  %v1968 = vadd.f32 %v1964, %v1967
  %vm1969 = vweird.f32 %v1948
  %vm1970 = vweird.f32 %v1964
  %vm1971 = vmor %vm1969, %vm1970
  %v1972 = vsel %vm1971, %v1964, %v1968
  %v1973 = vand.u32 2147483647, %v1948
  %vm1974 = vcmp.eq.f32.partialorder %v1973, 8.507059e+37
  %v1975 = vand.u32 %v1948, 2147483648
  %v1976 = vor.u32 1.1754944e-38, %v1975
  %v1977 = vsel %vm1974, %v1976, %v1972
  %v1978 = vmul.f32 1.0, %v1977
  %v1979 = vmul.f32 %v1963, %v1934
  %v1980 = vunpack.c.l.bf16 %v1896
  %v1981 = vadd.f32 %v1980, %v1979
  %v1982 = vtanh.pop %v1981
  %v1983 = vsub.f32 %v1889, %v1982
  %v1984 = vmul.f32 %v1978, %v1983
  %v1985 = vadd.f32 %v1982, %v1984
  %v1986 = vld [vmem:[#allocation2 + $0xc] sm:$0xf]
  %v1987 = vunpack.c.l.bf16 %v1986
  %v1988 = vadd.f32 %v1985, %v1987
  %v1989 = vpack.c.bf16 %v1988, %v1988
  %1990 = vst [vmem:[#allocation2 + $0xc] sm:$0xf] %v1989
  %v1991 = vld [vmem:[#allocation3 + $0x30] sm:$0xff]
  %v1992 = vld [vmem:[#allocation3 + $0x38] sm:$0xf]
  %v1993 = vpack.c.bf16 %v1985, %v1985
  %1994 = vmatpush.bf16.msra.mxu0 %v1583
  %1995 = vmatpush.bf16.msra.mxu0 %v1580
  %1996 = vmatpush.bf16.msra.mxu0 %v1577
  %1997 = vmatpush.bf16.msra.mxu0 %v1574
  %1998 = vmatpush.bf16.msra.mxu0 %v1571
  %1999 = vmatpush.bf16.msra.mxu0 %v1568
  %2000 = vmatpush.bf16.msra.mxu0 %v1565
  %2001 = vmatpush.bf16.msra.mxu0 %v1562
  %2002 = vmatmul.bf16.gmra.mxu0 %v1993
  %v2003 = vpop.f32.mrf.mxu0
  %v2004 = vadd.f32 %v1472, %v2003
  %v2005 = vpop.f32.mrf.mxu0
  %2006 = vdwg.mxu0
  %2007 = vmatpush.bf16.msra.mxu0 %v1584
  %2008 = vmatpush.bf16.msra.mxu0 %v1581
  %2009 = vmatpush.bf16.msra.mxu0 %v1578
  %2010 = vmatpush.bf16.msra.mxu0 %v1575
  %2011 = vmatpush.bf16.msra.mxu0 %v1572
  %2012 = vmatpush.bf16.msra.mxu0 %v1569
  %2013 = vmatpush.bf16.msra.mxu0 %v1566
  %2014 = vmatpush.bf16.msra.mxu0 %v1563
  %2015 = vmatmul.bf16.gmra.mxu0 %v1993
  %v2016 = vpop.f32.mrf.mxu0
  %v2017 = vadd.f32 %v1473, %v2016
  %v2018 = vpop.f32.mrf.mxu0
  %2019 = vdwg.mxu0
  %2020 = vmatpush.bf16.msra.mxu0 %v1585
  %2021 = vmatpush.bf16.msra.mxu0 %v1582
  %2022 = vmatpush.bf16.msra.mxu0 %v1579
  %2023 = vmatpush.bf16.msra.mxu0 %v1576
  %2024 = vmatpush.bf16.msra.mxu0 %v1573
  %2025 = vmatpush.bf16.msra.mxu0 %v1570
  %2026 = vmatpush.bf16.msra.mxu0 %v1567
  %2027 = vmatpush.bf16.msra.mxu0 %v1564
  %2028 = vmatmul.bf16.gmra.mxu0 %v1993
  %v2029 = vpop.f32.mrf.mxu0
  %v2030 = vadd.f32 %v1474, %v2029
  %v2031 = vpop.f32.mrf.mxu0
  %2032 = vdwg.mxu0
  %v2033 = vunpack.c.l.bf16 %v1991
  %v2034 = vunpack.c.h.bf16 %v1991
  %v2035 = vadd.f32 %v2033, %v2004
  %v2036 = vadd.f32 %v2034, %v2017
  %v2037 = vxor.u32 %v2035, 2147483648
  %v2038 = vxor.u32 %v2036, 2147483648
  %v2039 = vmul.f32 %v2037, 1.442695
  %v2040 = vpow.pop %v2039
  %v2041 = vmul.f32 %v2038, 1.442695
  %v2042 = vpow.pop %v2041
  %v2043 = vadd.f32 %v2040, 1.0
  %v2044 = vadd.f32 %v2042, 1.0
  %v2045 = vrcp.pop %v2043
  %v2046 = vmul.f32 %v2043, %v2045
  %v2047 = vsub.f32 1.0, %v2046
  %v2048 = vmul.f32 %v2045, %v2047
  %v2049 = vadd.f32 %v2045, %v2048
  %vm2050 = vweird.f32 %v2043
  %vm2051 = vweird.f32 %v2045
  %vm2052 = vmor %vm2050, %vm2051
  %v2053 = vsel %vm2052, %v2045, %v2049
  %v2054 = vand.u32 2147483647, %v2043
  %vm2055 = vcmp.eq.f32.partialorder %v2054, 8.507059e+37
  %v2056 = vand.u32 %v2043, 2147483648
  %v2057 = vor.u32 1.1754944e-38, %v2056
  %v2058 = vsel %vm2055, %v2057, %v2053
  %v2059 = vmul.f32 1.0, %v2058
  %v2060 = vrcp.pop %v2044
  %v2061 = vmul.f32 %v2044, %v2060
  %v2062 = vsub.f32 1.0, %v2061
  %v2063 = vmul.f32 %v2060, %v2062
  %v2064 = vadd.f32 %v2060, %v2063
  %vm2065 = vweird.f32 %v2044
  %vm2066 = vweird.f32 %v2060
  %vm2067 = vmor %vm2065, %vm2066
  %v2068 = vsel %vm2067, %v2060, %v2064
  %v2069 = vand.u32 2147483647, %v2044
  %vm2070 = vcmp.eq.f32.partialorder %v2069, 8.507059e+37
  %v2071 = vand.u32 %v2044, 2147483648
  %v2072 = vor.u32 1.1754944e-38, %v2071
  %v2073 = vsel %vm2070, %v2072, %v2068
  %v2074 = vmul.f32 1.0, %v2073
  %v2075 = vmul.f32 %v2059, %v2030
  %v2076 = vunpack.c.l.bf16 %v1992
  %v2077 = vadd.f32 %v2076, %v2075
  %v2078 = vtanh.pop %v2077
  %v2079 = vsub.f32 %v1985, %v2078
  %v2080 = vmul.f32 %v2074, %v2079
  %v2081 = vadd.f32 %v2078, %v2080
  %v2082 = vld [vmem:[#allocation2 + $0x10] sm:$0xf]
  %v2083 = vunpack.c.l.bf16 %v2082
  %v2084 = vadd.f32 %v2081, %v2083
  %v2085 = vpack.c.bf16 %v2084, %v2084
  %2086 = vst [vmem:[#allocation2 + $0x10] sm:$0xf] %v2085
  %v2087 = vld [vmem:[#allocation3 + $0x3c] sm:$0xff]
  %v2088 = vld [vmem:[#allocation3 + $0x44] sm:$0xf]
  %v2089 = vpack.c.bf16 %v2081, %v2081
  %2090 = vmatpush.bf16.msra.mxu0 %v1583
  %2091 = vmatpush.bf16.msra.mxu0 %v1580
  %2092 = vmatpush.bf16.msra.mxu0 %v1577
  %2093 = vmatpush.bf16.msra.mxu0 %v1574
  %2094 = vmatpush.bf16.msra.mxu0 %v1571
  %2095 = vmatpush.bf16.msra.mxu0 %v1568
  %2096 = vmatpush.bf16.msra.mxu0 %v1565
  %2097 = vmatpush.bf16.msra.mxu0 %v1562
  %2098 = vmatmul.bf16.gmra.mxu0 %v2089
  %v2099 = vpop.f32.mrf.mxu0
  %v2100 = vadd.f32 %v1472, %v2099
  %v2101 = vpop.f32.mrf.mxu0
  %2102 = vdwg.mxu0
  %2103 = vmatpush.bf16.msra.mxu0 %v1584
  %2104 = vmatpush.bf16.msra.mxu0 %v1581
  %2105 = vmatpush.bf16.msra.mxu0 %v1578
  %2106 = vmatpush.bf16.msra.mxu0 %v1575
  %2107 = vmatpush.bf16.msra.mxu0 %v1572
  %2108 = vmatpush.bf16.msra.mxu0 %v1569
  %2109 = vmatpush.bf16.msra.mxu0 %v1566
  %2110 = vmatpush.bf16.msra.mxu0 %v1563
  %2111 = vmatmul.bf16.gmra.mxu0 %v2089
  %v2112 = vpop.f32.mrf.mxu0
  %v2113 = vadd.f32 %v1473, %v2112
  %v2114 = vpop.f32.mrf.mxu0
  %2115 = vdwg.mxu0
  %2116 = vmatpush.bf16.msra.mxu0 %v1585
  %2117 = vmatpush.bf16.msra.mxu0 %v1582
  %2118 = vmatpush.bf16.msra.mxu0 %v1579
  %2119 = vmatpush.bf16.msra.mxu0 %v1576
  %2120 = vmatpush.bf16.msra.mxu0 %v1573
  %2121 = vmatpush.bf16.msra.mxu0 %v1570
  %2122 = vmatpush.bf16.msra.mxu0 %v1567
  %2123 = vmatpush.bf16.msra.mxu0 %v1564
  %2124 = vmatmul.bf16.gmra.mxu0 %v2089
  %v2125 = vpop.f32.mrf.mxu0
  %v2126 = vadd.f32 %v1474, %v2125
  %v2127 = vpop.f32.mrf.mxu0
  %2128 = vdwg.mxu0
  %v2129 = vunpack.c.l.bf16 %v2087
  %v2130 = vunpack.c.h.bf16 %v2087
  %v2131 = vadd.f32 %v2129, %v2100
  %v2132 = vadd.f32 %v2130, %v2113
  %v2133 = vxor.u32 %v2131, 2147483648
  %v2134 = vxor.u32 %v2132, 2147483648
  %v2135 = vmul.f32 %v2133, 1.442695
  %v2136 = vpow.pop %v2135
  %v2137 = vmul.f32 %v2134, 1.442695
  %v2138 = vpow.pop %v2137
  %v2139 = vadd.f32 %v2136, 1.0
  %v2140 = vadd.f32 %v2138, 1.0
  %v2141 = vrcp.pop %v2139
  %v2142 = vmul.f32 %v2139, %v2141
  %v2143 = vsub.f32 1.0, %v2142
  %v2144 = vmul.f32 %v2141, %v2143
  %v2145 = vadd.f32 %v2141, %v2144
  %vm2146 = vweird.f32 %v2139
  %vm2147 = vweird.f32 %v2141
  %vm2148 = vmor %vm2146, %vm2147
  %v2149 = vsel %vm2148, %v2141, %v2145
  %v2150 = vand.u32 2147483647, %v2139
  %vm2151 = vcmp.eq.f32.partialorder %v2150, 8.507059e+37
  %v2152 = vand.u32 %v2139, 2147483648
  %v2153 = vor.u32 1.1754944e-38, %v2152
  %v2154 = vsel %vm2151, %v2153, %v2149
  %v2155 = vmul.f32 1.0, %v2154
  %v2156 = vrcp.pop %v2140
  %v2157 = vmul.f32 %v2140, %v2156
  %v2158 = vsub.f32 1.0, %v2157
  %v2159 = vmul.f32 %v2156, %v2158
  %v2160 = vadd.f32 %v2156, %v2159
  %vm2161 = vweird.f32 %v2140
  %vm2162 = vweird.f32 %v2156
  %vm2163 = vmor %vm2161, %vm2162
  %v2164 = vsel %vm2163, %v2156, %v2160
  %v2165 = vand.u32 2147483647, %v2140
  %vm2166 = vcmp.eq.f32.partialorder %v2165, 8.507059e+37
  %v2167 = vand.u32 %v2140, 2147483648
  %v2168 = vor.u32 1.1754944e-38, %v2167
  %v2169 = vsel %vm2166, %v2168, %v2164
  %v2170 = vmul.f32 1.0, %v2169
  %v2171 = vmul.f32 %v2155, %v2126
  %v2172 = vunpack.c.l.bf16 %v2088
  %v2173 = vadd.f32 %v2172, %v2171
  %v2174 = vtanh.pop %v2173
  %v2175 = vsub.f32 %v2081, %v2174
  %v2176 = vmul.f32 %v2170, %v2175
  %v2177 = vadd.f32 %v2174, %v2176
  %v2178 = vld [vmem:[#allocation2 + $0x14] sm:$0xf]
  %v2179 = vunpack.c.l.bf16 %v2178
  %v2180 = vadd.f32 %v2177, %v2179
  %v2181 = vpack.c.bf16 %v2180, %v2180
  %2182 = vst [vmem:[#allocation2 + $0x14] sm:$0xf] %v2181
  %v2183 = vld [vmem:[#allocation3 + $0x48] sm:$0xff]
  %v2184 = vld [vmem:[#allocation3 + $0x50] sm:$0xf]
  %v2185 = vpack.c.bf16 %v2177, %v2177
  %2186 = vmatpush.bf16.msra.mxu0 %v1583
  %2187 = vmatpush.bf16.msra.mxu0 %v1580
  %2188 = vmatpush.bf16.msra.mxu0 %v1577
  %2189 = vmatpush.bf16.msra.mxu0 %v1574
  %2190 = vmatpush.bf16.msra.mxu0 %v1571
  %2191 = vmatpush.bf16.msra.mxu0 %v1568
  %2192 = vmatpush.bf16.msra.mxu0 %v1565
  %2193 = vmatpush.bf16.msra.mxu0 %v1562
  %2194 = vmatmul.bf16.gmra.mxu0 %v2185
  %v2195 = vpop.f32.mrf.mxu0
  %v2196 = vadd.f32 %v1472, %v2195
  %v2197 = vpop.f32.mrf.mxu0
  %2198 = vdwg.mxu0
  %2199 = vmatpush.bf16.msra.mxu0 %v1584
  %2200 = vmatpush.bf16.msra.mxu0 %v1581
  %2201 = vmatpush.bf16.msra.mxu0 %v1578
  %2202 = vmatpush.bf16.msra.mxu0 %v1575
  %2203 = vmatpush.bf16.msra.mxu0 %v1572
  %2204 = vmatpush.bf16.msra.mxu0 %v1569
  %2205 = vmatpush.bf16.msra.mxu0 %v1566
  %2206 = vmatpush.bf16.msra.mxu0 %v1563
  %2207 = vmatmul.bf16.gmra.mxu0 %v2185
  %v2208 = vpop.f32.mrf.mxu0
  %v2209 = vadd.f32 %v1473, %v2208
  %v2210 = vpop.f32.mrf.mxu0
  %2211 = vdwg.mxu0
  %2212 = vmatpush.bf16.msra.mxu0 %v1585
  %2213 = vmatpush.bf16.msra.mxu0 %v1582
  %2214 = vmatpush.bf16.msra.mxu0 %v1579
  %2215 = vmatpush.bf16.msra.mxu0 %v1576
  %2216 = vmatpush.bf16.msra.mxu0 %v1573
  %2217 = vmatpush.bf16.msra.mxu0 %v1570
  %2218 = vmatpush.bf16.msra.mxu0 %v1567
  %2219 = vmatpush.bf16.msra.mxu0 %v1564
  %2220 = vmatmul.bf16.gmra.mxu0 %v2185
  %v2221 = vpop.f32.mrf.mxu0
  %v2222 = vadd.f32 %v1474, %v2221
  %v2223 = vpop.f32.mrf.mxu0
  %2224 = vdwg.mxu0
  %v2225 = vunpack.c.l.bf16 %v2183
  %v2226 = vunpack.c.h.bf16 %v2183
  %v2227 = vadd.f32 %v2225, %v2196
  %v2228 = vadd.f32 %v2226, %v2209
  %v2229 = vxor.u32 %v2227, 2147483648
  %v2230 = vxor.u32 %v2228, 2147483648
  %v2231 = vmul.f32 %v2229, 1.442695
  %v2232 = vpow.pop %v2231
  %v2233 = vmul.f32 %v2230, 1.442695
  %v2234 = vpow.pop %v2233
  %v2235 = vadd.f32 %v2232, 1.0
  %v2236 = vadd.f32 %v2234, 1.0
  %v2237 = vrcp.pop %v2235
  %v2238 = vmul.f32 %v2235, %v2237
  %v2239 = vsub.f32 1.0, %v2238
  %v2240 = vmul.f32 %v2237, %v2239
  %v2241 = vadd.f32 %v2237, %v2240
  %vm2242 = vweird.f32 %v2235
  %vm2243 = vweird.f32 %v2237
  %vm2244 = vmor %vm2242, %vm2243
  %v2245 = vsel %vm2244, %v2237, %v2241
  %v2246 = vand.u32 2147483647, %v2235
  %vm2247 = vcmp.eq.f32.partialorder %v2246, 8.507059e+37
  %v2248 = vand.u32 %v2235, 2147483648
  %v2249 = vor.u32 1.1754944e-38, %v2248
  %v2250 = vsel %vm2247, %v2249, %v2245
  %v2251 = vmul.f32 1.0, %v2250
  %v2252 = vrcp.pop %v2236
  %v2253 = vmul.f32 %v2236, %v2252
  %v2254 = vsub.f32 1.0, %v2253
  %v2255 = vmul.f32 %v2252, %v2254
  %v2256 = vadd.f32 %v2252, %v2255
  %vm2257 = vweird.f32 %v2236
  %vm2258 = vweird.f32 %v2252
  %vm2259 = vmor %vm2257, %vm2258
  %v2260 = vsel %vm2259, %v2252, %v2256
  %v2261 = vand.u32 2147483647, %v2236
  %vm2262 = vcmp.eq.f32.partialorder %v2261, 8.507059e+37
  %v2263 = vand.u32 %v2236, 2147483648
  %v2264 = vor.u32 1.1754944e-38, %v2263
  %v2265 = vsel %vm2262, %v2264, %v2260
  %v2266 = vmul.f32 1.0, %v2265
  %v2267 = vmul.f32 %v2251, %v2222
  %v2268 = vunpack.c.l.bf16 %v2184
  %v2269 = vadd.f32 %v2268, %v2267
  %v2270 = vtanh.pop %v2269
  %v2271 = vsub.f32 %v2177, %v2270
  %v2272 = vmul.f32 %v2266, %v2271
  %v2273 = vadd.f32 %v2270, %v2272
  %v2274 = vld [vmem:[#allocation2 + $0x18] sm:$0xf]
  %v2275 = vunpack.c.l.bf16 %v2274
  %v2276 = vadd.f32 %v2273, %v2275
  %v2277 = vpack.c.bf16 %v2276, %v2276
  %2278 = vst [vmem:[#allocation2 + $0x18] sm:$0xf] %v2277
  %v2279 = vld [vmem:[#allocation3 + $0x54] sm:$0xff]
  %v2280 = vld [vmem:[#allocation3 + $0x5c] sm:$0xf]
  %v2281 = vpack.c.bf16 %v2273, %v2273
  %2282 = vmatpush.bf16.msra.mxu0 %v1583
  %2283 = vmatpush.bf16.msra.mxu0 %v1580
  %2284 = vmatpush.bf16.msra.mxu0 %v1577
  %2285 = vmatpush.bf16.msra.mxu0 %v1574
  %2286 = vmatpush.bf16.msra.mxu0 %v1571
  %2287 = vmatpush.bf16.msra.mxu0 %v1568
  %2288 = vmatpush.bf16.msra.mxu0 %v1565
  %2289 = vmatpush.bf16.msra.mxu0 %v1562
  %2290 = vmatmul.bf16.gmra.mxu0 %v2281
  %v2291 = vpop.f32.mrf.mxu0
  %v2292 = vadd.f32 %v1472, %v2291
  %v2293 = vpop.f32.mrf.mxu0
  %2294 = vdwg.mxu0
  %2295 = vmatpush.bf16.msra.mxu0 %v1584
  %2296 = vmatpush.bf16.msra.mxu0 %v1581
  %2297 = vmatpush.bf16.msra.mxu0 %v1578
  %2298 = vmatpush.bf16.msra.mxu0 %v1575
  %2299 = vmatpush.bf16.msra.mxu0 %v1572
  %2300 = vmatpush.bf16.msra.mxu0 %v1569
  %2301 = vmatpush.bf16.msra.mxu0 %v1566
  %2302 = vmatpush.bf16.msra.mxu0 %v1563
  %2303 = vmatmul.bf16.gmra.mxu0 %v2281
  %v2304 = vpop.f32.mrf.mxu0
  %v2305 = vadd.f32 %v1473, %v2304
  %v2306 = vpop.f32.mrf.mxu0
  %2307 = vdwg.mxu0
  %2308 = vmatpush.bf16.msra.mxu0 %v1585
  %2309 = vmatpush.bf16.msra.mxu0 %v1582
  %2310 = vmatpush.bf16.msra.mxu0 %v1579
  %2311 = vmatpush.bf16.msra.mxu0 %v1576
  %2312 = vmatpush.bf16.msra.mxu0 %v1573
  %2313 = vmatpush.bf16.msra.mxu0 %v1570
  %2314 = vmatpush.bf16.msra.mxu0 %v1567
  %2315 = vmatpush.bf16.msra.mxu0 %v1564
  %2316 = vmatmul.bf16.gmra.mxu0 %v2281
  %v2317 = vpop.f32.mrf.mxu0
  %v2318 = vadd.f32 %v1474, %v2317
  %v2319 = vpop.f32.mrf.mxu0
  %2320 = vdwg.mxu0
  %v2321 = vunpack.c.l.bf16 %v2279
  %v2322 = vunpack.c.h.bf16 %v2279
  %v2323 = vadd.f32 %v2321, %v2292
  %v2324 = vadd.f32 %v2322, %v2305
  %v2325 = vxor.u32 %v2323, 2147483648
  %v2326 = vxor.u32 %v2324, 2147483648
  %v2327 = vmul.f32 %v2325, 1.442695
  %v2328 = vpow.pop %v2327
  %v2329 = vmul.f32 %v2326, 1.442695
  %v2330 = vpow.pop %v2329
  %v2331 = vadd.f32 %v2328, 1.0
  %v2332 = vadd.f32 %v2330, 1.0
  %v2333 = vrcp.pop %v2331
  %v2334 = vmul.f32 %v2331, %v2333
  %v2335 = vsub.f32 1.0, %v2334
  %v2336 = vmul.f32 %v2333, %v2335
  %v2337 = vadd.f32 %v2333, %v2336
  %vm2338 = vweird.f32 %v2331
  %vm2339 = vweird.f32 %v2333
  %vm2340 = vmor %vm2338, %vm2339
  %v2341 = vsel %vm2340, %v2333, %v2337
  %v2342 = vand.u32 2147483647, %v2331
  %vm2343 = vcmp.eq.f32.partialorder %v2342, 8.507059e+37
  %v2344 = vand.u32 %v2331, 2147483648
  %v2345 = vor.u32 1.1754944e-38, %v2344
  %v2346 = vsel %vm2343, %v2345, %v2341
  %v2347 = vmul.f32 1.0, %v2346
  %v2348 = vrcp.pop %v2332
  %v2349 = vmul.f32 %v2332, %v2348
  %v2350 = vsub.f32 1.0, %v2349
  %v2351 = vmul.f32 %v2348, %v2350
  %v2352 = vadd.f32 %v2348, %v2351
  %vm2353 = vweird.f32 %v2332
  %vm2354 = vweird.f32 %v2348
  %vm2355 = vmor %vm2353, %vm2354
  %v2356 = vsel %vm2355, %v2348, %v2352
  %v2357 = vand.u32 2147483647, %v2332
  %vm2358 = vcmp.eq.f32.partialorder %v2357, 8.507059e+37
  %v2359 = vand.u32 %v2332, 2147483648
  %v2360 = vor.u32 1.1754944e-38, %v2359
  %v2361 = vsel %vm2358, %v2360, %v2356
  %v2362 = vmul.f32 1.0, %v2361
  %v2363 = vmul.f32 %v2347, %v2318
  %v2364 = vunpack.c.l.bf16 %v2280
  %v2365 = vadd.f32 %v2364, %v2363
  %v2366 = vtanh.pop %v2365
  %v2367 = vsub.f32 %v2273, %v2366
  %v2368 = vmul.f32 %v2362, %v2367
  %v2369 = vadd.f32 %v2366, %v2368
  %v2370 = vld [vmem:[#allocation2 + $0x1c] sm:$0xf]
  %v2371 = vunpack.c.l.bf16 %v2370
  %v2372 = vadd.f32 %v2369, %v2371
  %v2373 = vpack.c.bf16 %v2372, %v2372
  %2374 = vst [vmem:[#allocation2 + $0x1c] sm:$0xf] %v2373
  %2375 = vst [vmem:[%s11] sm:$0xff] %v2369
  %s2376 = sshll.u32 %s742, 4
  %2377 = dma.done %s609, %s2376
  %s2378 = sshll.u32 %s742, 4
  %2379 = dma.done %s676, %s2378
  %v2380 = vld [vmem:[%s675] sm:$0xff]
  %v2381 = vld [vmem:[%s675 + $0x8] sm:$0xf]
  %v2382 = vld [vmem:[%s675 + $0xc] sm:$0xff]
  %v2383 = vld [vmem:[%s675 + $0x14] sm:$0xf]
  %v2384 = vld [vmem:[%s675 + $0x18] sm:$0xff]
  %v2385 = vld [vmem:[%s675 + $0x20] sm:$0xf]
  %v2386 = vld [vmem:[%s675 + $0x24] sm:$0xff]
  %v2387 = vld [vmem:[%s675 + $0x2c] sm:$0xf]
  %v2388 = vld [vmem:[%s675 + $0x30] sm:$0xff]
  %v2389 = vld [vmem:[%s675 + $0x38] sm:$0xf]
  %v2390 = vld [vmem:[%s675 + $0x3c] sm:$0xff]
  %v2391 = vld [vmem:[%s675 + $0x44] sm:$0xf]
  %v2392 = vld [vmem:[%s675 + $0x48] sm:$0xff]
  %v2393 = vld [vmem:[%s675 + $0x50] sm:$0xf]
  %v2394 = vld [vmem:[%s675 + $0x54] sm:$0xff]
  %v2395 = vld [vmem:[%s675 + $0x5c] sm:$0xf]
  %v2396 = vld [vmem:[%s675 + $0x60] sm:$0xff]
  %v2397 = vld [vmem:[%s675 + $0x68] sm:$0xf]
  %v2398 = vld [vmem:[%s675 + $0x6c] sm:$0xff]
  %v2399 = vld [vmem:[%s675 + $0x74] sm:$0xf]
  %v2400 = vld [vmem:[%s675 + $0x78] sm:$0xff]
  %v2401 = vld [vmem:[%s675 + $0x80] sm:$0xf]
  %v2402 = vld [vmem:[%s675 + $0x84] sm:$0xff]
  %v2403 = vld [vmem:[%s675 + $0x8c] sm:$0xf]
  %v2404 = vld [vmem:[%s675 + $0x90] sm:$0xff]
  %v2405 = vld [vmem:[%s675 + $0x98] sm:$0xf]
  %v2406 = vld [vmem:[%s675 + $0x9c] sm:$0xff]
  %v2407 = vld [vmem:[%s675 + $0xa4] sm:$0xf]
  %v2408 = vld [vmem:[%s675 + $0xa8] sm:$0xff]
  %v2409 = vld [vmem:[%s675 + $0xb0] sm:$0xf]
  %v2410 = vld [vmem:[%s675 + $0xb4] sm:$0xff]
  %v2411 = vld [vmem:[%s675 + $0xbc] sm:$0xf]
  %v2412 = vld [vmem:[#allocation2] sm:$0xf]
  %v2413 = vld [vmem:[#allocation2 + $0x4] sm:$0xf]
  %v2414 = vld [vmem:[#allocation2 + $0x8] sm:$0xf]
  %v2415 = vld [vmem:[#allocation2 + $0xc] sm:$0xf]
  %v2416 = vld [vmem:[#allocation2 + $0x10] sm:$0xf]
  %v2417 = vld [vmem:[#allocation2 + $0x14] sm:$0xf]
  %v2418 = vld [vmem:[#allocation2 + $0x18] sm:$0xf]
  %v2419 = vld [vmem:[#allocation2 + $0x1c] sm:$0xf]
  %v2420 = vld [vmem:[#allocation2 + $0x20] sm:$0xf]
  %v2421 = vld [vmem:[#allocation2 + $0x24] sm:$0xf]
  %v2422 = vld [vmem:[#allocation2 + $0x28] sm:$0xf]
  %v2423 = vld [vmem:[#allocation2 + $0x2c] sm:$0xf]
  %v2424 = vld [vmem:[#allocation2 + $0x30] sm:$0xf]
  %v2425 = vld [vmem:[#allocation2 + $0x34] sm:$0xf]
  %v2426 = vld [vmem:[#allocation2 + $0x38] sm:$0xf]
  %v2427 = vld [vmem:[#allocation2 + $0x3c] sm:$0xf]
  %v2428 = vld [vmem:[#allocation2 + $0x40] sm:$0xf]
  %v2429 = vld [vmem:[#allocation2 + $0x44] sm:$0xf]
  %v2430 = vld [vmem:[#allocation2 + $0x48] sm:$0xf]
  %v2431 = vld [vmem:[#allocation2 + $0x4c] sm:$0xf]
  %v2432 = vld [vmem:[#allocation2 + $0x50] sm:$0xf]
  %v2433 = vld [vmem:[#allocation2 + $0x54] sm:$0xf]
  %v2434 = vld [vmem:[#allocation2 + $0x58] sm:$0xf]
  %v2435 = vld [vmem:[#allocation2 + $0x5c] sm:$0xf]
  %v2436 = vld [vmem:[#allocation2 + $0x60] sm:$0xf]
  %v2437 = vld [vmem:[#allocation2 + $0x64] sm:$0xf]
  %v2438 = vld [vmem:[#allocation2 + $0x68] sm:$0xf]
  %v2439 = vld [vmem:[#allocation2 + $0x6c] sm:$0xf]
  %v2440 = vld [vmem:[#allocation2 + $0x70] sm:$0xf]
  %v2441 = vld [vmem:[#allocation2 + $0x74] sm:$0xf]
  %v2442 = vld [vmem:[#allocation2 + $0x78] sm:$0xf]
  %v2443 = vld [vmem:[#allocation2 + $0x7c] sm:$0xf]
  %v2444 = vld [vmem:[%s608] sm:$0xff]
  %v2445 = vld [vmem:[%s608 + $0x8] sm:$0xf]
  %v2446 = vld [vmem:[%s608 + $0xc] sm:$0xff]
  %v2447 = vld [vmem:[%s608 + $0x14] sm:$0xf]
  %v2448 = vld [vmem:[%s608 + $0x18] sm:$0xff]
  %v2449 = vld [vmem:[%s608 + $0x20] sm:$0xf]
  %v2450 = vld [vmem:[%s608 + $0x24] sm:$0xff]
  %v2451 = vld [vmem:[%s608 + $0x2c] sm:$0xf]
  %v2452 = vld [vmem:[%s608 + $0x30] sm:$0xff]
  %v2453 = vld [vmem:[%s608 + $0x38] sm:$0xf]
  %v2454 = vld [vmem:[%s608 + $0x3c] sm:$0xff]
  %v2455 = vld [vmem:[%s608 + $0x44] sm:$0xf]
  %v2456 = vld [vmem:[%s608 + $0x48] sm:$0xff]
  %v2457 = vld [vmem:[%s608 + $0x50] sm:$0xf]
  %v2458 = vld [vmem:[%s608 + $0x54] sm:$0xff]
  %v2459 = vld [vmem:[%s608 + $0x5c] sm:$0xf]
  %v2460 = vld [vmem:[%s608 + $0x60] sm:$0xff]
  %v2461 = vld [vmem:[%s608 + $0x68] sm:$0xf]
  %v2462 = vld [vmem:[%s608 + $0x6c] sm:$0xff]
  %v2463 = vld [vmem:[%s608 + $0x74] sm:$0xf]
  %v2464 = vld [vmem:[%s608 + $0x78] sm:$0xff]
  %v2465 = vld [vmem:[%s608 + $0x80] sm:$0xf]
  %v2466 = vld [vmem:[%s608 + $0x84] sm:$0xff]
  %v2467 = vld [vmem:[%s608 + $0x8c] sm:$0xf]
  %v2468 = vld [vmem:[%s608 + $0x90] sm:$0xff]
  %v2469 = vld [vmem:[%s608 + $0x98] sm:$0xf]
  %v2470 = vld [vmem:[%s608 + $0x9c] sm:$0xff]
  %v2471 = vld [vmem:[%s608 + $0xa4] sm:$0xf]
  %v2472 = vld [vmem:[%s608 + $0xa8] sm:$0xff]
  %v2473 = vld [vmem:[%s608 + $0xb0] sm:$0xf]
  %v2474 = vld [vmem:[%s608 + $0xb4] sm:$0xff]
  %v2475 = vld [vmem:[%s608 + $0xbc] sm:$0xf]
  %s2476 = scalar_lea.vmem %s6, 3
  %v2477 = vld [vmem:[%s2476] sm:$0x7]
  %v2479 = vperm.slane %v2477, 0
  %v2480 = vperm.slane %v2477, 1
  %v2481 = vperm.slane %v2477, 2
  %v2517 = vunpack.c.l.b16 %v2412
  %v2518 = vunpack.c.l.b16 %v2413
  %v2519 = vunpack.c.l.b16 %v2414
  %v2520 = vunpack.c.l.b16 %v2415
  %v2521 = vunpack.c.l.b16 %v2416
  %v2522 = vunpack.c.l.b16 %v2417
  %v2523 = vunpack.c.l.b16 %v2418
  %v2524 = vunpack.c.l.b16 %v2419
  %v2525 = vunpack.c.l.b16 %v2420
  %v2526 = vunpack.c.l.b16 %v2421
  %v2527 = vunpack.c.l.b16 %v2422
  %v2528 = vunpack.c.l.b16 %v2423
  %v2529 = vunpack.c.l.b16 %v2424
  %v2530 = vunpack.c.l.b16 %v2425
  %v2531 = vunpack.c.l.b16 %v2426
  %v2532 = vunpack.c.l.b16 %v2427
  %v2533 = vunpack.c.l.b16 %v2428
  %v2534 = vunpack.c.l.b16 %v2429
  %v2535 = vunpack.c.l.b16 %v2430
  %v2536 = vunpack.c.l.b16 %v2431
  %v2537 = vunpack.c.l.b16 %v2432
  %v2538 = vunpack.c.l.b16 %v2433
  %v2539 = vunpack.c.l.b16 %v2434
  %v2540 = vunpack.c.l.b16 %v2435
  %v2541 = vunpack.c.l.b16 %v2436
  %v2542 = vunpack.c.l.b16 %v2437
  %v2543 = vunpack.c.l.b16 %v2438
  %v2544 = vunpack.c.l.b16 %v2439
  %v2545 = vunpack.c.l.b16 %v2440
  %v2546 = vunpack.c.l.b16 %v2441
  %v2547 = vunpack.c.l.b16 %v2442
  %v2548 = vunpack.c.l.b16 %v2443
  %v2549 = vpack.c.b16 %v2518, %v2517
  %v2550 = vpack.c.b16 %v2520, %v2519
  %v2551 = vpack.c.b16 %v2522, %v2521
  %v2552 = vpack.c.b16 %v2524, %v2523
  %v2553 = vpack.c.b16 %v2526, %v2525
  %v2554 = vpack.c.b16 %v2528, %v2527
  %v2555 = vpack.c.b16 %v2530, %v2529
  %v2556 = vpack.c.b16 %v2532, %v2531
  %v2557 = vpack.c.b16 %v2534, %v2533
  %v2558 = vpack.c.b16 %v2536, %v2535
  %v2559 = vpack.c.b16 %v2538, %v2537
  %v2560 = vpack.c.b16 %v2540, %v2539
  %v2561 = vpack.c.b16 %v2542, %v2541
  %v2562 = vpack.c.b16 %v2544, %v2543
  %v2563 = vpack.c.b16 %v2546, %v2545
  %v2564 = vpack.c.b16 %v2548, %v2547
  %v2613 = vunpack.c.l.b16 %v2444
  %v2614 = vunpack.c.h.b16 %v2444
  %v2615 = vunpack.c.l.b16 %v2445
  %v2616 = vunpack.c.l.b16 %v2446
  %v2617 = vunpack.c.h.b16 %v2446
  %v2618 = vunpack.c.l.b16 %v2447
  %v2619 = vunpack.c.l.b16 %v2448
  %v2620 = vunpack.c.h.b16 %v2448
  %v2621 = vunpack.c.l.b16 %v2449
  %v2622 = vunpack.c.l.b16 %v2450
  %v2623 = vunpack.c.h.b16 %v2450
  %v2624 = vunpack.c.l.b16 %v2451
  %v2625 = vunpack.c.l.b16 %v2452
  %v2626 = vunpack.c.h.b16 %v2452
  %v2627 = vunpack.c.l.b16 %v2453
  %v2628 = vunpack.c.l.b16 %v2454
  %v2629 = vunpack.c.h.b16 %v2454
  %v2630 = vunpack.c.l.b16 %v2455
  %v2631 = vunpack.c.l.b16 %v2456
  %v2632 = vunpack.c.h.b16 %v2456
  %v2633 = vunpack.c.l.b16 %v2457
  %v2634 = vunpack.c.l.b16 %v2458
  %v2635 = vunpack.c.h.b16 %v2458
  %v2636 = vunpack.c.l.b16 %v2459
  %v2637 = vunpack.c.l.b16 %v2460
  %v2638 = vunpack.c.h.b16 %v2460
  %v2639 = vunpack.c.l.b16 %v2461
  %v2640 = vunpack.c.l.b16 %v2462
  %v2641 = vunpack.c.h.b16 %v2462
  %v2642 = vunpack.c.l.b16 %v2463
  %v2643 = vunpack.c.l.b16 %v2464
  %v2644 = vunpack.c.h.b16 %v2464
  %v2645 = vunpack.c.l.b16 %v2465
  %v2646 = vunpack.c.l.b16 %v2466
  %v2647 = vunpack.c.h.b16 %v2466
  %v2648 = vunpack.c.l.b16 %v2467
  %v2649 = vunpack.c.l.b16 %v2468
  %v2650 = vunpack.c.h.b16 %v2468
  %v2651 = vunpack.c.l.b16 %v2469
  %v2652 = vunpack.c.l.b16 %v2470
  %v2653 = vunpack.c.h.b16 %v2470
  %v2654 = vunpack.c.l.b16 %v2471
  %v2655 = vunpack.c.l.b16 %v2472
  %v2656 = vunpack.c.h.b16 %v2472
  %v2657 = vunpack.c.l.b16 %v2473
  %v2658 = vunpack.c.l.b16 %v2474
  %v2659 = vunpack.c.h.b16 %v2474
  %v2660 = vunpack.c.l.b16 %v2475
  %v2661 = vpack.c.b16 %v2616, %v2613
  %v2662 = vpack.c.b16 %v2617, %v2614
  %v2663 = vpack.c.b16 %v2618, %v2615
  %v2664 = vpack.c.b16 %v2622, %v2619
  %v2665 = vpack.c.b16 %v2623, %v2620
  %v2666 = vpack.c.b16 %v2624, %v2621
  %v2667 = vpack.c.b16 %v2628, %v2625
  %v2668 = vpack.c.b16 %v2629, %v2626
  %v2669 = vpack.c.b16 %v2630, %v2627
  %v2670 = vpack.c.b16 %v2634, %v2631
  %v2671 = vpack.c.b16 %v2635, %v2632
  %v2672 = vpack.c.b16 %v2636, %v2633
  %v2673 = vpack.c.b16 %v2640, %v2637
  %v2674 = vpack.c.b16 %v2641, %v2638
  %v2675 = vpack.c.b16 %v2642, %v2639
  %v2676 = vpack.c.b16 %v2646, %v2643
  %v2677 = vpack.c.b16 %v2647, %v2644
  %v2678 = vpack.c.b16 %v2648, %v2645
  %v2679 = vpack.c.b16 %v2652, %v2649
  %v2680 = vpack.c.b16 %v2653, %v2650
  %v2681 = vpack.c.b16 %v2654, %v2651
  %v2682 = vpack.c.b16 %v2658, %v2655
  %v2683 = vpack.c.b16 %v2659, %v2656
  %v2684 = vpack.c.b16 %v2660, %v2657
  %2709 = vmatpush.bf16.msra.mxu0 %v2682
  %2710 = vmatpush.bf16.msra.mxu0 %v2679
  %2711 = vmatpush.bf16.msra.mxu0 %v2676
  %2712 = vmatpush.bf16.msra.mxu0 %v2673
  %2713 = vmatpush.bf16.msra.mxu0 %v2670
  %2714 = vmatpush.bf16.msra.mxu0 %v2667
  %2715 = vmatpush.bf16.msra.mxu0 %v2664
  %2716 = vmatpush.bf16.msra.mxu0 %v2661
  %2717 = vmatmul.bf16.gmra.mxu0 %v2549
  %v2718 = vpop.f32.mrf.mxu0
  %v2719 = vadd.f32 %v2479, %v2718
  %v2720 = vpop.f32.mrf.mxu0
  %v2721 = vadd.f32 %v2479, %v2720
  %2722 = vmatmul.bf16.gmra.mxu0 %v2550
  %v2723 = vpop.f32.mrf.mxu0
  %v2724 = vadd.f32 %v2479, %v2723
  %v2725 = vpop.f32.mrf.mxu0
  %v2726 = vadd.f32 %v2479, %v2725
  %2727 = vmatmul.bf16.gmra.mxu0 %v2551
  %v2728 = vpop.f32.mrf.mxu0
  %v2729 = vadd.f32 %v2479, %v2728
  %v2730 = vpop.f32.mrf.mxu0
  %v2731 = vadd.f32 %v2479, %v2730
  %2732 = vmatmul.bf16.gmra.mxu0 %v2552
  %v2733 = vpop.f32.mrf.mxu0
  %v2734 = vadd.f32 %v2479, %v2733
  %v2735 = vpop.f32.mrf.mxu0
  %v2736 = vadd.f32 %v2479, %v2735
  %2737 = vmatmul.bf16.gmra.mxu0 %v2553
  %v2738 = vpop.f32.mrf.mxu0
  %v2739 = vadd.f32 %v2479, %v2738
  %v2740 = vpop.f32.mrf.mxu0
  %v2741 = vadd.f32 %v2479, %v2740
  %2742 = vmatmul.bf16.gmra.mxu0 %v2554
  %v2743 = vpop.f32.mrf.mxu0
  %v2744 = vadd.f32 %v2479, %v2743
  %v2745 = vpop.f32.mrf.mxu0
  %v2746 = vadd.f32 %v2479, %v2745
  %2747 = vmatmul.bf16.gmra.mxu0 %v2555
  %v2748 = vpop.f32.mrf.mxu0
  %v2749 = vadd.f32 %v2479, %v2748
  %v2750 = vpop.f32.mrf.mxu0
  %v2751 = vadd.f32 %v2479, %v2750
  %2752 = vmatmul.bf16.gmra.mxu0 %v2556
  %v2753 = vpop.f32.mrf.mxu0
  %v2754 = vadd.f32 %v2479, %v2753
  %v2755 = vpop.f32.mrf.mxu0
  %v2756 = vadd.f32 %v2479, %v2755
  %2757 = vmatmul.bf16.gmra.mxu0 %v2557
  %v2758 = vpop.f32.mrf.mxu0
  %v2759 = vadd.f32 %v2479, %v2758
  %v2760 = vpop.f32.mrf.mxu0
  %v2761 = vadd.f32 %v2479, %v2760
  %2762 = vmatmul.bf16.gmra.mxu0 %v2558
  %v2763 = vpop.f32.mrf.mxu0
  %v2764 = vadd.f32 %v2479, %v2763
  %v2765 = vpop.f32.mrf.mxu0
  %v2766 = vadd.f32 %v2479, %v2765
  %2767 = vmatmul.bf16.gmra.mxu0 %v2559
  %v2768 = vpop.f32.mrf.mxu0
  %v2769 = vadd.f32 %v2479, %v2768
  %v2770 = vpop.f32.mrf.mxu0
  %v2771 = vadd.f32 %v2479, %v2770
  %2772 = vmatmul.bf16.gmra.mxu0 %v2560
  %v2773 = vpop.f32.mrf.mxu0
  %v2774 = vadd.f32 %v2479, %v2773
  %v2775 = vpop.f32.mrf.mxu0
  %v2776 = vadd.f32 %v2479, %v2775
  %2777 = vmatmul.bf16.gmra.mxu0 %v2561
  %v2778 = vpop.f32.mrf.mxu0
  %v2779 = vadd.f32 %v2479, %v2778
  %v2780 = vpop.f32.mrf.mxu0
  %v2781 = vadd.f32 %v2479, %v2780
  %2782 = vmatmul.bf16.gmra.mxu0 %v2562
  %v2783 = vpop.f32.mrf.mxu0
  %v2784 = vadd.f32 %v2479, %v2783
  %v2785 = vpop.f32.mrf.mxu0
  %v2786 = vadd.f32 %v2479, %v2785
  %2787 = vmatmul.bf16.gmra.mxu0 %v2563
  %v2788 = vpop.f32.mrf.mxu0
  %v2789 = vadd.f32 %v2479, %v2788
  %v2790 = vpop.f32.mrf.mxu0
  %v2791 = vadd.f32 %v2479, %v2790
  %2792 = vmatmul.bf16.gmra.mxu0 %v2564
  %v2793 = vpop.f32.mrf.mxu0
  %v2794 = vadd.f32 %v2479, %v2793
  %v2795 = vpop.f32.mrf.mxu0
  %v2796 = vadd.f32 %v2479, %v2795
  %2797 = vdwg.mxu0
  %2798 = vmatpush.bf16.msra.mxu0 %v2683
  %2799 = vmatpush.bf16.msra.mxu0 %v2680
  %2800 = vmatpush.bf16.msra.mxu0 %v2677
  %2801 = vmatpush.bf16.msra.mxu0 %v2674
  %2802 = vmatpush.bf16.msra.mxu0 %v2671
  %2803 = vmatpush.bf16.msra.mxu0 %v2668
  %2804 = vmatpush.bf16.msra.mxu0 %v2665
  %2805 = vmatpush.bf16.msra.mxu0 %v2662
  %2806 = vmatmul.bf16.gmra.mxu0 %v2549
  %v2807 = vpop.f32.mrf.mxu0
  %v2808 = vadd.f32 %v2480, %v2807
  %v2809 = vpop.f32.mrf.mxu0
  %v2810 = vadd.f32 %v2480, %v2809
  %2811 = vmatmul.bf16.gmra.mxu0 %v2550
  %v2812 = vpop.f32.mrf.mxu0
  %v2813 = vadd.f32 %v2480, %v2812
  %v2814 = vpop.f32.mrf.mxu0
  %v2815 = vadd.f32 %v2480, %v2814
  %2816 = vmatmul.bf16.gmra.mxu0 %v2551
  %v2817 = vpop.f32.mrf.mxu0
  %v2818 = vadd.f32 %v2480, %v2817
  %v2819 = vpop.f32.mrf.mxu0
  %v2820 = vadd.f32 %v2480, %v2819
  %2821 = vmatmul.bf16.gmra.mxu0 %v2552
  %v2822 = vpop.f32.mrf.mxu0
  %v2823 = vadd.f32 %v2480, %v2822
  %v2824 = vpop.f32.mrf.mxu0
  %v2825 = vadd.f32 %v2480, %v2824
  %2826 = vmatmul.bf16.gmra.mxu0 %v2553
  %v2827 = vpop.f32.mrf.mxu0
  %v2828 = vadd.f32 %v2480, %v2827
  %v2829 = vpop.f32.mrf.mxu0
  %v2830 = vadd.f32 %v2480, %v2829
  %2831 = vmatmul.bf16.gmra.mxu0 %v2554
  %v2832 = vpop.f32.mrf.mxu0
  %v2833 = vadd.f32 %v2480, %v2832
  %v2834 = vpop.f32.mrf.mxu0
  %v2835 = vadd.f32 %v2480, %v2834
  %2836 = vmatmul.bf16.gmra.mxu0 %v2555
  %v2837 = vpop.f32.mrf.mxu0
  %v2838 = vadd.f32 %v2480, %v2837
  %v2839 = vpop.f32.mrf.mxu0
  %v2840 = vadd.f32 %v2480, %v2839
  %2841 = vmatmul.bf16.gmra.mxu0 %v2556
  %v2842 = vpop.f32.mrf.mxu0
  %v2843 = vadd.f32 %v2480, %v2842
  %v2844 = vpop.f32.mrf.mxu0
  %v2845 = vadd.f32 %v2480, %v2844
  %2846 = vmatmul.bf16.gmra.mxu0 %v2557
  %v2847 = vpop.f32.mrf.mxu0
  %v2848 = vadd.f32 %v2480, %v2847
  %v2849 = vpop.f32.mrf.mxu0
  %v2850 = vadd.f32 %v2480, %v2849
  %2851 = vmatmul.bf16.gmra.mxu0 %v2558
  %v2852 = vpop.f32.mrf.mxu0
  %v2853 = vadd.f32 %v2480, %v2852
  %v2854 = vpop.f32.mrf.mxu0
  %v2855 = vadd.f32 %v2480, %v2854
  %2856 = vmatmul.bf16.gmra.mxu0 %v2559
  %v2857 = vpop.f32.mrf.mxu0
  %v2858 = vadd.f32 %v2480, %v2857
  %v2859 = vpop.f32.mrf.mxu0
  %v2860 = vadd.f32 %v2480, %v2859
  %2861 = vmatmul.bf16.gmra.mxu0 %v2560
  %v2862 = vpop.f32.mrf.mxu0
  %v2863 = vadd.f32 %v2480, %v2862
  %v2864 = vpop.f32.mrf.mxu0
  %v2865 = vadd.f32 %v2480, %v2864
  %2866 = vmatmul.bf16.gmra.mxu0 %v2561
  %v2867 = vpop.f32.mrf.mxu0
  %v2868 = vadd.f32 %v2480, %v2867
  %v2869 = vpop.f32.mrf.mxu0
  %v2870 = vadd.f32 %v2480, %v2869
  %2871 = vmatmul.bf16.gmra.mxu0 %v2562
  %v2872 = vpop.f32.mrf.mxu0
  %v2873 = vadd.f32 %v2480, %v2872
  %v2874 = vpop.f32.mrf.mxu0
  %v2875 = vadd.f32 %v2480, %v2874
  %2876 = vmatmul.bf16.gmra.mxu0 %v2563
  %v2877 = vpop.f32.mrf.mxu0
  %v2878 = vadd.f32 %v2480, %v2877
  %v2879 = vpop.f32.mrf.mxu0
  %v2880 = vadd.f32 %v2480, %v2879
  %2881 = vmatmul.bf16.gmra.mxu0 %v2564
  %v2882 = vpop.f32.mrf.mxu0
  %v2883 = vadd.f32 %v2480, %v2882
  %v2884 = vpop.f32.mrf.mxu0
  %v2885 = vadd.f32 %v2480, %v2884
  %2886 = vdwg.mxu0
  %2887 = vmatpush.bf16.msra.mxu0 %v2684
  %2888 = vmatpush.bf16.msra.mxu0 %v2681
  %2889 = vmatpush.bf16.msra.mxu0 %v2678
  %2890 = vmatpush.bf16.msra.mxu0 %v2675
  %2891 = vmatpush.bf16.msra.mxu0 %v2672
  %2892 = vmatpush.bf16.msra.mxu0 %v2669
  %2893 = vmatpush.bf16.msra.mxu0 %v2666
  %2894 = vmatpush.bf16.msra.mxu0 %v2663
  %2895 = vmatmul.bf16.gmra.mxu0 %v2549
  %v2896 = vpop.f32.mrf.mxu0
  %v2897 = vadd.f32 %v2481, %v2896
  %v2898 = vpop.f32.mrf.mxu0
  %v2899 = vadd.f32 %v2481, %v2898
  %2900 = vmatmul.bf16.gmra.mxu0 %v2550
  %v2901 = vpop.f32.mrf.mxu0
  %v2902 = vadd.f32 %v2481, %v2901
  %v2903 = vpop.f32.mrf.mxu0
  %v2904 = vadd.f32 %v2481, %v2903
  %2905 = vmatmul.bf16.gmra.mxu0 %v2551
  %v2906 = vpop.f32.mrf.mxu0
  %v2907 = vadd.f32 %v2481, %v2906
  %v2908 = vpop.f32.mrf.mxu0
  %v2909 = vadd.f32 %v2481, %v2908
  %2910 = vmatmul.bf16.gmra.mxu0 %v2552
  %v2911 = vpop.f32.mrf.mxu0
  %v2912 = vadd.f32 %v2481, %v2911
  %v2913 = vpop.f32.mrf.mxu0
  %v2914 = vadd.f32 %v2481, %v2913
  %2915 = vmatmul.bf16.gmra.mxu0 %v2553
  %v2916 = vpop.f32.mrf.mxu0
  %v2917 = vadd.f32 %v2481, %v2916
  %v2918 = vpop.f32.mrf.mxu0
  %v2919 = vadd.f32 %v2481, %v2918
  %2920 = vmatmul.bf16.gmra.mxu0 %v2554
  %v2921 = vpop.f32.mrf.mxu0
  %v2922 = vadd.f32 %v2481, %v2921
  %v2923 = vpop.f32.mrf.mxu0
  %v2924 = vadd.f32 %v2481, %v2923
  %2925 = vmatmul.bf16.gmra.mxu0 %v2555
  %v2926 = vpop.f32.mrf.mxu0
  %v2927 = vadd.f32 %v2481, %v2926
  %v2928 = vpop.f32.mrf.mxu0
  %v2929 = vadd.f32 %v2481, %v2928
  %2930 = vmatmul.bf16.gmra.mxu0 %v2556
  %v2931 = vpop.f32.mrf.mxu0
  %v2932 = vadd.f32 %v2481, %v2931
  %v2933 = vpop.f32.mrf.mxu0
  %v2934 = vadd.f32 %v2481, %v2933
  %2935 = vmatmul.bf16.gmra.mxu0 %v2557
  %v2936 = vpop.f32.mrf.mxu0
  %v2937 = vadd.f32 %v2481, %v2936
  %v2938 = vpop.f32.mrf.mxu0
  %v2939 = vadd.f32 %v2481, %v2938
  %2940 = vmatmul.bf16.gmra.mxu0 %v2558
  %v2941 = vpop.f32.mrf.mxu0
  %v2942 = vadd.f32 %v2481, %v2941
  %v2943 = vpop.f32.mrf.mxu0
  %v2944 = vadd.f32 %v2481, %v2943
  %2945 = vmatmul.bf16.gmra.mxu0 %v2559
  %v2946 = vpop.f32.mrf.mxu0
  %v2947 = vadd.f32 %v2481, %v2946
  %v2948 = vpop.f32.mrf.mxu0
  %v2949 = vadd.f32 %v2481, %v2948
  %2950 = vmatmul.bf16.gmra.mxu0 %v2560
  %v2951 = vpop.f32.mrf.mxu0
  %v2952 = vadd.f32 %v2481, %v2951
  %v2953 = vpop.f32.mrf.mxu0
  %v2954 = vadd.f32 %v2481, %v2953
  %2955 = vmatmul.bf16.gmra.mxu0 %v2561
  %v2956 = vpop.f32.mrf.mxu0
  %v2957 = vadd.f32 %v2481, %v2956
  %v2958 = vpop.f32.mrf.mxu0
  %v2959 = vadd.f32 %v2481, %v2958
  %2960 = vmatmul.bf16.gmra.mxu0 %v2562
  %v2961 = vpop.f32.mrf.mxu0
  %v2962 = vadd.f32 %v2481, %v2961
  %v2963 = vpop.f32.mrf.mxu0
  %v2964 = vadd.f32 %v2481, %v2963
  %2965 = vmatmul.bf16.gmra.mxu0 %v2563
  %v2966 = vpop.f32.mrf.mxu0
  %v2967 = vadd.f32 %v2481, %v2966
  %v2968 = vpop.f32.mrf.mxu0
  %v2969 = vadd.f32 %v2481, %v2968
  %2970 = vmatmul.bf16.gmra.mxu0 %v2564
  %v2971 = vpop.f32.mrf.mxu0
  %v2972 = vadd.f32 %v2481, %v2971
  %v2973 = vpop.f32.mrf.mxu0
  %v2974 = vadd.f32 %v2481, %v2973
  %2975 = vdwg.mxu0
  %v2976 = vpack.c.bf16 %v2808, %v2719
  %v2977 = vpack.c.bf16 %v2897, %v2897
  %v2978 = vpack.c.bf16 %v2810, %v2721
  %v2979 = vpack.c.bf16 %v2899, %v2899
  %v2980 = vpack.c.bf16 %v2813, %v2724
  %v2981 = vpack.c.bf16 %v2902, %v2902
  %v2982 = vpack.c.bf16 %v2815, %v2726
  %v2983 = vpack.c.bf16 %v2904, %v2904
  %v2984 = vpack.c.bf16 %v2818, %v2729
  %v2985 = vpack.c.bf16 %v2907, %v2907
  %v2986 = vpack.c.bf16 %v2820, %v2731
  %v2987 = vpack.c.bf16 %v2909, %v2909
  %v2988 = vpack.c.bf16 %v2823, %v2734
  %v2989 = vpack.c.bf16 %v2912, %v2912
  %v2990 = vpack.c.bf16 %v2825, %v2736
  %v2991 = vpack.c.bf16 %v2914, %v2914
  %v2992 = vpack.c.bf16 %v2828, %v2739
  %v2993 = vpack.c.bf16 %v2917, %v2917
  %v2994 = vpack.c.bf16 %v2830, %v2741
  %v2995 = vpack.c.bf16 %v2919, %v2919
  %v2996 = vpack.c.bf16 %v2833, %v2744
  %v2997 = vpack.c.bf16 %v2922, %v2922
  %v2998 = vpack.c.bf16 %v2835, %v2746
  %v2999 = vpack.c.bf16 %v2924, %v2924
  %v3000 = vpack.c.bf16 %v2838, %v2749
  %v3001 = vpack.c.bf16 %v2927, %v2927
  %v3002 = vpack.c.bf16 %v2840, %v2751
  %v3003 = vpack.c.bf16 %v2929, %v2929
  %v3004 = vpack.c.bf16 %v2843, %v2754
  %v3005 = vpack.c.bf16 %v2932, %v2932
  %v3006 = vpack.c.bf16 %v2845, %v2756
  %v3007 = vpack.c.bf16 %v2934, %v2934
  %v3008 = vpack.c.bf16 %v2848, %v2759
  %v3009 = vpack.c.bf16 %v2937, %v2937
  %v3010 = vpack.c.bf16 %v2850, %v2761
  %v3011 = vpack.c.bf16 %v2939, %v2939
  %v3012 = vpack.c.bf16 %v2853, %v2764
  %v3013 = vpack.c.bf16 %v2942, %v2942
  %v3014 = vpack.c.bf16 %v2855, %v2766
  %v3015 = vpack.c.bf16 %v2944, %v2944
  %v3016 = vpack.c.bf16 %v2858, %v2769
  %v3017 = vpack.c.bf16 %v2947, %v2947
  %v3018 = vpack.c.bf16 %v2860, %v2771
  %v3019 = vpack.c.bf16 %v2949, %v2949
  %v3020 = vpack.c.bf16 %v2863, %v2774
  %v3021 = vpack.c.bf16 %v2952, %v2952
  %v3022 = vpack.c.bf16 %v2865, %v2776
  %v3023 = vpack.c.bf16 %v2954, %v2954
  %v3024 = vpack.c.bf16 %v2868, %v2779
  %v3025 = vpack.c.bf16 %v2957, %v2957
  %v3026 = vpack.c.bf16 %v2870, %v2781
  %v3027 = vpack.c.bf16 %v2959, %v2959
  %v3028 = vpack.c.bf16 %v2873, %v2784
  %v3029 = vpack.c.bf16 %v2962, %v2962
  %v3030 = vpack.c.bf16 %v2875, %v2786
  %v3031 = vpack.c.bf16 %v2964, %v2964
  %v3032 = vpack.c.bf16 %v2878, %v2789
  %v3033 = vpack.c.bf16 %v2967, %v2967
  %v3034 = vpack.c.bf16 %v2880, %v2791
  %v3035 = vpack.c.bf16 %v2969, %v2969
  %v3036 = vpack.c.bf16 %v2883, %v2794
  %v3037 = vpack.c.bf16 %v2972, %v2972
  %v3038 = vpack.c.bf16 %v2885, %v2796
  %v3039 = vpack.c.bf16 %v2974, %v2974
  %3040 = vst [vmem:[#allocation3] sm:$0xff] %v2976
  %3041 = vst [vmem:[#allocation3 + $0x8] sm:$0xf] %v2977
  %3042 = vst [vmem:[#allocation3 + $0xc] sm:$0xff] %v2978
  %3043 = vst [vmem:[#allocation3 + $0x14] sm:$0xf] %v2979
  %3044 = vst [vmem:[#allocation3 + $0x18] sm:$0xff] %v2980
  %3045 = vst [vmem:[#allocation3 + $0x20] sm:$0xf] %v2981
  %3046 = vst [vmem:[#allocation3 + $0x24] sm:$0xff] %v2982
  %3047 = vst [vmem:[#allocation3 + $0x2c] sm:$0xf] %v2983
  %3048 = vst [vmem:[#allocation3 + $0x30] sm:$0xff] %v2984
  %3049 = vst [vmem:[#allocation3 + $0x38] sm:$0xf] %v2985
  %3050 = vst [vmem:[#allocation3 + $0x3c] sm:$0xff] %v2986
  %3051 = vst [vmem:[#allocation3 + $0x44] sm:$0xf] %v2987
  %3052 = vst [vmem:[#allocation3 + $0x48] sm:$0xff] %v2988
  %3053 = vst [vmem:[#allocation3 + $0x50] sm:$0xf] %v2989
  %3054 = vst [vmem:[#allocation3 + $0x54] sm:$0xff] %v2990
  %3055 = vst [vmem:[#allocation3 + $0x5c] sm:$0xf] %v2991
  %3056 = vst [vmem:[#allocation3 + $0x60] sm:$0xff] %v2992
  %3057 = vst [vmem:[#allocation3 + $0x68] sm:$0xf] %v2993
  %3058 = vst [vmem:[#allocation3 + $0x6c] sm:$0xff] %v2994
  %3059 = vst [vmem:[#allocation3 + $0x74] sm:$0xf] %v2995
  %3060 = vst [vmem:[#allocation3 + $0x78] sm:$0xff] %v2996
  %3061 = vst [vmem:[#allocation3 + $0x80] sm:$0xf] %v2997
  %3062 = vst [vmem:[#allocation3 + $0x84] sm:$0xff] %v2998
  %3063 = vst [vmem:[#allocation3 + $0x8c] sm:$0xf] %v2999
  %3064 = vst [vmem:[#allocation3 + $0x90] sm:$0xff] %v3000
  %3065 = vst [vmem:[#allocation3 + $0x98] sm:$0xf] %v3001
  %3066 = vst [vmem:[#allocation3 + $0x9c] sm:$0xff] %v3002
  %3067 = vst [vmem:[#allocation3 + $0xa4] sm:$0xf] %v3003
  %3068 = vst [vmem:[#allocation3 + $0xa8] sm:$0xff] %v3004
  %3069 = vst [vmem:[#allocation3 + $0xb0] sm:$0xf] %v3005
  %3070 = vst [vmem:[#allocation3 + $0xb4] sm:$0xff] %v3006
  %3071 = vst [vmem:[#allocation3 + $0xbc] sm:$0xf] %v3007
  %3072 = vst [vmem:[#allocation3 + $0xc0] sm:$0xff] %v3008
  %3073 = vst [vmem:[#allocation3 + $0xc8] sm:$0xf] %v3009
  %3074 = vst [vmem:[#allocation3 + $0xcc] sm:$0xff] %v3010
  %3075 = vst [vmem:[#allocation3 + $0xd4] sm:$0xf] %v3011
  %3076 = vst [vmem:[#allocation3 + $0xd8] sm:$0xff] %v3012
  %3077 = vst [vmem:[#allocation3 + $0xe0] sm:$0xf] %v3013
  %3078 = vst [vmem:[#allocation3 + $0xe4] sm:$0xff] %v3014
  %3079 = vst [vmem:[#allocation3 + $0xec] sm:$0xf] %v3015
  %3080 = vst [vmem:[#allocation3 + $0xf0] sm:$0xff] %v3016
  %3081 = vst [vmem:[#allocation3 + $0xf8] sm:$0xf] %v3017
  %3082 = vst [vmem:[#allocation3 + $0xfc] sm:$0xff] %v3018
  %3083 = vst [vmem:[#allocation3 + $0x104] sm:$0xf] %v3019
  %3084 = vst [vmem:[#allocation3 + $0x108] sm:$0xff] %v3020
  %3085 = vst [vmem:[#allocation3 + $0x110] sm:$0xf] %v3021
  %3086 = vst [vmem:[#allocation3 + $0x114] sm:$0xff] %v3022
  %3087 = vst [vmem:[#allocation3 + $0x11c] sm:$0xf] %v3023
  %3088 = vst [vmem:[#allocation3 + $0x120] sm:$0xff] %v3024
  %3089 = vst [vmem:[#allocation3 + $0x128] sm:$0xf] %v3025
  %3090 = vst [vmem:[#allocation3 + $0x12c] sm:$0xff] %v3026
  %3091 = vst [vmem:[#allocation3 + $0x134] sm:$0xf] %v3027
  %3092 = vst [vmem:[#allocation3 + $0x138] sm:$0xff] %v3028
  %3093 = vst [vmem:[#allocation3 + $0x140] sm:$0xf] %v3029
  %3094 = vst [vmem:[#allocation3 + $0x144] sm:$0xff] %v3030
  %3095 = vst [vmem:[#allocation3 + $0x14c] sm:$0xf] %v3031
  %3096 = vst [vmem:[#allocation3 + $0x150] sm:$0xff] %v3032
  %3097 = vst [vmem:[#allocation3 + $0x158] sm:$0xf] %v3033
  %3098 = vst [vmem:[#allocation3 + $0x15c] sm:$0xff] %v3034
  %3099 = vst [vmem:[#allocation3 + $0x164] sm:$0xf] %v3035
  %3100 = vst [vmem:[#allocation3 + $0x168] sm:$0xff] %v3036
  %3101 = vst [vmem:[#allocation3 + $0x170] sm:$0xf] %v3037
  %3102 = vst [vmem:[#allocation3 + $0x174] sm:$0xff] %v3038
  %3103 = vst [vmem:[#allocation3 + $0x17c] sm:$0xf] %v3039
  %s3104 = scalar_lea.vmem %s7, 3
  %v3105 = vld [vmem:[%s3104] sm:$0x7]
  %v3107 = vperm.slane %v3105, 0
  %v3108 = vperm.slane %v3105, 1
  %v3109 = vperm.slane %v3105, 2
  %s3113 = scalar_lea.vmem %s1, 8
  %v3114 = vld [vmem:[%s3113] sm:$0xff]
  %v3115 = vld [vmem:[#allocation3] sm:$0xff]
  %v3116 = vld [vmem:[#allocation3 + $0x8] sm:$0xf]
  %v3117 = vpack.c.bf16 %v3114, %v3114
  %v3150 = vunpack.c.l.b16 %v2380
  %v3151 = vunpack.c.h.b16 %v2380
  %v3152 = vunpack.c.l.b16 %v2381
  %v3153 = vunpack.c.l.b16 %v2382
  %v3154 = vunpack.c.h.b16 %v2382
  %v3155 = vunpack.c.l.b16 %v2383
  %v3156 = vunpack.c.l.b16 %v2384
  %v3157 = vunpack.c.h.b16 %v2384
  %v3158 = vunpack.c.l.b16 %v2385
  %v3159 = vunpack.c.l.b16 %v2386
  %v3160 = vunpack.c.h.b16 %v2386
  %v3161 = vunpack.c.l.b16 %v2387
  %v3162 = vunpack.c.l.b16 %v2388
  %v3163 = vunpack.c.h.b16 %v2388
  %v3164 = vunpack.c.l.b16 %v2389
  %v3165 = vunpack.c.l.b16 %v2390
  %v3166 = vunpack.c.h.b16 %v2390
  %v3167 = vunpack.c.l.b16 %v2391
  %v3168 = vunpack.c.l.b16 %v2392
  %v3169 = vunpack.c.h.b16 %v2392
  %v3170 = vunpack.c.l.b16 %v2393
  %v3171 = vunpack.c.l.b16 %v2394
  %v3172 = vunpack.c.h.b16 %v2394
  %v3173 = vunpack.c.l.b16 %v2395
  %v3174 = vunpack.c.l.b16 %v2396
  %v3175 = vunpack.c.h.b16 %v2396
  %v3176 = vunpack.c.l.b16 %v2397
  %v3177 = vunpack.c.l.b16 %v2398
  %v3178 = vunpack.c.h.b16 %v2398
  %v3179 = vunpack.c.l.b16 %v2399
  %v3180 = vunpack.c.l.b16 %v2400
  %v3181 = vunpack.c.h.b16 %v2400
  %v3182 = vunpack.c.l.b16 %v2401
  %v3183 = vunpack.c.l.b16 %v2402
  %v3184 = vunpack.c.h.b16 %v2402
  %v3185 = vunpack.c.l.b16 %v2403
  %v3186 = vunpack.c.l.b16 %v2404
  %v3187 = vunpack.c.h.b16 %v2404
  %v3188 = vunpack.c.l.b16 %v2405
  %v3189 = vunpack.c.l.b16 %v2406
  %v3190 = vunpack.c.h.b16 %v2406
  %v3191 = vunpack.c.l.b16 %v2407
  %v3192 = vunpack.c.l.b16 %v2408
  %v3193 = vunpack.c.h.b16 %v2408
  %v3194 = vunpack.c.l.b16 %v2409
  %v3195 = vunpack.c.l.b16 %v2410
  %v3196 = vunpack.c.h.b16 %v2410
  %v3197 = vunpack.c.l.b16 %v2411
  %v3198 = vpack.c.b16 %v3153, %v3150
  %v3199 = vpack.c.b16 %v3154, %v3151
  %v3200 = vpack.c.b16 %v3155, %v3152
  %v3201 = vpack.c.b16 %v3159, %v3156
  %v3202 = vpack.c.b16 %v3160, %v3157
  %v3203 = vpack.c.b16 %v3161, %v3158
  %v3204 = vpack.c.b16 %v3165, %v3162
  %v3205 = vpack.c.b16 %v3166, %v3163
  %v3206 = vpack.c.b16 %v3167, %v3164
  %v3207 = vpack.c.b16 %v3171, %v3168
  %v3208 = vpack.c.b16 %v3172, %v3169
  %v3209 = vpack.c.b16 %v3173, %v3170
  %v3210 = vpack.c.b16 %v3177, %v3174
  %v3211 = vpack.c.b16 %v3178, %v3175
  %v3212 = vpack.c.b16 %v3179, %v3176
  %v3213 = vpack.c.b16 %v3183, %v3180
  %v3214 = vpack.c.b16 %v3184, %v3181
  %v3215 = vpack.c.b16 %v3185, %v3182
  %v3216 = vpack.c.b16 %v3189, %v3186
  %v3217 = vpack.c.b16 %v3190, %v3187
  %v3218 = vpack.c.b16 %v3191, %v3188
  %v3219 = vpack.c.b16 %v3195, %v3192
  %v3220 = vpack.c.b16 %v3196, %v3193
  %v3221 = vpack.c.b16 %v3197, %v3194
  %3246 = vmatpush.bf16.msra.mxu0 %v3219
  %3247 = vmatpush.bf16.msra.mxu0 %v3216
  %3248 = vmatpush.bf16.msra.mxu0 %v3213
  %3249 = vmatpush.bf16.msra.mxu0 %v3210
  %3250 = vmatpush.bf16.msra.mxu0 %v3207
  %3251 = vmatpush.bf16.msra.mxu0 %v3204
  %3252 = vmatpush.bf16.msra.mxu0 %v3201
  %3253 = vmatpush.bf16.msra.mxu0 %v3198
  %3254 = vmatmul.bf16.gmra.mxu0 %v3117
  %v3255 = vpop.f32.mrf.mxu0
  %v3256 = vadd.f32 %v3107, %v3255
  %v3257 = vpop.f32.mrf.mxu0
  %3258 = vdwg.mxu0
  %3259 = vmatpush.bf16.msra.mxu0 %v3220
  %3260 = vmatpush.bf16.msra.mxu0 %v3217
  %3261 = vmatpush.bf16.msra.mxu0 %v3214
  %3262 = vmatpush.bf16.msra.mxu0 %v3211
  %3263 = vmatpush.bf16.msra.mxu0 %v3208
  %3264 = vmatpush.bf16.msra.mxu0 %v3205
  %3265 = vmatpush.bf16.msra.mxu0 %v3202
  %3266 = vmatpush.bf16.msra.mxu0 %v3199
  %3267 = vmatmul.bf16.gmra.mxu0 %v3117
  %v3268 = vpop.f32.mrf.mxu0
  %v3269 = vadd.f32 %v3108, %v3268
  %v3270 = vpop.f32.mrf.mxu0
  %3271 = vdwg.mxu0
  %3272 = vmatpush.bf16.msra.mxu0 %v3221
  %3273 = vmatpush.bf16.msra.mxu0 %v3218
  %3274 = vmatpush.bf16.msra.mxu0 %v3215
  %3275 = vmatpush.bf16.msra.mxu0 %v3212
  %3276 = vmatpush.bf16.msra.mxu0 %v3209
  %3277 = vmatpush.bf16.msra.mxu0 %v3206
  %3278 = vmatpush.bf16.msra.mxu0 %v3203
  %3279 = vmatpush.bf16.msra.mxu0 %v3200
  %3280 = vmatmul.bf16.gmra.mxu0 %v3117
  %v3281 = vpop.f32.mrf.mxu0
  %v3282 = vadd.f32 %v3109, %v3281
  %v3283 = vpop.f32.mrf.mxu0
  %3284 = vdwg.mxu0
  %v3285 = vunpack.c.l.bf16 %v3115
  %v3286 = vunpack.c.h.bf16 %v3115
  %v3287 = vadd.f32 %v3285, %v3256
  %v3288 = vadd.f32 %v3286, %v3269
  %v3289 = vxor.u32 %v3287, 2147483648
  %v3290 = vxor.u32 %v3288, 2147483648
  %v3291 = vmul.f32 %v3289, 1.442695
  %v3292 = vpow.pop %v3291
  %v3293 = vmul.f32 %v3290, 1.442695
  %v3294 = vpow.pop %v3293
  %v3295 = vadd.f32 %v3292, 1.0
  %v3296 = vadd.f32 %v3294, 1.0
  %v3297 = vrcp.pop %v3295
  %v3298 = vmul.f32 %v3295, %v3297
  %v3299 = vsub.f32 1.0, %v3298
  %v3300 = vmul.f32 %v3297, %v3299
  %v3301 = vadd.f32 %v3297, %v3300
  %vm3302 = vweird.f32 %v3295
  %vm3303 = vweird.f32 %v3297
  %vm3304 = vmor %vm3302, %vm3303
  %v3305 = vsel %vm3304, %v3297, %v3301
  %v3306 = vand.u32 2147483647, %v3295
  %vm3307 = vcmp.eq.f32.partialorder %v3306, 8.507059e+37
  %v3308 = vand.u32 %v3295, 2147483648
  %v3309 = vor.u32 1.1754944e-38, %v3308
  %v3310 = vsel %vm3307, %v3309, %v3305
  %v3311 = vmul.f32 1.0, %v3310
  %v3312 = vrcp.pop %v3296
  %v3313 = vmul.f32 %v3296, %v3312
  %v3314 = vsub.f32 1.0, %v3313
  %v3315 = vmul.f32 %v3312, %v3314
  %v3316 = vadd.f32 %v3312, %v3315
  %vm3317 = vweird.f32 %v3296
  %vm3318 = vweird.f32 %v3312
  %vm3319 = vmor %vm3317, %vm3318
  %v3320 = vsel %vm3319, %v3312, %v3316
  %v3321 = vand.u32 2147483647, %v3296
  %vm3322 = vcmp.eq.f32.partialorder %v3321, 8.507059e+37
  %v3323 = vand.u32 %v3296, 2147483648
  %v3324 = vor.u32 1.1754944e-38, %v3323
  %v3325 = vsel %vm3322, %v3324, %v3320
  %v3326 = vmul.f32 1.0, %v3325
  %v3327 = vmul.f32 %v3311, %v3282
  %v3328 = vunpack.c.l.bf16 %v3116
  %v3329 = vadd.f32 %v3328, %v3327
  %v3330 = vtanh.pop %v3329
  %v3331 = vsub.f32 %v3114, %v3330
  %v3332 = vmul.f32 %v3326, %v3331
  %v3333 = vadd.f32 %v3330, %v3332
  %v3334 = vld [vmem:[#allocation2] sm:$0xf]
  %v3335 = vunpack.c.l.bf16 %v3334
  %v3336 = vadd.f32 %v3333, %v3335
  %v3337 = vpack.c.bf16 %v3336, %v3336
  %3338 = vst [vmem:[#allocation2] sm:$0xf] %v3337
  %v3339 = vld [vmem:[#allocation3 + $0xc] sm:$0xff]
  %v3340 = vld [vmem:[#allocation3 + $0x14] sm:$0xf]
  %v3341 = vpack.c.bf16 %v3333, %v3333
  %3342 = vmatpush.bf16.msra.mxu0 %v3219
  %3343 = vmatpush.bf16.msra.mxu0 %v3216
  %3344 = vmatpush.bf16.msra.mxu0 %v3213
  %3345 = vmatpush.bf16.msra.mxu0 %v3210
  %3346 = vmatpush.bf16.msra.mxu0 %v3207
  %3347 = vmatpush.bf16.msra.mxu0 %v3204
  %3348 = vmatpush.bf16.msra.mxu0 %v3201
  %3349 = vmatpush.bf16.msra.mxu0 %v3198
  %3350 = vmatmul.bf16.gmra.mxu0 %v3341
  %v3351 = vpop.f32.mrf.mxu0
  %v3352 = vadd.f32 %v3107, %v3351
  %v3353 = vpop.f32.mrf.mxu0
  %3354 = vdwg.mxu0
  %3355 = vmatpush.bf16.msra.mxu0 %v3220
  %3356 = vmatpush.bf16.msra.mxu0 %v3217
  %3357 = vmatpush.bf16.msra.mxu0 %v3214
  %3358 = vmatpush.bf16.msra.mxu0 %v3211
  %3359 = vmatpush.bf16.msra.mxu0 %v3208
  %3360 = vmatpush.bf16.msra.mxu0 %v3205
  %3361 = vmatpush.bf16.msra.mxu0 %v3202
  %3362 = vmatpush.bf16.msra.mxu0 %v3199
  %3363 = vmatmul.bf16.gmra.mxu0 %v3341
  %v3364 = vpop.f32.mrf.mxu0
  %v3365 = vadd.f32 %v3108, %v3364
  %v3366 = vpop.f32.mrf.mxu0
  %3367 = vdwg.mxu0
  %3368 = vmatpush.bf16.msra.mxu0 %v3221
  %3369 = vmatpush.bf16.msra.mxu0 %v3218
  %3370 = vmatpush.bf16.msra.mxu0 %v3215
  %3371 = vmatpush.bf16.msra.mxu0 %v3212
  %3372 = vmatpush.bf16.msra.mxu0 %v3209
  %3373 = vmatpush.bf16.msra.mxu0 %v3206
  %3374 = vmatpush.bf16.msra.mxu0 %v3203
  %3375 = vmatpush.bf16.msra.mxu0 %v3200
  %3376 = vmatmul.bf16.gmra.mxu0 %v3341
  %v3377 = vpop.f32.mrf.mxu0
  %v3378 = vadd.f32 %v3109, %v3377
  %v3379 = vpop.f32.mrf.mxu0
  %3380 = vdwg.mxu0
  %v3381 = vunpack.c.l.bf16 %v3339
  %v3382 = vunpack.c.h.bf16 %v3339
  %v3383 = vadd.f32 %v3381, %v3352
  %v3384 = vadd.f32 %v3382, %v3365
  %v3385 = vxor.u32 %v3383, 2147483648
  %v3386 = vxor.u32 %v3384, 2147483648
  %v3387 = vmul.f32 %v3385, 1.442695
  %v3388 = vpow.pop %v3387
  %v3389 = vmul.f32 %v3386, 1.442695
  %v3390 = vpow.pop %v3389
  %v3391 = vadd.f32 %v3388, 1.0
  %v3392 = vadd.f32 %v3390, 1.0
  %v3393 = vrcp.pop %v3391
  %v3394 = vmul.f32 %v3391, %v3393
  %v3395 = vsub.f32 1.0, %v3394
  %v3396 = vmul.f32 %v3393, %v3395
  %v3397 = vadd.f32 %v3393, %v3396
  %vm3398 = vweird.f32 %v3391
  %vm3399 = vweird.f32 %v3393
  %vm3400 = vmor %vm3398, %vm3399
  %v3401 = vsel %vm3400, %v3393, %v3397
  %v3402 = vand.u32 2147483647, %v3391
  %vm3403 = vcmp.eq.f32.partialorder %v3402, 8.507059e+37
  %v3404 = vand.u32 %v3391, 2147483648
  %v3405 = vor.u32 1.1754944e-38, %v3404
  %v3406 = vsel %vm3403, %v3405, %v3401
  %v3407 = vmul.f32 1.0, %v3406
  %v3408 = vrcp.pop %v3392
  %v3409 = vmul.f32 %v3392, %v3408
  %v3410 = vsub.f32 1.0, %v3409
  %v3411 = vmul.f32 %v3408, %v3410
  %v3412 = vadd.f32 %v3408, %v3411
  %vm3413 = vweird.f32 %v3392
  %vm3414 = vweird.f32 %v3408
  %vm3415 = vmor %vm3413, %vm3414
  %v3416 = vsel %vm3415, %v3408, %v3412
  %v3417 = vand.u32 2147483647, %v3392
  %vm3418 = vcmp.eq.f32.partialorder %v3417, 8.507059e+37
  %v3419 = vand.u32 %v3392, 2147483648
  %v3420 = vor.u32 1.1754944e-38, %v3419
  %v3421 = vsel %vm3418, %v3420, %v3416
  %v3422 = vmul.f32 1.0, %v3421
  %v3423 = vmul.f32 %v3407, %v3378
  %v3424 = vunpack.c.l.bf16 %v3340
  %v3425 = vadd.f32 %v3424, %v3423
  %v3426 = vtanh.pop %v3425
  %v3427 = vsub.f32 %v3333, %v3426
  %v3428 = vmul.f32 %v3422, %v3427
  %v3429 = vadd.f32 %v3426, %v3428
  %v3430 = vld [vmem:[#allocation2 + $0x4] sm:$0xf]
  %v3431 = vunpack.c.l.bf16 %v3430
  %v3432 = vadd.f32 %v3429, %v3431
  %v3433 = vpack.c.bf16 %v3432, %v3432
  %3434 = vst [vmem:[#allocation2 + $0x4] sm:$0xf] %v3433
  %v3435 = vld [vmem:[#allocation3 + $0x18] sm:$0xff]
  %v3436 = vld [vmem:[#allocation3 + $0x20] sm:$0xf]
  %v3437 = vpack.c.bf16 %v3429, %v3429
  %3438 = vmatpush.bf16.msra.mxu0 %v3219
  %3439 = vmatpush.bf16.msra.mxu0 %v3216
  %3440 = vmatpush.bf16.msra.mxu0 %v3213
  %3441 = vmatpush.bf16.msra.mxu0 %v3210
  %3442 = vmatpush.bf16.msra.mxu0 %v3207
  %3443 = vmatpush.bf16.msra.mxu0 %v3204
  %3444 = vmatpush.bf16.msra.mxu0 %v3201
  %3445 = vmatpush.bf16.msra.mxu0 %v3198
  %3446 = vmatmul.bf16.gmra.mxu0 %v3437
  %v3447 = vpop.f32.mrf.mxu0
  %v3448 = vadd.f32 %v3107, %v3447
  %v3449 = vpop.f32.mrf.mxu0
  %3450 = vdwg.mxu0
  %3451 = vmatpush.bf16.msra.mxu0 %v3220
  %3452 = vmatpush.bf16.msra.mxu0 %v3217
  %3453 = vmatpush.bf16.msra.mxu0 %v3214
  %3454 = vmatpush.bf16.msra.mxu0 %v3211
  %3455 = vmatpush.bf16.msra.mxu0 %v3208
  %3456 = vmatpush.bf16.msra.mxu0 %v3205
  %3457 = vmatpush.bf16.msra.mxu0 %v3202
  %3458 = vmatpush.bf16.msra.mxu0 %v3199
  %3459 = vmatmul.bf16.gmra.mxu0 %v3437
  %v3460 = vpop.f32.mrf.mxu0
  %v3461 = vadd.f32 %v3108, %v3460
  %v3462 = vpop.f32.mrf.mxu0
  %3463 = vdwg.mxu0
  %3464 = vmatpush.bf16.msra.mxu0 %v3221
  %3465 = vmatpush.bf16.msra.mxu0 %v3218
  %3466 = vmatpush.bf16.msra.mxu0 %v3215
  %3467 = vmatpush.bf16.msra.mxu0 %v3212
  %3468 = vmatpush.bf16.msra.mxu0 %v3209
  %3469 = vmatpush.bf16.msra.mxu0 %v3206
  %3470 = vmatpush.bf16.msra.mxu0 %v3203
  %3471 = vmatpush.bf16.msra.mxu0 %v3200
  %3472 = vmatmul.bf16.gmra.mxu0 %v3437
  %v3473 = vpop.f32.mrf.mxu0
  %v3474 = vadd.f32 %v3109, %v3473
  %v3475 = vpop.f32.mrf.mxu0
  %3476 = vdwg.mxu0
  %v3477 = vunpack.c.l.bf16 %v3435
  %v3478 = vunpack.c.h.bf16 %v3435
  %v3479 = vadd.f32 %v3477, %v3448
  %v3480 = vadd.f32 %v3478, %v3461
  %v3481 = vxor.u32 %v3479, 2147483648
  %v3482 = vxor.u32 %v3480, 2147483648
  %v3483 = vmul.f32 %v3481, 1.442695
  %v3484 = vpow.pop %v3483
  %v3485 = vmul.f32 %v3482, 1.442695
  %v3486 = vpow.pop %v3485
  %v3487 = vadd.f32 %v3484, 1.0
  %v3488 = vadd.f32 %v3486, 1.0
  %v3489 = vrcp.pop %v3487
  %v3490 = vmul.f32 %v3487, %v3489
  %v3491 = vsub.f32 1.0, %v3490
  %v3492 = vmul.f32 %v3489, %v3491
  %v3493 = vadd.f32 %v3489, %v3492
  %vm3494 = vweird.f32 %v3487
  %vm3495 = vweird.f32 %v3489
  %vm3496 = vmor %vm3494, %vm3495
  %v3497 = vsel %vm3496, %v3489, %v3493
  %v3498 = vand.u32 2147483647, %v3487
  %vm3499 = vcmp.eq.f32.partialorder %v3498, 8.507059e+37
  %v3500 = vand.u32 %v3487, 2147483648
  %v3501 = vor.u32 1.1754944e-38, %v3500
  %v3502 = vsel %vm3499, %v3501, %v3497
  %v3503 = vmul.f32 1.0, %v3502
  %v3504 = vrcp.pop %v3488
  %v3505 = vmul.f32 %v3488, %v3504
  %v3506 = vsub.f32 1.0, %v3505
  %v3507 = vmul.f32 %v3504, %v3506
  %v3508 = vadd.f32 %v3504, %v3507
  %vm3509 = vweird.f32 %v3488
  %vm3510 = vweird.f32 %v3504
  %vm3511 = vmor %vm3509, %vm3510
  %v3512 = vsel %vm3511, %v3504, %v3508
  %v3513 = vand.u32 2147483647, %v3488
  %vm3514 = vcmp.eq.f32.partialorder %v3513, 8.507059e+37
  %v3515 = vand.u32 %v3488, 2147483648
  %v3516 = vor.u32 1.1754944e-38, %v3515
  %v3517 = vsel %vm3514, %v3516, %v3512
  %v3518 = vmul.f32 1.0, %v3517
  %v3519 = vmul.f32 %v3503, %v3474
  %v3520 = vunpack.c.l.bf16 %v3436
  %v3521 = vadd.f32 %v3520, %v3519
  %v3522 = vtanh.pop %v3521
  %v3523 = vsub.f32 %v3429, %v3522
  %v3524 = vmul.f32 %v3518, %v3523
  %v3525 = vadd.f32 %v3522, %v3524
  %v3526 = vld [vmem:[#allocation2 + $0x8] sm:$0xf]
  %v3527 = vunpack.c.l.bf16 %v3526
  %v3528 = vadd.f32 %v3525, %v3527
  %v3529 = vpack.c.bf16 %v3528, %v3528
  %3530 = vst [vmem:[#allocation2 + $0x8] sm:$0xf] %v3529
  %v3531 = vld [vmem:[#allocation3 + $0x24] sm:$0xff]
  %v3532 = vld [vmem:[#allocation3 + $0x2c] sm:$0xf]
  %v3533 = vpack.c.bf16 %v3525, %v3525
  %3534 = vmatpush.bf16.msra.mxu0 %v3219
  %3535 = vmatpush.bf16.msra.mxu0 %v3216
  %3536 = vmatpush.bf16.msra.mxu0 %v3213
  %3537 = vmatpush.bf16.msra.mxu0 %v3210
  %3538 = vmatpush.bf16.msra.mxu0 %v3207
  %3539 = vmatpush.bf16.msra.mxu0 %v3204
  %3540 = vmatpush.bf16.msra.mxu0 %v3201
  %3541 = vmatpush.bf16.msra.mxu0 %v3198
  %3542 = vmatmul.bf16.gmra.mxu0 %v3533
  %v3543 = vpop.f32.mrf.mxu0
  %v3544 = vadd.f32 %v3107, %v3543
  %v3545 = vpop.f32.mrf.mxu0
  %3546 = vdwg.mxu0
  %3547 = vmatpush.bf16.msra.mxu0 %v3220
  %3548 = vmatpush.bf16.msra.mxu0 %v3217
  %3549 = vmatpush.bf16.msra.mxu0 %v3214
  %3550 = vmatpush.bf16.msra.mxu0 %v3211
  %3551 = vmatpush.bf16.msra.mxu0 %v3208
  %3552 = vmatpush.bf16.msra.mxu0 %v3205
  %3553 = vmatpush.bf16.msra.mxu0 %v3202
  %3554 = vmatpush.bf16.msra.mxu0 %v3199
  %3555 = vmatmul.bf16.gmra.mxu0 %v3533
  %v3556 = vpop.f32.mrf.mxu0
  %v3557 = vadd.f32 %v3108, %v3556
  %v3558 = vpop.f32.mrf.mxu0
  %3559 = vdwg.mxu0
  %3560 = vmatpush.bf16.msra.mxu0 %v3221
  %3561 = vmatpush.bf16.msra.mxu0 %v3218
  %3562 = vmatpush.bf16.msra.mxu0 %v3215
  %3563 = vmatpush.bf16.msra.mxu0 %v3212
  %3564 = vmatpush.bf16.msra.mxu0 %v3209
  %3565 = vmatpush.bf16.msra.mxu0 %v3206
  %3566 = vmatpush.bf16.msra.mxu0 %v3203
  %3567 = vmatpush.bf16.msra.mxu0 %v3200
  %3568 = vmatmul.bf16.gmra.mxu0 %v3533
  %v3569 = vpop.f32.mrf.mxu0
  %v3570 = vadd.f32 %v3109, %v3569
  %v3571 = vpop.f32.mrf.mxu0
  %3572 = vdwg.mxu0
  %v3573 = vunpack.c.l.bf16 %v3531
  %v3574 = vunpack.c.h.bf16 %v3531
  %v3575 = vadd.f32 %v3573, %v3544
  %v3576 = vadd.f32 %v3574, %v3557
  %v3577 = vxor.u32 %v3575, 2147483648
  %v3578 = vxor.u32 %v3576, 2147483648
  %v3579 = vmul.f32 %v3577, 1.442695
  %v3580 = vpow.pop %v3579
  %v3581 = vmul.f32 %v3578, 1.442695
  %v3582 = vpow.pop %v3581
  %v3583 = vadd.f32 %v3580, 1.0
  %v3584 = vadd.f32 %v3582, 1.0
  %v3585 = vrcp.pop %v3583
  %v3586 = vmul.f32 %v3583, %v3585
  %v3587 = vsub.f32 1.0, %v3586
  %v3588 = vmul.f32 %v3585, %v3587
  %v3589 = vadd.f32 %v3585, %v3588
  %vm3590 = vweird.f32 %v3583
  %vm3591 = vweird.f32 %v3585
  %vm3592 = vmor %vm3590, %vm3591
  %v3593 = vsel %vm3592, %v3585, %v3589
  %v3594 = vand.u32 2147483647, %v3583
  %vm3595 = vcmp.eq.f32.partialorder %v3594, 8.507059e+37
  %v3596 = vand.u32 %v3583, 2147483648
  %v3597 = vor.u32 1.1754944e-38, %v3596
  %v3598 = vsel %vm3595, %v3597, %v3593
  %v3599 = vmul.f32 1.0, %v3598
  %v3600 = vrcp.pop %v3584
  %v3601 = vmul.f32 %v3584, %v3600
  %v3602 = vsub.f32 1.0, %v3601
  %v3603 = vmul.f32 %v3600, %v3602
  %v3604 = vadd.f32 %v3600, %v3603
  %vm3605 = vweird.f32 %v3584
  %vm3606 = vweird.f32 %v3600
  %vm3607 = vmor %vm3605, %vm3606
  %v3608 = vsel %vm3607, %v3600, %v3604
  %v3609 = vand.u32 2147483647, %v3584
  %vm3610 = vcmp.eq.f32.partialorder %v3609, 8.507059e+37
  %v3611 = vand.u32 %v3584, 2147483648
  %v3612 = vor.u32 1.1754944e-38, %v3611
  %v3613 = vsel %vm3610, %v3612, %v3608
  %v3614 = vmul.f32 1.0, %v3613
  %v3615 = vmul.f32 %v3599, %v3570
  %v3616 = vunpack.c.l.bf16 %v3532
  %v3617 = vadd.f32 %v3616, %v3615
  %v3618 = vtanh.pop %v3617
  %v3619 = vsub.f32 %v3525, %v3618
  %v3620 = vmul.f32 %v3614, %v3619
  %v3621 = vadd.f32 %v3618, %v3620
  %v3622 = vld [vmem:[#allocation2 + $0xc] sm:$0xf]
  %v3623 = vunpack.c.l.bf16 %v3622
  %v3624 = vadd.f32 %v3621, %v3623
  %v3625 = vpack.c.bf16 %v3624, %v3624
  %3626 = vst [vmem:[#allocation2 + $0xc] sm:$0xf] %v3625
  %v3627 = vld [vmem:[#allocation3 + $0x30] sm:$0xff]
  %v3628 = vld [vmem:[#allocation3 + $0x38] sm:$0xf]
  %v3629 = vpack.c.bf16 %v3621, %v3621
  %3630 = vmatpush.bf16.msra.mxu0 %v3219
  %3631 = vmatpush.bf16.msra.mxu0 %v3216
  %3632 = vmatpush.bf16.msra.mxu0 %v3213
  %3633 = vmatpush.bf16.msra.mxu0 %v3210
  %3634 = vmatpush.bf16.msra.mxu0 %v3207
  %3635 = vmatpush.bf16.msra.mxu0 %v3204
  %3636 = vmatpush.bf16.msra.mxu0 %v3201
  %3637 = vmatpush.bf16.msra.mxu0 %v3198
  %3638 = vmatmul.bf16.gmra.mxu0 %v3629
  %v3639 = vpop.f32.mrf.mxu0
  %v3640 = vadd.f32 %v3107, %v3639
  %v3641 = vpop.f32.mrf.mxu0
  %3642 = vdwg.mxu0
  %3643 = vmatpush.bf16.msra.mxu0 %v3220
  %3644 = vmatpush.bf16.msra.mxu0 %v3217
  %3645 = vmatpush.bf16.msra.mxu0 %v3214
  %3646 = vmatpush.bf16.msra.mxu0 %v3211
  %3647 = vmatpush.bf16.msra.mxu0 %v3208
  %3648 = vmatpush.bf16.msra.mxu0 %v3205
  %3649 = vmatpush.bf16.msra.mxu0 %v3202
  %3650 = vmatpush.bf16.msra.mxu0 %v3199
  %3651 = vmatmul.bf16.gmra.mxu0 %v3629
  %v3652 = vpop.f32.mrf.mxu0
  %v3653 = vadd.f32 %v3108, %v3652
  %v3654 = vpop.f32.mrf.mxu0
  %3655 = vdwg.mxu0
  %3656 = vmatpush.bf16.msra.mxu0 %v3221
  %3657 = vmatpush.bf16.msra.mxu0 %v3218
  %3658 = vmatpush.bf16.msra.mxu0 %v3215
  %3659 = vmatpush.bf16.msra.mxu0 %v3212
  %3660 = vmatpush.bf16.msra.mxu0 %v3209
  %3661 = vmatpush.bf16.msra.mxu0 %v3206
  %3662 = vmatpush.bf16.msra.mxu0 %v3203
  %3663 = vmatpush.bf16.msra.mxu0 %v3200
  %3664 = vmatmul.bf16.gmra.mxu0 %v3629
  %v3665 = vpop.f32.mrf.mxu0
  %v3666 = vadd.f32 %v3109, %v3665
  %v3667 = vpop.f32.mrf.mxu0
  %3668 = vdwg.mxu0
  %v3669 = vunpack.c.l.bf16 %v3627
  %v3670 = vunpack.c.h.bf16 %v3627
  %v3671 = vadd.f32 %v3669, %v3640
  %v3672 = vadd.f32 %v3670, %v3653
  %v3673 = vxor.u32 %v3671, 2147483648
  %v3674 = vxor.u32 %v3672, 2147483648
  %v3675 = vmul.f32 %v3673, 1.442695
  %v3676 = vpow.pop %v3675
  %v3677 = vmul.f32 %v3674, 1.442695
  %v3678 = vpow.pop %v3677
  %v3679 = vadd.f32 %v3676, 1.0
  %v3680 = vadd.f32 %v3678, 1.0
  %v3681 = vrcp.pop %v3679
  %v3682 = vmul.f32 %v3679, %v3681
  %v3683 = vsub.f32 1.0, %v3682
  %v3684 = vmul.f32 %v3681, %v3683
  %v3685 = vadd.f32 %v3681, %v3684
  %vm3686 = vweird.f32 %v3679
  %vm3687 = vweird.f32 %v3681
  %vm3688 = vmor %vm3686, %vm3687
  %v3689 = vsel %vm3688, %v3681, %v3685
  %v3690 = vand.u32 2147483647, %v3679
  %vm3691 = vcmp.eq.f32.partialorder %v3690, 8.507059e+37
  %v3692 = vand.u32 %v3679, 2147483648
  %v3693 = vor.u32 1.1754944e-38, %v3692
  %v3694 = vsel %vm3691, %v3693, %v3689
  %v3695 = vmul.f32 1.0, %v3694
  %v3696 = vrcp.pop %v3680
  %v3697 = vmul.f32 %v3680, %v3696
  %v3698 = vsub.f32 1.0, %v3697
  %v3699 = vmul.f32 %v3696, %v3698
  %v3700 = vadd.f32 %v3696, %v3699
  %vm3701 = vweird.f32 %v3680
  %vm3702 = vweird.f32 %v3696
  %vm3703 = vmor %vm3701, %vm3702
  %v3704 = vsel %vm3703, %v3696, %v3700
  %v3705 = vand.u32 2147483647, %v3680
  %vm3706 = vcmp.eq.f32.partialorder %v3705, 8.507059e+37
  %v3707 = vand.u32 %v3680, 2147483648
  %v3708 = vor.u32 1.1754944e-38, %v3707
  %v3709 = vsel %vm3706, %v3708, %v3704
  %v3710 = vmul.f32 1.0, %v3709
  %v3711 = vmul.f32 %v3695, %v3666
  %v3712 = vunpack.c.l.bf16 %v3628
  %v3713 = vadd.f32 %v3712, %v3711
  %v3714 = vtanh.pop %v3713
  %v3715 = vsub.f32 %v3621, %v3714
  %v3716 = vmul.f32 %v3710, %v3715
  %v3717 = vadd.f32 %v3714, %v3716
  %v3718 = vld [vmem:[#allocation2 + $0x10] sm:$0xf]
  %v3719 = vunpack.c.l.bf16 %v3718
  %v3720 = vadd.f32 %v3717, %v3719
  %v3721 = vpack.c.bf16 %v3720, %v3720
  %3722 = vst [vmem:[#allocation2 + $0x10] sm:$0xf] %v3721
  %v3723 = vld [vmem:[#allocation3 + $0x3c] sm:$0xff]
  %v3724 = vld [vmem:[#allocation3 + $0x44] sm:$0xf]
  %v3725 = vpack.c.bf16 %v3717, %v3717
  %3726 = vmatpush.bf16.msra.mxu0 %v3219
  %3727 = vmatpush.bf16.msra.mxu0 %v3216
  %3728 = vmatpush.bf16.msra.mxu0 %v3213
  %3729 = vmatpush.bf16.msra.mxu0 %v3210
  %3730 = vmatpush.bf16.msra.mxu0 %v3207
  %3731 = vmatpush.bf16.msra.mxu0 %v3204
  %3732 = vmatpush.bf16.msra.mxu0 %v3201
  %3733 = vmatpush.bf16.msra.mxu0 %v3198
  %3734 = vmatmul.bf16.gmra.mxu0 %v3725
  %v3735 = vpop.f32.mrf.mxu0
  %v3736 = vadd.f32 %v3107, %v3735
  %v3737 = vpop.f32.mrf.mxu0
  %3738 = vdwg.mxu0
  %3739 = vmatpush.bf16.msra.mxu0 %v3220
  %3740 = vmatpush.bf16.msra.mxu0 %v3217
  %3741 = vmatpush.bf16.msra.mxu0 %v3214
  %3742 = vmatpush.bf16.msra.mxu0 %v3211
  %3743 = vmatpush.bf16.msra.mxu0 %v3208
  %3744 = vmatpush.bf16.msra.mxu0 %v3205
  %3745 = vmatpush.bf16.msra.mxu0 %v3202
  %3746 = vmatpush.bf16.msra.mxu0 %v3199
  %3747 = vmatmul.bf16.gmra.mxu0 %v3725
  %v3748 = vpop.f32.mrf.mxu0
  %v3749 = vadd.f32 %v3108, %v3748
  %v3750 = vpop.f32.mrf.mxu0
  %3751 = vdwg.mxu0
  %3752 = vmatpush.bf16.msra.mxu0 %v3221
  %3753 = vmatpush.bf16.msra.mxu0 %v3218
  %3754 = vmatpush.bf16.msra.mxu0 %v3215
  %3755 = vmatpush.bf16.msra.mxu0 %v3212
  %3756 = vmatpush.bf16.msra.mxu0 %v3209
  %3757 = vmatpush.bf16.msra.mxu0 %v3206
  %3758 = vmatpush.bf16.msra.mxu0 %v3203
  %3759 = vmatpush.bf16.msra.mxu0 %v3200
  %3760 = vmatmul.bf16.gmra.mxu0 %v3725
  %v3761 = vpop.f32.mrf.mxu0
  %v3762 = vadd.f32 %v3109, %v3761
  %v3763 = vpop.f32.mrf.mxu0
  %3764 = vdwg.mxu0
  %v3765 = vunpack.c.l.bf16 %v3723
  %v3766 = vunpack.c.h.bf16 %v3723
  %v3767 = vadd.f32 %v3765, %v3736
  %v3768 = vadd.f32 %v3766, %v3749
  %v3769 = vxor.u32 %v3767, 2147483648
  %v3770 = vxor.u32 %v3768, 2147483648
  %v3771 = vmul.f32 %v3769, 1.442695
  %v3772 = vpow.pop %v3771
  %v3773 = vmul.f32 %v3770, 1.442695
  %v3774 = vpow.pop %v3773
  %v3775 = vadd.f32 %v3772, 1.0
  %v3776 = vadd.f32 %v3774, 1.0
  %v3777 = vrcp.pop %v3775
  %v3778 = vmul.f32 %v3775, %v3777
  %v3779 = vsub.f32 1.0, %v3778
  %v3780 = vmul.f32 %v3777, %v3779
  %v3781 = vadd.f32 %v3777, %v3780
  %vm3782 = vweird.f32 %v3775
  %vm3783 = vweird.f32 %v3777
  %vm3784 = vmor %vm3782, %vm3783
  %v3785 = vsel %vm3784, %v3777, %v3781
  %v3786 = vand.u32 2147483647, %v3775
  %vm3787 = vcmp.eq.f32.partialorder %v3786, 8.507059e+37
  %v3788 = vand.u32 %v3775, 2147483648
  %v3789 = vor.u32 1.1754944e-38, %v3788
  %v3790 = vsel %vm3787, %v3789, %v3785
  %v3791 = vmul.f32 1.0, %v3790
  %v3792 = vrcp.pop %v3776
  %v3793 = vmul.f32 %v3776, %v3792
  %v3794 = vsub.f32 1.0, %v3793
  %v3795 = vmul.f32 %v3792, %v3794
  %v3796 = vadd.f32 %v3792, %v3795
  %vm3797 = vweird.f32 %v3776
  %vm3798 = vweird.f32 %v3792
  %vm3799 = vmor %vm3797, %vm3798
  %v3800 = vsel %vm3799, %v3792, %v3796
  %v3801 = vand.u32 2147483647, %v3776
  %vm3802 = vcmp.eq.f32.partialorder %v3801, 8.507059e+37
  %v3803 = vand.u32 %v3776, 2147483648
  %v3804 = vor.u32 1.1754944e-38, %v3803
  %v3805 = vsel %vm3802, %v3804, %v3800
  %v3806 = vmul.f32 1.0, %v3805
  %v3807 = vmul.f32 %v3791, %v3762
  %v3808 = vunpack.c.l.bf16 %v3724
  %v3809 = vadd.f32 %v3808, %v3807
  %v3810 = vtanh.pop %v3809
  %v3811 = vsub.f32 %v3717, %v3810
  %v3812 = vmul.f32 %v3806, %v3811
  %v3813 = vadd.f32 %v3810, %v3812
  %v3814 = vld [vmem:[#allocation2 + $0x14] sm:$0xf]
  %v3815 = vunpack.c.l.bf16 %v3814
  %v3816 = vadd.f32 %v3813, %v3815
  %v3817 = vpack.c.bf16 %v3816, %v3816
  %3818 = vst [vmem:[#allocation2 + $0x14] sm:$0xf] %v3817
  %v3819 = vld [vmem:[#allocation3 + $0x48] sm:$0xff]
  %v3820 = vld [vmem:[#allocation3 + $0x50] sm:$0xf]
  %v3821 = vpack.c.bf16 %v3813, %v3813
  %3822 = vmatpush.bf16.msra.mxu0 %v3219
  %3823 = vmatpush.bf16.msra.mxu0 %v3216
  %3824 = vmatpush.bf16.msra.mxu0 %v3213
  %3825 = vmatpush.bf16.msra.mxu0 %v3210
  %3826 = vmatpush.bf16.msra.mxu0 %v3207
  %3827 = vmatpush.bf16.msra.mxu0 %v3204
  %3828 = vmatpush.bf16.msra.mxu0 %v3201
  %3829 = vmatpush.bf16.msra.mxu0 %v3198
  %3830 = vmatmul.bf16.gmra.mxu0 %v3821
  %v3831 = vpop.f32.mrf.mxu0
  %v3832 = vadd.f32 %v3107, %v3831
  %v3833 = vpop.f32.mrf.mxu0
  %3834 = vdwg.mxu0
  %3835 = vmatpush.bf16.msra.mxu0 %v3220
  %3836 = vmatpush.bf16.msra.mxu0 %v3217
  %3837 = vmatpush.bf16.msra.mxu0 %v3214
  %3838 = vmatpush.bf16.msra.mxu0 %v3211
  %3839 = vmatpush.bf16.msra.mxu0 %v3208
  %3840 = vmatpush.bf16.msra.mxu0 %v3205
  %3841 = vmatpush.bf16.msra.mxu0 %v3202
  %3842 = vmatpush.bf16.msra.mxu0 %v3199
  %3843 = vmatmul.bf16.gmra.mxu0 %v3821
  %v3844 = vpop.f32.mrf.mxu0
  %v3845 = vadd.f32 %v3108, %v3844
  %v3846 = vpop.f32.mrf.mxu0
  %3847 = vdwg.mxu0
  %3848 = vmatpush.bf16.msra.mxu0 %v3221
  %3849 = vmatpush.bf16.msra.mxu0 %v3218
  %3850 = vmatpush.bf16.msra.mxu0 %v3215
  %3851 = vmatpush.bf16.msra.mxu0 %v3212
  %3852 = vmatpush.bf16.msra.mxu0 %v3209
  %3853 = vmatpush.bf16.msra.mxu0 %v3206
  %3854 = vmatpush.bf16.msra.mxu0 %v3203
  %3855 = vmatpush.bf16.msra.mxu0 %v3200
  %3856 = vmatmul.bf16.gmra.mxu0 %v3821
  %v3857 = vpop.f32.mrf.mxu0
  %v3858 = vadd.f32 %v3109, %v3857
  %v3859 = vpop.f32.mrf.mxu0
  %3860 = vdwg.mxu0
  %v3861 = vunpack.c.l.bf16 %v3819
  %v3862 = vunpack.c.h.bf16 %v3819
  %v3863 = vadd.f32 %v3861, %v3832
  %v3864 = vadd.f32 %v3862, %v3845
  %v3865 = vxor.u32 %v3863, 2147483648
  %v3866 = vxor.u32 %v3864, 2147483648
  %v3867 = vmul.f32 %v3865, 1.442695
  %v3868 = vpow.pop %v3867
  %v3869 = vmul.f32 %v3866, 1.442695
  %v3870 = vpow.pop %v3869
  %v3871 = vadd.f32 %v3868, 1.0
  %v3872 = vadd.f32 %v3870, 1.0
  %v3873 = vrcp.pop %v3871
  %v3874 = vmul.f32 %v3871, %v3873
  %v3875 = vsub.f32 1.0, %v3874
  %v3876 = vmul.f32 %v3873, %v3875
  %v3877 = vadd.f32 %v3873, %v3876
  %vm3878 = vweird.f32 %v3871
  %vm3879 = vweird.f32 %v3873
  %vm3880 = vmor %vm3878, %vm3879
  %v3881 = vsel %vm3880, %v3873, %v3877
  %v3882 = vand.u32 2147483647, %v3871
  %vm3883 = vcmp.eq.f32.partialorder %v3882, 8.507059e+37
  %v3884 = vand.u32 %v3871, 2147483648
  %v3885 = vor.u32 1.1754944e-38, %v3884
  %v3886 = vsel %vm3883, %v3885, %v3881
  %v3887 = vmul.f32 1.0, %v3886
  %v3888 = vrcp.pop %v3872
  %v3889 = vmul.f32 %v3872, %v3888
  %v3890 = vsub.f32 1.0, %v3889
  %v3891 = vmul.f32 %v3888, %v3890
  %v3892 = vadd.f32 %v3888, %v3891
  %vm3893 = vweird.f32 %v3872
  %vm3894 = vweird.f32 %v3888
  %vm3895 = vmor %vm3893, %vm3894
  %v3896 = vsel %vm3895, %v3888, %v3892
  %v3897 = vand.u32 2147483647, %v3872
  %vm3898 = vcmp.eq.f32.partialorder %v3897, 8.507059e+37
  %v3899 = vand.u32 %v3872, 2147483648
  %v3900 = vor.u32 1.1754944e-38, %v3899
  %v3901 = vsel %vm3898, %v3900, %v3896
  %v3902 = vmul.f32 1.0, %v3901
  %v3903 = vmul.f32 %v3887, %v3858
  %v3904 = vunpack.c.l.bf16 %v3820
  %v3905 = vadd.f32 %v3904, %v3903
  %v3906 = vtanh.pop %v3905
  %v3907 = vsub.f32 %v3813, %v3906
  %v3908 = vmul.f32 %v3902, %v3907
  %v3909 = vadd.f32 %v3906, %v3908
  %v3910 = vld [vmem:[#allocation2 + $0x18] sm:$0xf]
  %v3911 = vunpack.c.l.bf16 %v3910
  %v3912 = vadd.f32 %v3909, %v3911
  %v3913 = vpack.c.bf16 %v3912, %v3912
  %3914 = vst [vmem:[#allocation2 + $0x18] sm:$0xf] %v3913
  %v3915 = vld [vmem:[#allocation3 + $0x54] sm:$0xff]
  %v3916 = vld [vmem:[#allocation3 + $0x5c] sm:$0xf]
  %v3917 = vpack.c.bf16 %v3909, %v3909
  %3918 = vmatpush.bf16.msra.mxu0 %v3219
  %3919 = vmatpush.bf16.msra.mxu0 %v3216
  %3920 = vmatpush.bf16.msra.mxu0 %v3213
  %3921 = vmatpush.bf16.msra.mxu0 %v3210
  %3922 = vmatpush.bf16.msra.mxu0 %v3207
  %3923 = vmatpush.bf16.msra.mxu0 %v3204
  %3924 = vmatpush.bf16.msra.mxu0 %v3201
  %3925 = vmatpush.bf16.msra.mxu0 %v3198
  %3926 = vmatmul.bf16.gmra.mxu0 %v3917
  %v3927 = vpop.f32.mrf.mxu0
  %v3928 = vadd.f32 %v3107, %v3927
  %v3929 = vpop.f32.mrf.mxu0
  %3930 = vdwg.mxu0
  %3931 = vmatpush.bf16.msra.mxu0 %v3220
  %3932 = vmatpush.bf16.msra.mxu0 %v3217
  %3933 = vmatpush.bf16.msra.mxu0 %v3214
  %3934 = vmatpush.bf16.msra.mxu0 %v3211
  %3935 = vmatpush.bf16.msra.mxu0 %v3208
  %3936 = vmatpush.bf16.msra.mxu0 %v3205
  %3937 = vmatpush.bf16.msra.mxu0 %v3202
  %3938 = vmatpush.bf16.msra.mxu0 %v3199
  %3939 = vmatmul.bf16.gmra.mxu0 %v3917
  %v3940 = vpop.f32.mrf.mxu0
  %v3941 = vadd.f32 %v3108, %v3940
  %v3942 = vpop.f32.mrf.mxu0
  %3943 = vdwg.mxu0
  %3944 = vmatpush.bf16.msra.mxu0 %v3221
  %3945 = vmatpush.bf16.msra.mxu0 %v3218
  %3946 = vmatpush.bf16.msra.mxu0 %v3215
  %3947 = vmatpush.bf16.msra.mxu0 %v3212
  %3948 = vmatpush.bf16.msra.mxu0 %v3209
  %3949 = vmatpush.bf16.msra.mxu0 %v3206
  %3950 = vmatpush.bf16.msra.mxu0 %v3203
  %3951 = vmatpush.bf16.msra.mxu0 %v3200
  %3952 = vmatmul.bf16.gmra.mxu0 %v3917
  %v3953 = vpop.f32.mrf.mxu0
  %v3954 = vadd.f32 %v3109, %v3953
  %v3955 = vpop.f32.mrf.mxu0
  %3956 = vdwg.mxu0
  %v3957 = vunpack.c.l.bf16 %v3915
  %v3958 = vunpack.c.h.bf16 %v3915
  %v3959 = vadd.f32 %v3957, %v3928
  %v3960 = vadd.f32 %v3958, %v3941
  %v3961 = vxor.u32 %v3959, 2147483648
  %v3962 = vxor.u32 %v3960, 2147483648
  %v3963 = vmul.f32 %v3961, 1.442695
  %v3964 = vpow.pop %v3963
  %v3965 = vmul.f32 %v3962, 1.442695
  %v3966 = vpow.pop %v3965
  %v3967 = vadd.f32 %v3964, 1.0
  %v3968 = vadd.f32 %v3966, 1.0
  %v3969 = vrcp.pop %v3967
  %v3970 = vmul.f32 %v3967, %v3969
  %v3971 = vsub.f32 1.0, %v3970
  %v3972 = vmul.f32 %v3969, %v3971
  %v3973 = vadd.f32 %v3969, %v3972
  %vm3974 = vweird.f32 %v3967
  %vm3975 = vweird.f32 %v3969
  %vm3976 = vmor %vm3974, %vm3975
  %v3977 = vsel %vm3976, %v3969, %v3973
  %v3978 = vand.u32 2147483647, %v3967
  %vm3979 = vcmp.eq.f32.partialorder %v3978, 8.507059e+37
  %v3980 = vand.u32 %v3967, 2147483648
  %v3981 = vor.u32 1.1754944e-38, %v3980
  %v3982 = vsel %vm3979, %v3981, %v3977
  %v3983 = vmul.f32 1.0, %v3982
  %v3984 = vrcp.pop %v3968
  %v3985 = vmul.f32 %v3968, %v3984
  %v3986 = vsub.f32 1.0, %v3985
  %v3987 = vmul.f32 %v3984, %v3986
  %v3988 = vadd.f32 %v3984, %v3987
  %vm3989 = vweird.f32 %v3968
  %vm3990 = vweird.f32 %v3984
  %vm3991 = vmor %vm3989, %vm3990
  %v3992 = vsel %vm3991, %v3984, %v3988
  %v3993 = vand.u32 2147483647, %v3968
  %vm3994 = vcmp.eq.f32.partialorder %v3993, 8.507059e+37
  %v3995 = vand.u32 %v3968, 2147483648
  %v3996 = vor.u32 1.1754944e-38, %v3995
  %v3997 = vsel %vm3994, %v3996, %v3992
  %v3998 = vmul.f32 1.0, %v3997
  %v3999 = vmul.f32 %v3983, %v3954
  %v4000 = vunpack.c.l.bf16 %v3916
  %v4001 = vadd.f32 %v4000, %v3999
  %v4002 = vtanh.pop %v4001
  %v4003 = vsub.f32 %v3909, %v4002
  %v4004 = vmul.f32 %v3998, %v4003
  %v4005 = vadd.f32 %v4002, %v4004
  %v4006 = vld [vmem:[#allocation2 + $0x1c] sm:$0xf]
  %v4007 = vunpack.c.l.bf16 %v4006
  %v4008 = vadd.f32 %v4005, %v4007
  %v4009 = vpack.c.bf16 %v4008, %v4008
  %4010 = vst [vmem:[#allocation2 + $0x1c] sm:$0xf] %v4009
  %s4011 = scalar_lea.vmem %s11, 8
  %4012 = vst [vmem:[%s4011] sm:$0xff] %v4005
  %v4013 = vld [vmem:[#allocation2] sm:$0xf]
  %v4014 = vld [vmem:[#allocation2 + $0x4] sm:$0xf]
  %v4015 = vld [vmem:[#allocation2 + $0x8] sm:$0xf]
  %v4016 = vld [vmem:[#allocation2 + $0xc] sm:$0xf]
  %v4017 = vld [vmem:[#allocation2 + $0x10] sm:$0xf]
  %v4018 = vld [vmem:[#allocation2 + $0x14] sm:$0xf]
  %v4019 = vld [vmem:[#allocation2 + $0x18] sm:$0xf]
  %v4020 = vld [vmem:[#allocation2 + $0x1c] sm:$0xf]
  %v4021 = vld [vmem:[#allocation2 + $0x20] sm:$0xf]
  %v4022 = vld [vmem:[#allocation2 + $0x24] sm:$0xf]
  %v4023 = vld [vmem:[#allocation2 + $0x28] sm:$0xf]
  %v4024 = vld [vmem:[#allocation2 + $0x2c] sm:$0xf]
  %v4025 = vld [vmem:[#allocation2 + $0x30] sm:$0xf]
  %v4026 = vld [vmem:[#allocation2 + $0x34] sm:$0xf]
  %v4027 = vld [vmem:[#allocation2 + $0x38] sm:$0xf]
  %v4028 = vld [vmem:[#allocation2 + $0x3c] sm:$0xf]
  %v4029 = vld [vmem:[#allocation2 + $0x40] sm:$0xf]
  %v4030 = vld [vmem:[#allocation2 + $0x44] sm:$0xf]
  %v4031 = vld [vmem:[#allocation2 + $0x48] sm:$0xf]
  %v4032 = vld [vmem:[#allocation2 + $0x4c] sm:$0xf]
  %v4033 = vld [vmem:[#allocation2 + $0x50] sm:$0xf]
  %v4034 = vld [vmem:[#allocation2 + $0x54] sm:$0xf]
  %v4035 = vld [vmem:[#allocation2 + $0x58] sm:$0xf]
  %v4036 = vld [vmem:[#allocation2 + $0x5c] sm:$0xf]
  %v4037 = vld [vmem:[#allocation2 + $0x60] sm:$0xf]
  %v4038 = vld [vmem:[#allocation2 + $0x64] sm:$0xf]
  %v4039 = vld [vmem:[#allocation2 + $0x68] sm:$0xf]
  %v4040 = vld [vmem:[#allocation2 + $0x6c] sm:$0xf]
  %v4041 = vld [vmem:[#allocation2 + $0x70] sm:$0xf]
  %v4042 = vld [vmem:[#allocation2 + $0x74] sm:$0xf]
  %v4043 = vld [vmem:[#allocation2 + $0x78] sm:$0xf]
  %v4044 = vld [vmem:[#allocation2 + $0x7c] sm:$0xf]
  %v4045 = vld [vmem:[%s8] sm:$0xf]
  %v4046 = vld [vmem:[%s8 + $0x4] sm:$0xf]
  %v4047 = vld [vmem:[%s8 + $0x8] sm:$0xf]
  %v4048 = vld [vmem:[%s8 + $0xc] sm:$0xf]
  %v4049 = vld [vmem:[%s8 + $0x10] sm:$0xf]
  %v4050 = vld [vmem:[%s8 + $0x14] sm:$0xf]
  %v4051 = vld [vmem:[%s8 + $0x18] sm:$0xf]
  %v4052 = vld [vmem:[%s8 + $0x1c] sm:$0xf]
  %v4053 = vld [vmem:[%s8 + $0x20] sm:$0xf]
  %v4054 = vld [vmem:[%s8 + $0x24] sm:$0xf]
  %v4055 = vld [vmem:[%s8 + $0x28] sm:$0xf]
  %v4056 = vld [vmem:[%s8 + $0x2c] sm:$0xf]
  %v4057 = vld [vmem:[%s8 + $0x30] sm:$0xf]
  %v4058 = vld [vmem:[%s8 + $0x34] sm:$0xf]
  %v4059 = vld [vmem:[%s8 + $0x38] sm:$0xf]
  %v4060 = vld [vmem:[%s8 + $0x3c] sm:$0xf]
  %v4061 = vld [vmem:[%s9] sm:$0x1]
  %v4063 = vperm.slane %v4061, 0
  %v4097 = vunpack.c.l.b16 %v4013
  %v4098 = vunpack.c.l.b16 %v4014
  %v4099 = vunpack.c.l.b16 %v4015
  %v4100 = vunpack.c.l.b16 %v4016
  %v4101 = vunpack.c.l.b16 %v4017
  %v4102 = vunpack.c.l.b16 %v4018
  %v4103 = vunpack.c.l.b16 %v4019
  %v4104 = vunpack.c.l.b16 %v4020
  %v4105 = vunpack.c.l.b16 %v4021
  %v4106 = vunpack.c.l.b16 %v4022
  %v4107 = vunpack.c.l.b16 %v4023
  %v4108 = vunpack.c.l.b16 %v4024
  %v4109 = vunpack.c.l.b16 %v4025
  %v4110 = vunpack.c.l.b16 %v4026
  %v4111 = vunpack.c.l.b16 %v4027
  %v4112 = vunpack.c.l.b16 %v4028
  %v4113 = vunpack.c.l.b16 %v4029
  %v4114 = vunpack.c.l.b16 %v4030
  %v4115 = vunpack.c.l.b16 %v4031
  %v4116 = vunpack.c.l.b16 %v4032
  %v4117 = vunpack.c.l.b16 %v4033
  %v4118 = vunpack.c.l.b16 %v4034
  %v4119 = vunpack.c.l.b16 %v4035
  %v4120 = vunpack.c.l.b16 %v4036
  %v4121 = vunpack.c.l.b16 %v4037
  %v4122 = vunpack.c.l.b16 %v4038
  %v4123 = vunpack.c.l.b16 %v4039
  %v4124 = vunpack.c.l.b16 %v4040
  %v4125 = vunpack.c.l.b16 %v4041
  %v4126 = vunpack.c.l.b16 %v4042
  %v4127 = vunpack.c.l.b16 %v4043
  %v4128 = vunpack.c.l.b16 %v4044
  %v4129 = vpack.c.b16 %v4098, %v4097
  %v4130 = vpack.c.b16 %v4100, %v4099
  %v4131 = vpack.c.b16 %v4102, %v4101
  %v4132 = vpack.c.b16 %v4104, %v4103
  %v4133 = vpack.c.b16 %v4106, %v4105
  %v4134 = vpack.c.b16 %v4108, %v4107
  %v4135 = vpack.c.b16 %v4110, %v4109
  %v4136 = vpack.c.b16 %v4112, %v4111
  %v4137 = vpack.c.b16 %v4114, %v4113
  %v4138 = vpack.c.b16 %v4116, %v4115
  %v4139 = vpack.c.b16 %v4118, %v4117
  %v4140 = vpack.c.b16 %v4120, %v4119
  %v4141 = vpack.c.b16 %v4122, %v4121
  %v4142 = vpack.c.b16 %v4124, %v4123
  %v4143 = vpack.c.b16 %v4126, %v4125
  %v4144 = vpack.c.b16 %v4128, %v4127
  %v4177 = vunpack.c.l.b16 %v4045
  %v4178 = vunpack.c.l.b16 %v4046
  %v4179 = vunpack.c.l.b16 %v4047
  %v4180 = vunpack.c.l.b16 %v4048
  %v4181 = vunpack.c.l.b16 %v4049
  %v4182 = vunpack.c.l.b16 %v4050
  %v4183 = vunpack.c.l.b16 %v4051
  %v4184 = vunpack.c.l.b16 %v4052
  %v4185 = vunpack.c.l.b16 %v4053
  %v4186 = vunpack.c.l.b16 %v4054
  %v4187 = vunpack.c.l.b16 %v4055
  %v4188 = vunpack.c.l.b16 %v4056
  %v4189 = vunpack.c.l.b16 %v4057
  %v4190 = vunpack.c.l.b16 %v4058
  %v4191 = vunpack.c.l.b16 %v4059
  %v4192 = vunpack.c.l.b16 %v4060
  %v4193 = vpack.c.b16 %v4178, %v4177
  %v4194 = vpack.c.b16 %v4180, %v4179
  %v4195 = vpack.c.b16 %v4182, %v4181
  %v4196 = vpack.c.b16 %v4184, %v4183
  %v4197 = vpack.c.b16 %v4186, %v4185
  %v4198 = vpack.c.b16 %v4188, %v4187
  %v4199 = vpack.c.b16 %v4190, %v4189
  %v4200 = vpack.c.b16 %v4192, %v4191
  %4209 = vmatpush.bf16.msra.mxu0 %v4200
  %4210 = vmatpush.bf16.msra.mxu0 %v4199
  %4211 = vmatpush.bf16.msra.mxu0 %v4198
  %4212 = vmatpush.bf16.msra.mxu0 %v4197
  %4213 = vmatpush.bf16.msra.mxu0 %v4196
  %4214 = vmatpush.bf16.msra.mxu0 %v4195
  %4215 = vmatpush.bf16.msra.mxu0 %v4194
  %4216 = vmatpush.bf16.msra.mxu0 %v4193
  %4217 = vmatmul.bf16.gmra.mxu0 %v4129
  %v4218 = vpop.f32.mrf.mxu0
  %v4219 = vadd.f32 %v4063, %v4218
  %v4220 = vpop.f32.mrf.mxu0
  %v4221 = vadd.f32 %v4063, %v4220
  %4222 = vmatmul.bf16.gmra.mxu0 %v4130
  %v4223 = vpop.f32.mrf.mxu0
  %v4224 = vadd.f32 %v4063, %v4223
  %v4225 = vpop.f32.mrf.mxu0
  %v4226 = vadd.f32 %v4063, %v4225
  %4227 = vmatmul.bf16.gmra.mxu0 %v4131
  %v4228 = vpop.f32.mrf.mxu0
  %v4229 = vadd.f32 %v4063, %v4228
  %v4230 = vpop.f32.mrf.mxu0
  %v4231 = vadd.f32 %v4063, %v4230
  %4232 = vmatmul.bf16.gmra.mxu0 %v4132
  %v4233 = vpop.f32.mrf.mxu0
  %v4234 = vadd.f32 %v4063, %v4233
  %v4235 = vpop.f32.mrf.mxu0
  %v4236 = vadd.f32 %v4063, %v4235
  %4237 = vmatmul.bf16.gmra.mxu0 %v4133
  %v4238 = vpop.f32.mrf.mxu0
  %v4239 = vadd.f32 %v4063, %v4238
  %v4240 = vpop.f32.mrf.mxu0
  %v4241 = vadd.f32 %v4063, %v4240
  %4242 = vmatmul.bf16.gmra.mxu0 %v4134
  %v4243 = vpop.f32.mrf.mxu0
  %v4244 = vadd.f32 %v4063, %v4243
  %v4245 = vpop.f32.mrf.mxu0
  %v4246 = vadd.f32 %v4063, %v4245
  %4247 = vmatmul.bf16.gmra.mxu0 %v4135
  %v4248 = vpop.f32.mrf.mxu0
  %v4249 = vadd.f32 %v4063, %v4248
  %v4250 = vpop.f32.mrf.mxu0
  %v4251 = vadd.f32 %v4063, %v4250
  %4252 = vmatmul.bf16.gmra.mxu0 %v4136
  %v4253 = vpop.f32.mrf.mxu0
  %v4254 = vadd.f32 %v4063, %v4253
  %v4255 = vpop.f32.mrf.mxu0
  %v4256 = vadd.f32 %v4063, %v4255
  %4257 = vmatmul.bf16.gmra.mxu0 %v4137
  %v4258 = vpop.f32.mrf.mxu0
  %v4259 = vadd.f32 %v4063, %v4258
  %v4260 = vpop.f32.mrf.mxu0
  %v4261 = vadd.f32 %v4063, %v4260
  %4262 = vmatmul.bf16.gmra.mxu0 %v4138
  %v4263 = vpop.f32.mrf.mxu0
  %v4264 = vadd.f32 %v4063, %v4263
  %v4265 = vpop.f32.mrf.mxu0
  %v4266 = vadd.f32 %v4063, %v4265
  %4267 = vmatmul.bf16.gmra.mxu0 %v4139
  %v4268 = vpop.f32.mrf.mxu0
  %v4269 = vadd.f32 %v4063, %v4268
  %v4270 = vpop.f32.mrf.mxu0
  %v4271 = vadd.f32 %v4063, %v4270
  %4272 = vmatmul.bf16.gmra.mxu0 %v4140
  %v4273 = vpop.f32.mrf.mxu0
  %v4274 = vadd.f32 %v4063, %v4273
  %v4275 = vpop.f32.mrf.mxu0
  %v4276 = vadd.f32 %v4063, %v4275
  %4277 = vmatmul.bf16.gmra.mxu0 %v4141
  %v4278 = vpop.f32.mrf.mxu0
  %v4279 = vadd.f32 %v4063, %v4278
  %v4280 = vpop.f32.mrf.mxu0
  %v4281 = vadd.f32 %v4063, %v4280
  %4282 = vmatmul.bf16.gmra.mxu0 %v4142
  %v4283 = vpop.f32.mrf.mxu0
  %v4284 = vadd.f32 %v4063, %v4283
  %v4285 = vpop.f32.mrf.mxu0
  %v4286 = vadd.f32 %v4063, %v4285
  %4287 = vmatmul.bf16.gmra.mxu0 %v4143
  %v4288 = vpop.f32.mrf.mxu0
  %v4289 = vadd.f32 %v4063, %v4288
  %v4290 = vpop.f32.mrf.mxu0
  %v4291 = vadd.f32 %v4063, %v4290
  %4292 = vmatmul.bf16.gmra.mxu0 %v4144
  %v4293 = vpop.f32.mrf.mxu0
  %v4294 = vadd.f32 %v4063, %v4293
  %v4295 = vpop.f32.mrf.mxu0
  %v4296 = vadd.f32 %v4063, %v4295
  %4297 = vdwg.mxu0
  %vm4298 = vcmp.ge.f32.partialorder %v4219, 0.0
  %vm4299 = vcmp.ge.f32.partialorder %v4221, 0.0
  %vm4300 = vcmp.ge.f32.partialorder %v4224, 0.0
  %vm4301 = vcmp.ge.f32.partialorder %v4226, 0.0
  %vm4302 = vcmp.ge.f32.partialorder %v4229, 0.0
  %vm4303 = vcmp.ge.f32.partialorder %v4231, 0.0
  %vm4304 = vcmp.ge.f32.partialorder %v4234, 0.0
  %vm4305 = vcmp.ge.f32.partialorder %v4236, 0.0
  %vm4306 = vcmp.ge.f32.partialorder %v4239, 0.0
  %vm4307 = vcmp.ge.f32.partialorder %v4241, 0.0
  %vm4308 = vcmp.ge.f32.partialorder %v4244, 0.0
  %vm4309 = vcmp.ge.f32.partialorder %v4246, 0.0
  %vm4310 = vcmp.ge.f32.partialorder %v4249, 0.0
  %vm4311 = vcmp.ge.f32.partialorder %v4251, 0.0
  %vm4312 = vcmp.ge.f32.partialorder %v4254, 0.0
  %vm4313 = vcmp.ge.f32.partialorder %v4256, 0.0
  %vm4314 = vcmp.ge.f32.partialorder %v4259, 0.0
  %vm4315 = vcmp.ge.f32.partialorder %v4261, 0.0
  %vm4316 = vcmp.ge.f32.partialorder %v4264, 0.0
  %vm4317 = vcmp.ge.f32.partialorder %v4266, 0.0
  %vm4318 = vcmp.ge.f32.partialorder %v4269, 0.0
  %vm4319 = vcmp.ge.f32.partialorder %v4271, 0.0
  %vm4320 = vcmp.ge.f32.partialorder %v4274, 0.0
  %vm4321 = vcmp.ge.f32.partialorder %v4276, 0.0
  %vm4322 = vcmp.ge.f32.partialorder %v4279, 0.0
  %vm4323 = vcmp.ge.f32.partialorder %v4281, 0.0
  %vm4324 = vcmp.ge.f32.partialorder %v4284, 0.0
  %vm4325 = vcmp.ge.f32.partialorder %v4286, 0.0
  %vm4326 = vcmp.ge.f32.partialorder %v4289, 0.0
  %vm4327 = vcmp.ge.f32.partialorder %v4291, 0.0
  %vm4328 = vcmp.ge.f32.partialorder %v4294, 0.0
  %vm4329 = vcmp.ge.f32.partialorder %v4296, 0.0
  %v4330 = vmul.f32 %v4219, 0.01
  %v4331 = vmul.f32 %v4221, 0.01
  %v4332 = vmul.f32 %v4224, 0.01
  %v4333 = vmul.f32 %v4226, 0.01
  %v4334 = vmul.f32 %v4229, 0.01
  %v4335 = vmul.f32 %v4231, 0.01
  %v4336 = vmul.f32 %v4234, 0.01
  %v4337 = vmul.f32 %v4236, 0.01
  %v4338 = vmul.f32 %v4239, 0.01
  %v4339 = vmul.f32 %v4241, 0.01
  %v4340 = vmul.f32 %v4244, 0.01
  %v4341 = vmul.f32 %v4246, 0.01
  %v4342 = vmul.f32 %v4249, 0.01
  %v4343 = vmul.f32 %v4251, 0.01
  %v4344 = vmul.f32 %v4254, 0.01
  %v4345 = vmul.f32 %v4256, 0.01
  %v4346 = vmul.f32 %v4259, 0.01
  %v4347 = vmul.f32 %v4261, 0.01
  %v4348 = vmul.f32 %v4264, 0.01
  %v4349 = vmul.f32 %v4266, 0.01
  %v4350 = vmul.f32 %v4269, 0.01
  %v4351 = vmul.f32 %v4271, 0.01
  %v4352 = vmul.f32 %v4274, 0.01
  %v4353 = vmul.f32 %v4276, 0.01
  %v4354 = vmul.f32 %v4279, 0.01
  %v4355 = vmul.f32 %v4281, 0.01
  %v4356 = vmul.f32 %v4284, 0.01
  %v4357 = vmul.f32 %v4286, 0.01
  %v4358 = vmul.f32 %v4289, 0.01
  %v4359 = vmul.f32 %v4291, 0.01
  %v4360 = vmul.f32 %v4294, 0.01
  %v4361 = vmul.f32 %v4296, 0.01
  %v4362 = vsel %vm4298, %v4219, %v4330
  %v4363 = vsel %vm4299, %v4221, %v4331
  %v4364 = vsel %vm4300, %v4224, %v4332
  %v4365 = vsel %vm4301, %v4226, %v4333
  %v4366 = vsel %vm4302, %v4229, %v4334
  %v4367 = vsel %vm4303, %v4231, %v4335
  %v4368 = vsel %vm4304, %v4234, %v4336
  %v4369 = vsel %vm4305, %v4236, %v4337
  %v4370 = vsel %vm4306, %v4239, %v4338
  %v4371 = vsel %vm4307, %v4241, %v4339
  %v4372 = vsel %vm4308, %v4244, %v4340
  %v4373 = vsel %vm4309, %v4246, %v4341
  %v4374 = vsel %vm4310, %v4249, %v4342
  %v4375 = vsel %vm4311, %v4251, %v4343
  %v4376 = vsel %vm4312, %v4254, %v4344
  %v4377 = vsel %vm4313, %v4256, %v4345
  %v4378 = vsel %vm4314, %v4259, %v4346
  %v4379 = vsel %vm4315, %v4261, %v4347
  %v4380 = vsel %vm4316, %v4264, %v4348
  %v4381 = vsel %vm4317, %v4266, %v4349
  %v4382 = vsel %vm4318, %v4269, %v4350
  %v4383 = vsel %vm4319, %v4271, %v4351
  %v4384 = vsel %vm4320, %v4274, %v4352
  %v4385 = vsel %vm4321, %v4276, %v4353
  %v4386 = vsel %vm4322, %v4279, %v4354
  %v4387 = vsel %vm4323, %v4281, %v4355
  %v4388 = vsel %vm4324, %v4284, %v4356
  %v4389 = vsel %vm4325, %v4286, %v4357
  %v4390 = vsel %vm4326, %v4289, %v4358
  %v4391 = vsel %vm4327, %v4291, %v4359
  %v4392 = vsel %vm4328, %v4294, %v4360
  %v4393 = vsel %vm4329, %v4296, %v4361
  %v4394 = vpack.c.bf16 %v4362, %v4362
  %v4395 = vpack.c.bf16 %v4363, %v4363
  %v4396 = vpack.c.bf16 %v4364, %v4364
  %v4397 = vpack.c.bf16 %v4365, %v4365
  %v4398 = vpack.c.bf16 %v4366, %v4366
  %v4399 = vpack.c.bf16 %v4367, %v4367
  %v4400 = vpack.c.bf16 %v4368, %v4368
  %v4401 = vpack.c.bf16 %v4369, %v4369
  %v4402 = vpack.c.bf16 %v4370, %v4370
  %v4403 = vpack.c.bf16 %v4371, %v4371
  %v4404 = vpack.c.bf16 %v4372, %v4372
  %v4405 = vpack.c.bf16 %v4373, %v4373
  %v4406 = vpack.c.bf16 %v4374, %v4374
  %v4407 = vpack.c.bf16 %v4375, %v4375
  %v4408 = vpack.c.bf16 %v4376, %v4376
  %v4409 = vpack.c.bf16 %v4377, %v4377
  %v4410 = vpack.c.bf16 %v4378, %v4378
  %v4411 = vpack.c.bf16 %v4379, %v4379
  %v4412 = vpack.c.bf16 %v4380, %v4380
  %v4413 = vpack.c.bf16 %v4381, %v4381
  %v4414 = vpack.c.bf16 %v4382, %v4382
  %v4415 = vpack.c.bf16 %v4383, %v4383
  %v4416 = vpack.c.bf16 %v4384, %v4384
  %v4417 = vpack.c.bf16 %v4385, %v4385
  %v4418 = vpack.c.bf16 %v4386, %v4386
  %v4419 = vpack.c.bf16 %v4387, %v4387
  %v4420 = vpack.c.bf16 %v4388, %v4388
  %v4421 = vpack.c.bf16 %v4389, %v4389
  %v4422 = vpack.c.bf16 %v4390, %v4390
  %v4423 = vpack.c.bf16 %v4391, %v4391
  %v4424 = vpack.c.bf16 %v4392, %v4392
  %v4425 = vpack.c.bf16 %v4393, %v4393
  %4426 = vst [vmem:[%s10] sm:$0xf] %v4394
  %4427 = vst [vmem:[%s10 + $0x4] sm:$0xf] %v4395
  %4428 = vst [vmem:[%s10 + $0x8] sm:$0xf] %v4396
  %4429 = vst [vmem:[%s10 + $0xc] sm:$0xf] %v4397
  %4430 = vst [vmem:[%s10 + $0x10] sm:$0xf] %v4398
  %4431 = vst [vmem:[%s10 + $0x14] sm:$0xf] %v4399
  %4432 = vst [vmem:[%s10 + $0x18] sm:$0xf] %v4400
  %4433 = vst [vmem:[%s10 + $0x1c] sm:$0xf] %v4401
  %4434 = vst [vmem:[%s10 + $0x20] sm:$0xf] %v4402
  %4435 = vst [vmem:[%s10 + $0x24] sm:$0xf] %v4403
  %4436 = vst [vmem:[%s10 + $0x28] sm:$0xf] %v4404
  %4437 = vst [vmem:[%s10 + $0x2c] sm:$0xf] %v4405
  %4438 = vst [vmem:[%s10 + $0x30] sm:$0xf] %v4406
  %4439 = vst [vmem:[%s10 + $0x34] sm:$0xf] %v4407
  %4440 = vst [vmem:[%s10 + $0x38] sm:$0xf] %v4408
  %4441 = vst [vmem:[%s10 + $0x3c] sm:$0xf] %v4409
  %4442 = vst [vmem:[%s10 + $0x40] sm:$0xf] %v4410
  %4443 = vst [vmem:[%s10 + $0x44] sm:$0xf] %v4411
  %4444 = vst [vmem:[%s10 + $0x48] sm:$0xf] %v4412
  %4445 = vst [vmem:[%s10 + $0x4c] sm:$0xf] %v4413
  %4446 = vst [vmem:[%s10 + $0x50] sm:$0xf] %v4414
  %4447 = vst [vmem:[%s10 + $0x54] sm:$0xf] %v4415
  %4448 = vst [vmem:[%s10 + $0x58] sm:$0xf] %v4416
  %4449 = vst [vmem:[%s10 + $0x5c] sm:$0xf] %v4417
  %4450 = vst [vmem:[%s10 + $0x60] sm:$0xf] %v4418
  %4451 = vst [vmem:[%s10 + $0x64] sm:$0xf] %v4419
  %4452 = vst [vmem:[%s10 + $0x68] sm:$0xf] %v4420
  %4453 = vst [vmem:[%s10 + $0x6c] sm:$0xf] %v4421
  %4454 = vst [vmem:[%s10 + $0x70] sm:$0xf] %v4422
  %4455 = vst [vmem:[%s10 + $0x74] sm:$0xf] %v4423
  %4456 = vst [vmem:[%s10 + $0x78] sm:$0xf] %v4424
  %4457 = vst [vmem:[%s10 + $0x7c] sm:$0xf] %v4425
  // Predicated region
  $region110: #{leaky_residual_approximator.2} parent=0 // pred_check
    _
  $region111: #{leaky_residual_approximator.2} parent=0 // pred_check_branch
    %4459 = sbr.rel (0) target = $region113
  $region112: #{leaky_residual_approximator.2} parent=0 // pred_region
    _
  $region113: #{leaky_residual_approximator.2} parent=0 // pred_fallthru
    _
  // Predicated region
  $region114: #{leaky_residual_approximator.2} parent=0 // pred_check
    _
  $region115: #{leaky_residual_approximator.2} parent=0 // pred_check_branch
    %4461 = sbr.rel (0) target = $region117
  $region116: #{leaky_residual_approximator.2} parent=0 // pred_region
    _
  $region117: #{leaky_residual_approximator.2} parent=0 // pred_fallthru
    _
  // Predicated region
  $region118: #{leaky_residual_approximator.2} parent=0 // pred_check
    _
  $region119: #{leaky_residual_approximator.2} parent=0 // pred_check_branch
    %4463 = sbr.rel (0) target = $region121
  $region120: #{leaky_residual_approximator.2} parent=0 // pred_region
    _
  $region121: #{leaky_residual_approximator.2} parent=0 // pred_fallthru
    _
  // Predicated region
  $region122: #{leaky_residual_approximator.2} parent=0 // pred_check
    _
  $region123: #{leaky_residual_approximator.2} parent=0 // pred_check_branch
    %4465 = sbr.rel (0) target = $region125
  $region124: #{leaky_residual_approximator.2} parent=0 // pred_region
    _
  $region125: #{leaky_residual_approximator.2} parent=0 // pred_fallthru
    _
  %4466 = vsyncmov [#allocation6]
  %s4467 = vpop.sfrf %4466
  %p4468 = scmp.eq.s32.totalorder %s4467, 0
  %p4469 = pneg %p4468
  %4471 = shalt.err (%p4469)
  %s4472 = scalar_lea.sflag [#allocation6], 1
  %4473 = vsyncmov %s4472
  %s4474 = vpop.sfrf %4473
  %p4475 = scmp.eq.s32.totalorder %s4474, 0
  %p4476 = pneg %p4475
  %4478 = shalt.err (%p4476)
  %s4479 = scalar_lea.sflag [#allocation6], 2
  %4480 = vsyncmov %s4479
  %s4481 = vpop.sfrf %4480
  %p4482 = scmp.eq.s32.totalorder %s4481, 0
  %p4483 = pneg %p4482
  %4485 = shalt.err (%p4483)
  %s4486 = scalar_lea.sflag [#allocation6], 3
  %4487 = vsyncmov %s4486
  %s4488 = vpop.sfrf %4487
  %p4489 = scmp.eq.s32.totalorder %s4488, 0
  %p4490 = pneg %p4489
  %4492 = shalt.err (%p4490)

</llo_original>
